<compile_context>
chip_gen: v7x
topology: tpu7x:2x2x1
jax: 0.10.0
libtpu: 0.0.40
codegen_flags: <defaults>
</compile_context>

<pallas_src>
import functools

import numpy as np
import jax
import jax.numpy as jnp
from jax.experimental import pallas as pl
from jax.experimental.pallas import tpu as pltpu


# ---------------------------------------------------------------------------
# In-kernel helpers
# ---------------------------------------------------------------------------
def _shift_minor(v, d):
    """w[..., p] = v[..., (p + d) % n] for a static int d (lane roll)."""
    if d == 0:
        return v
    n = v.shape[-1]
    d = d % n
    return jnp.concatenate([v[..., d:], v[..., :d]], axis=-1)


def _build_taps(xh_ref, mask_ref, z_ref, *, W):
    """Write the nine 3x3 conv taps of xh (2C, N) into z (18C, N).

    The flattened spatial axis (plus any lane-folded batch) sits on lanes, so
    each tap is a lane shift by dy*W + dx; shifts that wrap across image rows
    / image (batch) boundaries land on positions zeroed by the border masks.
    """
    src = xh_ref[...]
    rows = src.shape[0]                    # 2C
    k = 0
    for dy in (-1, 0, 1):
        for dx in (-1, 0, 1):
            tap = _shift_minor(src, dy * W + dx)
            if dy != 0 or dx != 0:
                tap = tap * mask_ref[k:k + 1, :]
            z_ref[k * rows:(k + 1) * rows, :] = tap
            k += 1


def _lstm_gates(z_ref, w_ref, b_ref, c_ref, *, C):
    """Gate conv + ConvLSTM cell update.  Returns (h_new, c_new)."""
    g = jnp.dot(w_ref[...], z_ref[...],
                preferred_element_type=jnp.float32) + b_ref[...]
    acts = jax.nn.sigmoid(g[0:3 * C, :])
    i_g = acts[0 * C:1 * C, :]
    f_g = acts[1 * C:2 * C, :]
    o_g = acts[2 * C:3 * C, :]
    g_g = jnp.tanh(g[3 * C:4 * C, :])
    c_new = f_g * c_ref[...] + i_g * g_g
    h_new = o_g * jnp.tanh(c_new)
    return h_new, c_new


def _fwd_lstm_kernel(x_ref, w_ref, b_ref, mask_ref, out_ref,
                     xh_scr, c_scr, z_scr, *, C, W):
    """One forward-ConvLSTM step; h/c persist in VMEM across the T axis."""
    t = pl.program_id(1)

    @pl.when(t == 0)
    def _():
        xh_scr[...] = jnp.zeros_like(xh_scr)
        c_scr[...] = jnp.zeros_like(c_scr)

    xh_scr[0:C, :] = x_ref[...]                 # rows [0,C): x, [C,2C): h_{t-1}
    _build_taps(xh_scr, mask_ref, z_scr, W=W)
    h_new, c_new = _lstm_gates(z_scr, w_ref, b_ref, c_scr, C=C)
    c_scr[...] = c_new
    xh_scr[C:2 * C, :] = h_new
    out_ref[...] = h_new


def _bwd_lstm_fuse_kernel(x_ref, wg_ref, bg_ref, wf_ref, bf_ref, mask_ref,
                          out_ref, xh_scr, c_scr, z_scr, *, C, W):
    """Backward-ConvLSTM step + fused 3x3 output conv (h_bwd stays in VMEM)."""
    t = pl.program_id(1)

    @pl.when(t == 0)
    def _():
        xh_scr[...] = jnp.zeros_like(xh_scr)
        c_scr[...] = jnp.zeros_like(c_scr)

    xh_scr[0:C, :] = x_ref[...]                 # x = h_fwd at original time t
    _build_taps(xh_scr, mask_ref, z_scr, W=W)
    h_new, c_new = _lstm_gates(z_scr, wg_ref, bg_ref, c_scr, C=C)
    c_scr[...] = c_new
    xh_scr[C:2 * C, :] = h_new                  # xh = [h_fwd[t]; h_bwd[t]]

    # Fuse conv on cat(h_fwd, h_bwd): rebuild taps from the updated buffer.
    _build_taps(xh_scr, mask_ref, z_scr, W=W)
    y = jnp.dot(wf_ref[...], z_scr[...],
                preferred_element_type=jnp.float32) + bf_ref[...]
    out_ref[...] = jnp.tanh(jnp.maximum(y, 0.0))


# ---------------------------------------------------------------------------
# pallas_call wrappers
# ---------------------------------------------------------------------------
def _scan_call(kernel, x, weights, masks, *, C, reverse):
    """Run one direction (whole recurrence) in a single pallas_call."""
    BG, T, _, N = x.shape

    if reverse:
        fmap = lambda b, t: (b, T - 1 - t, 0, 0)
    else:
        fmap = lambda b, t: (b, t, 0, 0)
    const = lambda b, t: (0, 0)

    in_specs = ([pl.BlockSpec((None, None, C, N), fmap)]
                + [pl.BlockSpec(w.shape, const) for w in weights]
                + [pl.BlockSpec(masks.shape, const)])

    return pl.pallas_call(
        kernel,
        out_shape=jax.ShapeDtypeStruct((BG, T, C, N), jnp.float32),
        grid=(BG, T),
        in_specs=in_specs,
        out_specs=pl.BlockSpec((None, None, C, N), fmap),
        scratch_shapes=[pltpu.VMEM((2 * C, N), jnp.float32),    # [x; h]
                        pltpu.VMEM((C, N), jnp.float32),        # c
                        pltpu.VMEM((18 * C, N), jnp.float32)],  # conv taps
        compiler_params=pltpu.CompilerParams(
            dimension_semantics=("parallel", "arbitrary")),
    )(x, *weights, masks)


def _tensorcores_per_device():
    """Best-effort TC count; only affects perf (batch fold vs parallel)."""
    try:
        dev = jax.devices()[0]
        n = getattr(dev, "num_cores", None)
        if isinstance(n, int) and n in (1, 2):
            return n
        kind = str(getattr(dev, "device_kind", "")).lower()
        if any(s in kind for s in ("v4", "v5p", "v7", "7x")):
            return 2
    except Exception:
        pass
    return 1


def _flat_weight(w):
    """(2, 3, 3, Cin, Cout) -> (Cout, 18*Cin); cols ordered (dy, dx, src, cin)."""
    cout = w.shape[-1]
    return jnp.transpose(w, (1, 2, 0, 3, 4)).reshape(-1, cout).T


def temporal_forward(feats_time, params):
    """feats_time: (B, C, T, H, W) float32 -> (B, C, T, H, W) float32."""
    B, C, T, H, W = feats_time.shape
    HW = H * W

    # Batch handling: fold into lanes on 1-TC chips, keep parallel on 2-TC.
    ntc = _tensorcores_per_device()
    bg = ntc if (ntc > 1 and B % ntc == 0) else 1
    bf = B // bg
    N = bf * HW

    # (B, C, T, H, W) -> (BG, T, C, BF*HW): channels on sublanes, flattened
    # spatial (x fastest) with the folded batch concatenated on lanes.
    x = feats_time.reshape(bg, bf, C, T, H, W)
    x = jnp.transpose(x, (0, 3, 2, 1, 4, 5)).reshape(bg, T, C, N)

    # Border-validity masks for the 9 taps (per image, tiled over BF).
    ys, xs = np.divmod(np.arange(HW, dtype=np.int64), W)
    rows = []
    for dy in (-1, 0, 1):
        for dx in (-1, 0, 1):
            m = np.ones(HW, np.float32)
            if dy == -1:
                m *= (ys != 0)
            if dy == 1:
                m *= (ys != H - 1)
            if dx == -1:
                m *= (xs != 0)
            if dx == 1:
                m *= (xs != W - 1)
            rows.append(m)
    masks = jnp.asarray(np.tile(np.stack(rows, axis=0), (1, bf)))   # (9, N)

    fw_w = _flat_weight(params["fw_w"])
    fw_b = params["fw_b"].reshape(-1, 1)
    bw_w = _flat_weight(params["bw_w"])
    bw_b = params["bw_b"].reshape(-1, 1)
    fu_w = _flat_weight(params["fuse_w"])
    fu_b = params["fuse_b"].reshape(-1, 1)

    fwd_kernel = functools.partial(_fwd_lstm_kernel, C=C, W=W)
    h_fwd = _scan_call(fwd_kernel, x, (fw_w, fw_b), masks,
                       C=C, reverse=False)

    bwd_kernel = functools.partial(_bwd_lstm_fuse_kernel, C=C, W=W)
    feats = _scan_call(bwd_kernel, h_fwd, (bw_w, bw_b, fu_w, fu_b), masks,
                       C=C, reverse=True)

    # (BG, T, C, BF*HW) -> (B, C, T, H, W)
    feats = feats.reshape(bg, T, C, bf, H, W)
    feats = jnp.transpose(feats, (0, 3, 2, 1, 4, 5)).reshape(B, C, T, H, W)
    return feats


# ---------------------------------------------------------------------------
# Deterministic parameter init (PyTorch-Conv2d-like uniform bounds)
# Weight layout: (src, 3, 3, Cin, Cout) with src 0 = x/fwd, 1 = h/bwd.
# ---------------------------------------------------------------------------
def init_params(key, C):
    def conv_init(k, cout):
        kw, kb = jax.random.split(k)
        bound = 1.0 / np.sqrt(2 * C * 9)
        w = jax.random.uniform(kw, (2, 3, 3, C, cout), jnp.float32,
                               -bound, bound)
        b = jax.random.uniform(kb, (1, cout), jnp.float32, -bound, bound)
        return w, b

    k1, k2, k3 = jax.random.split(key, 3)
    fw_w, fw_b = conv_init(k1, 4 * C)   # forward_lstm gate conv
    bw_w, bw_b = conv_init(k2, 4 * C)   # backward_lstm gate conv
    fu_w, fu_b = conv_init(k3, C)       # fuse conv
    return dict(fw_w=fw_w, fw_b=fw_b, bw_w=bw_w, bw_b=bw_b,
                fuse_w=fu_w, fuse_b=fu_b)


# ---------------------------------------------------------------------------
# Pure-JAX reference (lax.conv based) for verification
# ---------------------------------------------------------------------------
def _conv3x3_ref(x_bhwc, w, b):
    _, _, _, Cin, Cout = w.shape
    w_hwio = jnp.transpose(w, (1, 2, 0, 3, 4)).reshape(3, 3, 2 * Cin, Cout)
    y = jax.lax.conv_general_dilated(
        x_bhwc, w_hwio, (1, 1), "SAME",
        dimension_numbers=("NHWC", "HWIO", "NHWC"))
    return y + b.reshape(1, 1, 1, Cout)


def _lstm_step_ref(x, h, c, w, b):
    C = x.shape[-1]
    g = _conv3x3_ref(jnp.concatenate([x, h], axis=-1), w, b)
    i = jax.nn.sigmoid(g[..., 0 * C:1 * C])
    f = jax.nn.sigmoid(g[..., 1 * C:2 * C])
    o = jax.nn.sigmoid(g[..., 2 * C:3 * C])
    gg = jnp.tanh(g[..., 3 * C:4 * C])
    c_new = f * c + i * gg
    return o * jnp.tanh(c_new), c_new


def temporal_ref(feats_time, params):
    B, C, T, H, W = feats_time.shape
    x = jnp.transpose(feats_time, (0, 2, 3, 4, 1))
    z = jnp.zeros((B, H, W, C), jnp.float32)
    h, c = z, z
    fwd = []
    for t in range(T):
        h, c = _lstm_step_ref(x[:, t], h, c, params["fw_w"], params["fw_b"])
        fwd.append(h)
    h, c = z, z
    bwd = []
    for t in range(T):
        h, c = _lstm_step_ref(fwd[T - 1 - t], h, c,
                              params["bw_w"], params["bw_b"])
        bwd.append(h)
    bwd = bwd[::-1]
    outs = []
    for t in range(T):
        y = _conv3x3_ref(jnp.concatenate([fwd[t], bwd[t]], axis=-1),
                         params["fuse_w"], params["fuse_b"])
        outs.append(jnp.tanh(jnp.maximum(y, 0.0)))
    out = jnp.stack(outs, axis=1)
    return jnp.transpose(out, (0, 4, 1, 2, 3))


# ---------------------------------------------------------------------------
if __name__ == "__main__":
    B, C, T, H, W = 2, 4, 8, 16, 16
    key = jax.random.PRNGKey(0)
    kx, kp = jax.random.split(key)
    feats_time = jax.random.normal(kx, (B, C, T, H, W), jnp.float32)
    params = init_params(kp, C)

    out = jax.jit(temporal_forward)(feats_time, params)
    out = jax.block_until_ready(out)
    assert out.shape == (B, C, T, H, W) and out.dtype == jnp.float32

    ref = temporal_ref(feats_time, params)
    np.testing.assert_allclose(np.asarray(out), np.asarray(ref),
                               rtol=5e-4, atol=5e-4)
    print("KERNEL_OK")
</pallas_src>

<mosaic_0001>
module attributes {stable_mosaic.version = 11 : i64} {
  func.func @_fwd_lstm_kernel(%arg0: i32, %arg1: i32, %arg2: memref<1x1x4x512xf32, #tpu.memory_space<vmem>>, %arg3: memref<16x72xf32, #tpu.memory_space<vmem>>, %arg4: memref<16x1xf32, #tpu.memory_space<vmem>>, %arg5: memref<9x512xf32, #tpu.memory_space<vmem>>, %arg6: memref<1x1x4x512xf32, #tpu.memory_space<vmem>>, %arg7: memref<8x512xf32, #tpu.memory_space<vmem>>, %arg8: memref<4x512xf32, #tpu.memory_space<vmem>>, %arg9: memref<72x512xf32, #tpu.memory_space<vmem>>) attributes {dimension_semantics = [#tpu.dimension_semantics<parallel>, #tpu.dimension_semantics<arbitrary>], iteration_bounds = array<i64: 1, 8>, scalar_prefetch = 0 : i64, scratch_operands = 3 : i64, tpu.core_type = #tpu.core_type<tc>, window_params = [{transform_indices = @transform_0, window_bounds = array<i64: 1, 1, 4, 512>}, {pipeline_mode = #tpu.pipeline_mode<synchronous>, transform_indices = @transform_1, window_bounds = array<i64: 16, 72>}, {pipeline_mode = #tpu.pipeline_mode<synchronous>, transform_indices = @transform_2, window_bounds = array<i64: 16, 1>}, {pipeline_mode = #tpu.pipeline_mode<synchronous>, transform_indices = @transform_3, window_bounds = array<i64: 9, 512>}, {transform_indices = @transform_4, window_bounds = array<i64: 1, 1, 4, 512>}]} {
    %c0_i32 = arith.constant 0 : i32
    %0 = arith.cmpi eq, %arg1, %c0_i32 : i32
    %1 = arith.extui %0 : i1 to i32
    %c0_i32_0 = arith.constant 0 : i32
    %2 = arith.cmpi ne, %1, %c0_i32_0 : i32
    scf.if %2 {
      %cst_44 = arith.constant 0.000000e+00 : f32
      %92 = vector.broadcast %cst_44 : f32 to vector<8x512xf32>
      %c0_45 = arith.constant 0 : index
      %c0_46 = arith.constant 0 : index
      %93 = vector.load %arg7[%c0_45, %c0_46] : memref<8x512xf32, #tpu.memory_space<vmem>>, vector<8x512xf32>
      tpu.vector_store %arg7[%c0_45, %c0_46], %92 {strides = array<i32>} : memref<8x512xf32, #tpu.memory_space<vmem>>, vector<8x512xf32>,
      %cst_47 = arith.constant 0.000000e+00 : f32
      %94 = vector.broadcast %cst_47 : f32 to vector<4x512xf32>
      %c0_48 = arith.constant 0 : index
      %c0_49 = arith.constant 0 : index
      %95 = vector.load %arg8[%c0_48, %c0_49] : memref<4x512xf32, #tpu.memory_space<vmem>>, vector<4x512xf32>
      tpu.vector_store %arg8[%c0_48, %c0_49], %94 {strides = array<i32>} : memref<4x512xf32, #tpu.memory_space<vmem>>, vector<4x512xf32>,
    } else {
    }
    %c0 = arith.constant 0 : index
    %c0_1 = arith.constant 0 : index
    %c0_2 = arith.constant 0 : index
    %c0_3 = arith.constant 0 : index
    %3 = vector.load %arg2[%c0, %c0_1, %c0_2, %c0_3] : memref<1x1x4x512xf32, #tpu.memory_space<vmem>>, vector<1x1x4x512xf32>
    %4 = vector.shape_cast %3 : vector<1x1x4x512xf32> to vector<4x512xf32>
    %c0_4 = arith.constant 0 : index
    %c0_5 = arith.constant 0 : index
    %5 = vector.load %arg7[%c0_4, %c0_5] : memref<8x512xf32, #tpu.memory_space<vmem>>, vector<4x512xf32>
    tpu.vector_store %arg7[%c0_4, %c0_5], %4 {strides = array<i32>} : memref<8x512xf32, #tpu.memory_space<vmem>>, vector<4x512xf32>,
    %c0_6 = arith.constant 0 : index
    %c0_7 = arith.constant 0 : index
    %6 = vector.load %arg7[%c0_6, %c0_7] : memref<8x512xf32, #tpu.memory_space<vmem>>, vector<8x512xf32>
    %7 = vector.extract_strided_slice %6 {offsets = [0, 495], sizes = [8, 17], strides = [1, 1]} : vector<8x512xf32> to vector<8x17xf32>
    %8 = vector.extract_strided_slice %6 {offsets = [0, 0], sizes = [8, 495], strides = [1, 1]} : vector<8x512xf32> to vector<8x495xf32>
    %9 = tpu.concatenate %7, %8 in 1 : vector<8x17xf32>, vector<8x495xf32> -> vector<8x512xf32>
    %c0_8 = arith.constant 0 : index
    %c0_9 = arith.constant 0 : index
    %10 = vector.load %arg5[%c0_8, %c0_9] : memref<9x512xf32, #tpu.memory_space<vmem>>, vector<1x512xf32>
    %11 = vector.broadcast %10 : vector<1x512xf32> to vector<8x512xf32>
    %12 = arith.mulf %9, %11 : vector<8x512xf32>
    %c0_10 = arith.constant 0 : index
    %c0_11 = arith.constant 0 : index
    %13 = vector.load %arg9[%c0_10, %c0_11] : memref<72x512xf32, #tpu.memory_space<vmem>>, vector<8x512xf32>
    tpu.vector_store %arg9[%c0_10, %c0_11], %12 {strides = array<i32>} : memref<72x512xf32, #tpu.memory_space<vmem>>, vector<8x512xf32>,
    %14 = vector.extract_strided_slice %6 {offsets = [0, 496], sizes = [8, 16], strides = [1, 1]} : vector<8x512xf32> to vector<8x16xf32>
    %15 = vector.extract_strided_slice %6 {offsets = [0, 0], sizes = [8, 496], strides = [1, 1]} : vector<8x512xf32> to vector<8x496xf32>
    %16 = tpu.concatenate %14, %15 in 1 : vector<8x16xf32>, vector<8x496xf32> -> vector<8x512xf32>
    %c1 = arith.constant 1 : index
    %c0_12 = arith.constant 0 : index
    %17 = vector.load %arg5[%c1, %c0_12] : memref<9x512xf32, #tpu.memory_space<vmem>>, vector<1x512xf32>
    %18 = vector.broadcast %17 : vector<1x512xf32> to vector<8x512xf32>
    %19 = arith.mulf %16, %18 : vector<8x512xf32>
    %c8 = arith.constant 8 : index
    %c0_13 = arith.constant 0 : index
    %20 = vector.load %arg9[%c8, %c0_13] : memref<72x512xf32, #tpu.memory_space<vmem>>, vector<8x512xf32>
    tpu.vector_store %arg9[%c8, %c0_13], %19 {strides = array<i32>} : memref<72x512xf32, #tpu.memory_space<vmem>>, vector<8x512xf32>,
    %21 = vector.extract_strided_slice %6 {offsets = [0, 497], sizes = [8, 15], strides = [1, 1]} : vector<8x512xf32> to vector<8x15xf32>
    %22 = vector.extract_strided_slice %6 {offsets = [0, 0], sizes = [8, 497], strides = [1, 1]} : vector<8x512xf32> to vector<8x497xf32>
    %23 = tpu.concatenate %21, %22 in 1 : vector<8x15xf32>, vector<8x497xf32> -> vector<8x512xf32>
    %c2 = arith.constant 2 : index
    %c0_14 = arith.constant 0 : index
    %24 = vector.load %arg5[%c2, %c0_14] : memref<9x512xf32, #tpu.memory_space<vmem>>, vector<1x512xf32>
    %25 = vector.broadcast %24 : vector<1x512xf32> to vector<8x512xf32>
    %26 = arith.mulf %23, %25 : vector<8x512xf32>
    %c16 = arith.constant 16 : index
    %c0_15 = arith.constant 0 : index
    %27 = vector.load %arg9[%c16, %c0_15] : memref<72x512xf32, #tpu.memory_space<vmem>>, vector<8x512xf32>
    tpu.vector_store %arg9[%c16, %c0_15], %26 {strides = array<i32>} : memref<72x512xf32, #tpu.memory_space<vmem>>, vector<8x512xf32>,
    %28 = vector.extract_strided_slice %6 {offsets = [0, 511], sizes = [8, 1], strides = [1, 1]} : vector<8x512xf32> to vector<8x1xf32>
    %29 = vector.extract_strided_slice %6 {offsets = [0, 0], sizes = [8, 511], strides = [1, 1]} : vector<8x512xf32> to vector<8x511xf32>
    %30 = tpu.concatenate %28, %29 in 1 : vector<8x1xf32>, vector<8x511xf32> -> vector<8x512xf32>
    %c3 = arith.constant 3 : index
    %c0_16 = arith.constant 0 : index
    %31 = vector.load %arg5[%c3, %c0_16] : memref<9x512xf32, #tpu.memory_space<vmem>>, vector<1x512xf32>
    %32 = vector.broadcast %31 : vector<1x512xf32> to vector<8x512xf32>
    %33 = arith.mulf %30, %32 : vector<8x512xf32>
    %c24 = arith.constant 24 : index
    %c0_17 = arith.constant 0 : index
    %34 = vector.load %arg9[%c24, %c0_17] : memref<72x512xf32, #tpu.memory_space<vmem>>, vector<8x512xf32>
    tpu.vector_store %arg9[%c24, %c0_17], %33 {strides = array<i32>} : memref<72x512xf32, #tpu.memory_space<vmem>>, vector<8x512xf32>,
    %c32 = arith.constant 32 : index
    %c0_18 = arith.constant 0 : index
    %35 = vector.load %arg9[%c32, %c0_18] : memref<72x512xf32, #tpu.memory_space<vmem>>, vector<8x512xf32>
    tpu.vector_store %arg9[%c32, %c0_18], %6 {strides = array<i32>} : memref<72x512xf32, #tpu.memory_space<vmem>>, vector<8x512xf32>,
    %36 = vector.extract_strided_slice %6 {offsets = [0, 1], sizes = [8, 511], strides = [1, 1]} : vector<8x512xf32> to vector<8x511xf32>
    %37 = vector.extract_strided_slice %6 {offsets = [0, 0], sizes = [8, 1], strides = [1, 1]} : vector<8x512xf32> to vector<8x1xf32>
    %38 = tpu.concatenate %36, %37 in 1 : vector<8x511xf32>, vector<8x1xf32> -> vector<8x512xf32>
    %c5 = arith.constant 5 : index
    %c0_19 = arith.constant 0 : index
    %39 = vector.load %arg5[%c5, %c0_19] : memref<9x512xf32, #tpu.memory_space<vmem>>, vector<1x512xf32>
    %40 = vector.broadcast %39 : vector<1x512xf32> to vector<8x512xf32>
    %41 = arith.mulf %38, %40 : vector<8x512xf32>
    %c40 = arith.constant 40 : index
    %c0_20 = arith.constant 0 : index
    %42 = vector.load %arg9[%c40, %c0_20] : memref<72x512xf32, #tpu.memory_space<vmem>>, vector<8x512xf32>
    tpu.vector_store %arg9[%c40, %c0_20], %41 {strides = array<i32>} : memref<72x512xf32, #tpu.memory_space<vmem>>, vector<8x512xf32>,
    %43 = vector.extract_strided_slice %6 {offsets = [0, 15], sizes = [8, 497], strides = [1, 1]} : vector<8x512xf32> to vector<8x497xf32>
    %44 = vector.extract_strided_slice %6 {offsets = [0, 0], sizes = [8, 15], strides = [1, 1]} : vector<8x512xf32> to vector<8x15xf32>
    %45 = tpu.concatenate %43, %44 in 1 : vector<8x497xf32>, vector<8x15xf32> -> vector<8x512xf32>
    %c6 = arith.constant 6 : index
    %c0_21 = arith.constant 0 : index
    %46 = vector.load %arg5[%c6, %c0_21] : memref<9x512xf32, #tpu.memory_space<vmem>>, vector<1x512xf32>
    %47 = vector.broadcast %46 : vector<1x512xf32> to vector<8x512xf32>
    %48 = arith.mulf %45, %47 : vector<8x512xf32>
    %c48 = arith.constant 48 : index
    %c0_22 = arith.constant 0 : index
    %49 = vector.load %arg9[%c48, %c0_22] : memref<72x512xf32, #tpu.memory_space<vmem>>, vector<8x512xf32>
    tpu.vector_store %arg9[%c48, %c0_22], %48 {strides = array<i32>} : memref<72x512xf32, #tpu.memory_space<vmem>>, vector<8x512xf32>,
    %50 = vector.extract_strided_slice %6 {offsets = [0, 16], sizes = [8, 496], strides = [1, 1]} : vector<8x512xf32> to vector<8x496xf32>
    %51 = vector.extract_strided_slice %6 {offsets = [0, 0], sizes = [8, 16], strides = [1, 1]} : vector<8x512xf32> to vector<8x16xf32>
    %52 = tpu.concatenate %50, %51 in 1 : vector<8x496xf32>, vector<8x16xf32> -> vector<8x512xf32>
    %c7 = arith.constant 7 : index
    %c0_23 = arith.constant 0 : index
    %53 = vector.load %arg5[%c7, %c0_23] : memref<9x512xf32, #tpu.memory_space<vmem>>, vector<1x512xf32>
    %54 = vector.broadcast %53 : vector<1x512xf32> to vector<8x512xf32>
    %55 = arith.mulf %52, %54 : vector<8x512xf32>
    %c56 = arith.constant 56 : index
    %c0_24 = arith.constant 0 : index
    %56 = vector.load %arg9[%c56, %c0_24] : memref<72x512xf32, #tpu.memory_space<vmem>>, vector<8x512xf32>
    tpu.vector_store %arg9[%c56, %c0_24], %55 {strides = array<i32>} : memref<72x512xf32, #tpu.memory_space<vmem>>, vector<8x512xf32>,
    %57 = vector.extract_strided_slice %6 {offsets = [0, 17], sizes = [8, 495], strides = [1, 1]} : vector<8x512xf32> to vector<8x495xf32>
    %58 = vector.extract_strided_slice %6 {offsets = [0, 0], sizes = [8, 17], strides = [1, 1]} : vector<8x512xf32> to vector<8x17xf32>
    %59 = tpu.concatenate %57, %58 in 1 : vector<8x495xf32>, vector<8x17xf32> -> vector<8x512xf32>
    %c8_25 = arith.constant 8 : index
    %c0_26 = arith.constant 0 : index
    %60 = vector.load %arg5[%c8_25, %c0_26] : memref<9x512xf32, #tpu.memory_space<vmem>>, vector<1x512xf32>
    %61 = vector.broadcast %60 : vector<1x512xf32> to vector<8x512xf32>
    %62 = arith.mulf %59, %61 : vector<8x512xf32>
    %c64 = arith.constant 64 : index
    %c0_27 = arith.constant 0 : index
    %63 = vector.load %arg9[%c64, %c0_27] : memref<72x512xf32, #tpu.memory_space<vmem>>, vector<8x512xf32>
    tpu.vector_store %arg9[%c64, %c0_27], %62 {strides = array<i32>} : memref<72x512xf32, #tpu.memory_space<vmem>>, vector<8x512xf32>,
    %c0_28 = arith.constant 0 : index
    %c0_29 = arith.constant 0 : index
    %64 = vector.load %arg3[%c0_28, %c0_29] : memref<16x72xf32, #tpu.memory_space<vmem>>, vector<16x72xf32>
    %c0_30 = arith.constant 0 : index
    %c0_31 = arith.constant 0 : index
    %65 = vector.load %arg9[%c0_30, %c0_31] : memref<72x512xf32, #tpu.memory_space<vmem>>, vector<72x512xf32>
    %cst = arith.constant dense<0.000000e+00> : vector<16x512xf32>
    %66 = tpu.matmul %64, %65, %cst {dimension_numbers = #tpu.dot_dimension_numbers<[1], [0], [0], [1], [0, 0, 1, 1], [], []>} : vector<16x72xf32>, vector<72x512xf32>, vector<16x512xf32> -> vector<16x512xf32>
    %c0_32 = arith.constant 0 : index
    %c0_33 = arith.constant 0 : index
    %67 = vector.load %arg4[%c0_32, %c0_33] : memref<16x1xf32, #tpu.memory_space<vmem>>, vector<16x1xf32>
    %68 = vector.broadcast %67 : vector<16x1xf32> to vector<16x512xf32>
    %69 = arith.addf %66, %68 : vector<16x512xf32>
    %70 = vector.extract_strided_slice %69 {offsets = [0, 0], sizes = [12, 512], strides = [1, 1]} : vector<16x512xf32> to vector<12x512xf32>
    %71 = arith.negf %70 : vector<12x512xf32>
    %72 = math.exp %71 : vector<12x512xf32>
    %cst_34 = arith.constant 1.000000e+00 : f32
    %73 = vector.broadcast %cst_34 : f32 to vector<12x512xf32>
    %74 = arith.addf %73, %72 : vector<12x512xf32>
    %75 = arith.divf %73, %74 : vector<12x512xf32>
    %76 = vector.extract_strided_slice %75 {offsets = [0, 0], sizes = [4, 512], strides = [1, 1]} : vector<12x512xf32> to vector<4x512xf32>
    %77 = vector.extract_strided_slice %75 {offsets = [4, 0], sizes = [4, 512], strides = [1, 1]} : vector<12x512xf32> to vector<4x512xf32>
    %78 = vector.extract_strided_slice %75 {offsets = [8, 0], sizes = [4, 512], strides = [1, 1]} : vector<12x512xf32> to vector<4x512xf32>
    %79 = vector.extract_strided_slice %69 {offsets = [12, 0], sizes = [4, 512], strides = [1, 1]} : vector<16x512xf32> to vector<4x512xf32>
    %80 = math.tanh %79 : vector<4x512xf32>
    %c0_35 = arith.constant 0 : index
    %c0_36 = arith.constant 0 : index
    %81 = vector.load %arg8[%c0_35, %c0_36] : memref<4x512xf32, #tpu.memory_space<vmem>>, vector<4x512xf32>
    %82 = arith.mulf %77, %81 : vector<4x512xf32>
    %83 = arith.mulf %76, %80 : vector<4x512xf32>
    %84 = arith.addf %82, %83 : vector<4x512xf32>
    %85 = math.tanh %84 : vector<4x512xf32>
    %86 = arith.mulf %78, %85 : vector<4x512xf32>
    %c0_37 = arith.constant 0 : index
    %c0_38 = arith.constant 0 : index
    %87 = vector.load %arg8[%c0_37, %c0_38] : memref<4x512xf32, #tpu.memory_space<vmem>>, vector<4x512xf32>
    tpu.vector_store %arg8[%c0_37, %c0_38], %84 {strides = array<i32>} : memref<4x512xf32, #tpu.memory_space<vmem>>, vector<4x512xf32>,
    %c4 = arith.constant 4 : index
    %c0_39 = arith.constant 0 : index
    %88 = vector.load %arg7[%c4, %c0_39] : memref<8x512xf32, #tpu.memory_space<vmem>>, vector<4x512xf32>
    tpu.vector_store %arg7[%c4, %c0_39], %86 {strides = array<i32>} : memref<8x512xf32, #tpu.memory_space<vmem>>, vector<4x512xf32>,
    %c0_40 = arith.constant 0 : index
    %c0_41 = arith.constant 0 : index
    %c0_42 = arith.constant 0 : index
    %c0_43 = arith.constant 0 : index
    %89 = vector.load %arg6[%c0_40, %c0_41, %c0_42, %c0_43] : memref<1x1x4x512xf32, #tpu.memory_space<vmem>>, vector<1x1x4x512xf32>
    %90 = vector.shape_cast %89 : vector<1x1x4x512xf32> to vector<4x512xf32>
    %91 = vector.shape_cast %86 : vector<4x512xf32> to vector<1x1x4x512xf32>
    tpu.vector_store %arg6[%c0_40, %c0_41, %c0_42, %c0_43], %91 {strides = array<i32>} : memref<1x1x4x512xf32, #tpu.memory_space<vmem>>, vector<1x1x4x512xf32>,
    return
  }
  func.func @transform_0(%arg0: i32, %arg1: i32) -> (i32, i32, i32, i32) {
    %c0_i32 = arith.constant 0 : i32
    %c0_i32_0 = arith.constant 0 : i32
    %c0_i32_1 = arith.constant 0 : i32
    return %arg0, %arg1, %c0_i32, %c0_i32_0 : i32, i32, i32, i32
  }
  func.func @transform_1(%arg0: i32, %arg1: i32) -> (i32, i32) {
    %c0_i32 = arith.constant 0 : i32
    %c0_i32_0 = arith.constant 0 : i32
    %c0_i32_1 = arith.constant 0 : i32
    return %c0_i32, %c0_i32_0 : i32, i32
  }
  func.func @transform_2(%arg0: i32, %arg1: i32) -> (i32, i32) {
    %c0_i32 = arith.constant 0 : i32
    %c0_i32_0 = arith.constant 0 : i32
    %c0_i32_1 = arith.constant 0 : i32
    return %c0_i32, %c0_i32_0 : i32, i32
  }
  func.func @transform_3(%arg0: i32, %arg1: i32) -> (i32, i32) {
    %c0_i32 = arith.constant 0 : i32
    %c0_i32_0 = arith.constant 0 : i32
    %c0_i32_1 = arith.constant 0 : i32
    return %c0_i32, %c0_i32_0 : i32, i32
  }
  func.func @transform_4(%arg0: i32, %arg1: i32) -> (i32, i32, i32, i32) {
    %c0_i32 = arith.constant 0 : i32
    %c0_i32_0 = arith.constant 0 : i32
    %c0_i32_1 = arith.constant 0 : i32
    return %arg0, %arg1, %c0_i32, %c0_i32_0 : i32, i32, i32, i32
  }
}

module attributes {stable_mosaic.version = 11 : i64} {
  func.func @_bwd_lstm_fuse_kernel(%arg0: i32, %arg1: i32, %arg2: memref<1x1x4x512xf32, #tpu.memory_space<vmem>>, %arg3: memref<16x72xf32, #tpu.memory_space<vmem>>, %arg4: memref<16x1xf32, #tpu.memory_space<vmem>>, %arg5: memref<4x72xf32, #tpu.memory_space<vmem>>, %arg6: memref<4x1xf32, #tpu.memory_space<vmem>>, %arg7: memref<9x512xf32, #tpu.memory_space<vmem>>, %arg8: memref<1x1x4x512xf32, #tpu.memory_space<vmem>>, %arg9: memref<8x512xf32, #tpu.memory_space<vmem>>, %arg10: memref<4x512xf32, #tpu.memory_space<vmem>>, %arg11: memref<72x512xf32, #tpu.memory_space<vmem>>) attributes {dimension_semantics = [#tpu.dimension_semantics<parallel>, #tpu.dimension_semantics<arbitrary>], iteration_bounds = array<i64: 1, 8>, scalar_prefetch = 0 : i64, scratch_operands = 3 : i64, tpu.core_type = #tpu.core_type<tc>, window_params = [{transform_indices = @transform_0, window_bounds = array<i64: 1, 1, 4, 512>}, {pipeline_mode = #tpu.pipeline_mode<synchronous>, transform_indices = @transform_1, window_bounds = array<i64: 16, 72>}, {pipeline_mode = #tpu.pipeline_mode<synchronous>, transform_indices = @transform_2, window_bounds = array<i64: 16, 1>}, {pipeline_mode = #tpu.pipeline_mode<synchronous>, transform_indices = @transform_3, window_bounds = array<i64: 4, 72>}, {pipeline_mode = #tpu.pipeline_mode<synchronous>, transform_indices = @transform_4, window_bounds = array<i64: 4, 1>}, {pipeline_mode = #tpu.pipeline_mode<synchronous>, transform_indices = @transform_5, window_bounds = array<i64: 9, 512>}, {transform_indices = @transform_6, window_bounds = array<i64: 1, 1, 4, 512>}]} {
    %c0_i32 = arith.constant 0 : i32
    %0 = arith.cmpi eq, %arg1, %c0_i32 : i32
    %1 = arith.extui %0 : i1 to i32
    %c0_i32_0 = arith.constant 0 : i32
    %2 = arith.cmpi ne, %1, %c0_i32_0 : i32
    scf.if %2 {
      %cst_88 = arith.constant 0.000000e+00 : f32
      %159 = vector.broadcast %cst_88 : f32 to vector<8x512xf32>
      %c0_89 = arith.constant 0 : index
      %c0_90 = arith.constant 0 : index
      %160 = vector.load %arg9[%c0_89, %c0_90] : memref<8x512xf32, #tpu.memory_space<vmem>>, vector<8x512xf32>
      tpu.vector_store %arg9[%c0_89, %c0_90], %159 {strides = array<i32>} : memref<8x512xf32, #tpu.memory_space<vmem>>, vector<8x512xf32>,
      %cst_91 = arith.constant 0.000000e+00 : f32
      %161 = vector.broadcast %cst_91 : f32 to vector<4x512xf32>
      %c0_92 = arith.constant 0 : index
      %c0_93 = arith.constant 0 : index
      %162 = vector.load %arg10[%c0_92, %c0_93] : memref<4x512xf32, #tpu.memory_space<vmem>>, vector<4x512xf32>
      tpu.vector_store %arg10[%c0_92, %c0_93], %161 {strides = array<i32>} : memref<4x512xf32, #tpu.memory_space<vmem>>, vector<4x512xf32>,
    } else {
    }
    %c0 = arith.constant 0 : index
    %c0_1 = arith.constant 0 : index
    %c0_2 = arith.constant 0 : index
    %c0_3 = arith.constant 0 : index
    %3 = vector.load %arg2[%c0, %c0_1, %c0_2, %c0_3] : memref<1x1x4x512xf32, #tpu.memory_space<vmem>>, vector<1x1x4x512xf32>
    %4 = vector.shape_cast %3 : vector<1x1x4x512xf32> to vector<4x512xf32>
    %c0_4 = arith.constant 0 : index
    %c0_5 = arith.constant 0 : index
    %5 = vector.load %arg9[%c0_4, %c0_5] : memref<8x512xf32, #tpu.memory_space<vmem>>, vector<4x512xf32>
    tpu.vector_store %arg9[%c0_4, %c0_5], %4 {strides = array<i32>} : memref<8x512xf32, #tpu.memory_space<vmem>>, vector<4x512xf32>,
    %c0_6 = arith.constant 0 : index
    %c0_7 = arith.constant 0 : index
    %6 = vector.load %arg9[%c0_6, %c0_7] : memref<8x512xf32, #tpu.memory_space<vmem>>, vector<8x512xf32>
    %7 = vector.extract_strided_slice %6 {offsets = [0, 495], sizes = [8, 17], strides = [1, 1]} : vector<8x512xf32> to vector<8x17xf32>
    %8 = vector.extract_strided_slice %6 {offsets = [0, 0], sizes = [8, 495], strides = [1, 1]} : vector<8x512xf32> to vector<8x495xf32>
    %9 = tpu.concatenate %7, %8 in 1 : vector<8x17xf32>, vector<8x495xf32> -> vector<8x512xf32>
    %c0_8 = arith.constant 0 : index
    %c0_9 = arith.constant 0 : index
    %10 = vector.load %arg7[%c0_8, %c0_9] : memref<9x512xf32, #tpu.memory_space<vmem>>, vector<1x512xf32>
    %11 = vector.broadcast %10 : vector<1x512xf32> to vector<8x512xf32>
    %12 = arith.mulf %9, %11 : vector<8x512xf32>
    %c0_10 = arith.constant 0 : index
    %c0_11 = arith.constant 0 : index
    %13 = vector.load %arg11[%c0_10, %c0_11] : memref<72x512xf32, #tpu.memory_space<vmem>>, vector<8x512xf32>
    tpu.vector_store %arg11[%c0_10, %c0_11], %12 {strides = array<i32>} : memref<72x512xf32, #tpu.memory_space<vmem>>, vector<8x512xf32>,
    %14 = vector.extract_strided_slice %6 {offsets = [0, 496], sizes = [8, 16], strides = [1, 1]} : vector<8x512xf32> to vector<8x16xf32>
    %15 = vector.extract_strided_slice %6 {offsets = [0, 0], sizes = [8, 496], strides = [1, 1]} : vector<8x512xf32> to vector<8x496xf32>
    %16 = tpu.concatenate %14, %15 in 1 : vector<8x16xf32>, vector<8x496xf32> -> vector<8x512xf32>
    %c1 = arith.constant 1 : index
    %c0_12 = arith.constant 0 : index
    %17 = vector.load %arg7[%c1, %c0_12] : memref<9x512xf32, #tpu.memory_space<vmem>>, vector<1x512xf32>
    %18 = vector.broadcast %17 : vector<1x512xf32> to vector<8x512xf32>
    %19 = arith.mulf %16, %18 : vector<8x512xf32>
    %c8 = arith.constant 8 : index
    %c0_13 = arith.constant 0 : index
    %20 = vector.load %arg11[%c8, %c0_13] : memref<72x512xf32, #tpu.memory_space<vmem>>, vector<8x512xf32>
    tpu.vector_store %arg11[%c8, %c0_13], %19 {strides = array<i32>} : memref<72x512xf32, #tpu.memory_space<vmem>>, vector<8x512xf32>,
    %21 = vector.extract_strided_slice %6 {offsets = [0, 497], sizes = [8, 15], strides = [1, 1]} : vector<8x512xf32> to vector<8x15xf32>
    %22 = vector.extract_strided_slice %6 {offsets = [0, 0], sizes = [8, 497], strides = [1, 1]} : vector<8x512xf32> to vector<8x497xf32>
    %23 = tpu.concatenate %21, %22 in 1 : vector<8x15xf32>, vector<8x497xf32> -> vector<8x512xf32>
    %c2 = arith.constant 2 : index
    %c0_14 = arith.constant 0 : index
    %24 = vector.load %arg7[%c2, %c0_14] : memref<9x512xf32, #tpu.memory_space<vmem>>, vector<1x512xf32>
    %25 = vector.broadcast %24 : vector<1x512xf32> to vector<8x512xf32>
    %26 = arith.mulf %23, %25 : vector<8x512xf32>
    %c16 = arith.constant 16 : index
    %c0_15 = arith.constant 0 : index
    %27 = vector.load %arg11[%c16, %c0_15] : memref<72x512xf32, #tpu.memory_space<vmem>>, vector<8x512xf32>
    tpu.vector_store %arg11[%c16, %c0_15], %26 {strides = array<i32>} : memref<72x512xf32, #tpu.memory_space<vmem>>, vector<8x512xf32>,
    %28 = vector.extract_strided_slice %6 {offsets = [0, 511], sizes = [8, 1], strides = [1, 1]} : vector<8x512xf32> to vector<8x1xf32>
    %29 = vector.extract_strided_slice %6 {offsets = [0, 0], sizes = [8, 511], strides = [1, 1]} : vector<8x512xf32> to vector<8x511xf32>
    %30 = tpu.concatenate %28, %29 in 1 : vector<8x1xf32>, vector<8x511xf32> -> vector<8x512xf32>
    %c3 = arith.constant 3 : index
    %c0_16 = arith.constant 0 : index
    %31 = vector.load %arg7[%c3, %c0_16] : memref<9x512xf32, #tpu.memory_space<vmem>>, vector<1x512xf32>
    %32 = vector.broadcast %31 : vector<1x512xf32> to vector<8x512xf32>
    %33 = arith.mulf %30, %32 : vector<8x512xf32>
    %c24 = arith.constant 24 : index
    %c0_17 = arith.constant 0 : index
    %34 = vector.load %arg11[%c24, %c0_17] : memref<72x512xf32, #tpu.memory_space<vmem>>, vector<8x512xf32>
    tpu.vector_store %arg11[%c24, %c0_17], %33 {strides = array<i32>} : memref<72x512xf32, #tpu.memory_space<vmem>>, vector<8x512xf32>,
    %c32 = arith.constant 32 : index
    %c0_18 = arith.constant 0 : index
    %35 = vector.load %arg11[%c32, %c0_18] : memref<72x512xf32, #tpu.memory_space<vmem>>, vector<8x512xf32>
    tpu.vector_store %arg11[%c32, %c0_18], %6 {strides = array<i32>} : memref<72x512xf32, #tpu.memory_space<vmem>>, vector<8x512xf32>,
    %36 = vector.extract_strided_slice %6 {offsets = [0, 1], sizes = [8, 511], strides = [1, 1]} : vector<8x512xf32> to vector<8x511xf32>
    %37 = vector.extract_strided_slice %6 {offsets = [0, 0], sizes = [8, 1], strides = [1, 1]} : vector<8x512xf32> to vector<8x1xf32>
    %38 = tpu.concatenate %36, %37 in 1 : vector<8x511xf32>, vector<8x1xf32> -> vector<8x512xf32>
    %c5 = arith.constant 5 : index
    %c0_19 = arith.constant 0 : index
    %39 = vector.load %arg7[%c5, %c0_19] : memref<9x512xf32, #tpu.memory_space<vmem>>, vector<1x512xf32>
    %40 = vector.broadcast %39 : vector<1x512xf32> to vector<8x512xf32>
    %41 = arith.mulf %38, %40 : vector<8x512xf32>
    %c40 = arith.constant 40 : index
    %c0_20 = arith.constant 0 : index
    %42 = vector.load %arg11[%c40, %c0_20] : memref<72x512xf32, #tpu.memory_space<vmem>>, vector<8x512xf32>
    tpu.vector_store %arg11[%c40, %c0_20], %41 {strides = array<i32>} : memref<72x512xf32, #tpu.memory_space<vmem>>, vector<8x512xf32>,
    %43 = vector.extract_strided_slice %6 {offsets = [0, 15], sizes = [8, 497], strides = [1, 1]} : vector<8x512xf32> to vector<8x497xf32>
    %44 = vector.extract_strided_slice %6 {offsets = [0, 0], sizes = [8, 15], strides = [1, 1]} : vector<8x512xf32> to vector<8x15xf32>
    %45 = tpu.concatenate %43, %44 in 1 : vector<8x497xf32>, vector<8x15xf32> -> vector<8x512xf32>
    %c6 = arith.constant 6 : index
    %c0_21 = arith.constant 0 : index
    %46 = vector.load %arg7[%c6, %c0_21] : memref<9x512xf32, #tpu.memory_space<vmem>>, vector<1x512xf32>
    %47 = vector.broadcast %46 : vector<1x512xf32> to vector<8x512xf32>
    %48 = arith.mulf %45, %47 : vector<8x512xf32>
    %c48 = arith.constant 48 : index
    %c0_22 = arith.constant 0 : index
    %49 = vector.load %arg11[%c48, %c0_22] : memref<72x512xf32, #tpu.memory_space<vmem>>, vector<8x512xf32>
    tpu.vector_store %arg11[%c48, %c0_22], %48 {strides = array<i32>} : memref<72x512xf32, #tpu.memory_space<vmem>>, vector<8x512xf32>,
    %50 = vector.extract_strided_slice %6 {offsets = [0, 16], sizes = [8, 496], strides = [1, 1]} : vector<8x512xf32> to vector<8x496xf32>
    %51 = vector.extract_strided_slice %6 {offsets = [0, 0], sizes = [8, 16], strides = [1, 1]} : vector<8x512xf32> to vector<8x16xf32>
    %52 = tpu.concatenate %50, %51 in 1 : vector<8x496xf32>, vector<8x16xf32> -> vector<8x512xf32>
    %c7 = arith.constant 7 : index
    %c0_23 = arith.constant 0 : index
    %53 = vector.load %arg7[%c7, %c0_23] : memref<9x512xf32, #tpu.memory_space<vmem>>, vector<1x512xf32>
    %54 = vector.broadcast %53 : vector<1x512xf32> to vector<8x512xf32>
    %55 = arith.mulf %52, %54 : vector<8x512xf32>
    %c56 = arith.constant 56 : index
    %c0_24 = arith.constant 0 : index
    %56 = vector.load %arg11[%c56, %c0_24] : memref<72x512xf32, #tpu.memory_space<vmem>>, vector<8x512xf32>
    tpu.vector_store %arg11[%c56, %c0_24], %55 {strides = array<i32>} : memref<72x512xf32, #tpu.memory_space<vmem>>, vector<8x512xf32>,
    %57 = vector.extract_strided_slice %6 {offsets = [0, 17], sizes = [8, 495], strides = [1, 1]} : vector<8x512xf32> to vector<8x495xf32>
    %58 = vector.extract_strided_slice %6 {offsets = [0, 0], sizes = [8, 17], strides = [1, 1]} : vector<8x512xf32> to vector<8x17xf32>
    %59 = tpu.concatenate %57, %58 in 1 : vector<8x495xf32>, vector<8x17xf32> -> vector<8x512xf32>
    %c8_25 = arith.constant 8 : index
    %c0_26 = arith.constant 0 : index
    %60 = vector.load %arg7[%c8_25, %c0_26] : memref<9x512xf32, #tpu.memory_space<vmem>>, vector<1x512xf32>
    %61 = vector.broadcast %60 : vector<1x512xf32> to vector<8x512xf32>
    %62 = arith.mulf %59, %61 : vector<8x512xf32>
    %c64 = arith.constant 64 : index
    %c0_27 = arith.constant 0 : index
    %63 = vector.load %arg11[%c64, %c0_27] : memref<72x512xf32, #tpu.memory_space<vmem>>, vector<8x512xf32>
    tpu.vector_store %arg11[%c64, %c0_27], %62 {strides = array<i32>} : memref<72x512xf32, #tpu.memory_space<vmem>>, vector<8x512xf32>,
    %c0_28 = arith.constant 0 : index
    %c0_29 = arith.constant 0 : index
    %64 = vector.load %arg3[%c0_28, %c0_29] : memref<16x72xf32, #tpu.memory_space<vmem>>, vector<16x72xf32>
    %c0_30 = arith.constant 0 : index
    %c0_31 = arith.constant 0 : index
    %65 = vector.load %arg11[%c0_30, %c0_31] : memref<72x512xf32, #tpu.memory_space<vmem>>, vector<72x512xf32>
    %cst = arith.constant dense<0.000000e+00> : vector<16x512xf32>
    %66 = tpu.matmul %64, %65, %cst {dimension_numbers = #tpu.dot_dimension_numbers<[1], [0], [0], [1], [0, 0, 1, 1], [], []>} : vector<16x72xf32>, vector<72x512xf32>, vector<16x512xf32> -> vector<16x512xf32>
    %c0_32 = arith.constant 0 : index
    %c0_33 = arith.constant 0 : index
    %67 = vector.load %arg4[%c0_32, %c0_33] : memref<16x1xf32, #tpu.memory_space<vmem>>, vector<16x1xf32>
    %68 = vector.broadcast %67 : vector<16x1xf32> to vector<16x512xf32>
    %69 = arith.addf %66, %68 : vector<16x512xf32>
    %70 = vector.extract_strided_slice %69 {offsets = [0, 0], sizes = [12, 512], strides = [1, 1]} : vector<16x512xf32> to vector<12x512xf32>
    %71 = arith.negf %70 : vector<12x512xf32>
    %72 = math.exp %71 : vector<12x512xf32>
    %cst_34 = arith.constant 1.000000e+00 : f32
    %73 = vector.broadcast %cst_34 : f32 to vector<12x512xf32>
    %74 = arith.addf %73, %72 : vector<12x512xf32>
    %75 = arith.divf %73, %74 : vector<12x512xf32>
    %76 = vector.extract_strided_slice %75 {offsets = [0, 0], sizes = [4, 512], strides = [1, 1]} : vector<12x512xf32> to vector<4x512xf32>
    %77 = vector.extract_strided_slice %75 {offsets = [4, 0], sizes = [4, 512], strides = [1, 1]} : vector<12x512xf32> to vector<4x512xf32>
    %78 = vector.extract_strided_slice %75 {offsets = [8, 0], sizes = [4, 512], strides = [1, 1]} : vector<12x512xf32> to vector<4x512xf32>
    %79 = vector.extract_strided_slice %69 {offsets = [12, 0], sizes = [4, 512], strides = [1, 1]} : vector<16x512xf32> to vector<4x512xf32>
    %80 = math.tanh %79 : vector<4x512xf32>
    %c0_35 = arith.constant 0 : index
    %c0_36 = arith.constant 0 : index
    %81 = vector.load %arg10[%c0_35, %c0_36] : memref<4x512xf32, #tpu.memory_space<vmem>>, vector<4x512xf32>
    %82 = arith.mulf %77, %81 : vector<4x512xf32>
    %83 = arith.mulf %76, %80 : vector<4x512xf32>
    %84 = arith.addf %82, %83 : vector<4x512xf32>
    %85 = math.tanh %84 : vector<4x512xf32>
    %86 = arith.mulf %78, %85 : vector<4x512xf32>
    %c0_37 = arith.constant 0 : index
    %c0_38 = arith.constant 0 : index
    %87 = vector.load %arg10[%c0_37, %c0_38] : memref<4x512xf32, #tpu.memory_space<vmem>>, vector<4x512xf32>
    tpu.vector_store %arg10[%c0_37, %c0_38], %84 {strides = array<i32>} : memref<4x512xf32, #tpu.memory_space<vmem>>, vector<4x512xf32>,
    %c4 = arith.constant 4 : index
    %c0_39 = arith.constant 0 : index
    %88 = vector.load %arg9[%c4, %c0_39] : memref<8x512xf32, #tpu.memory_space<vmem>>, vector<4x512xf32>
    tpu.vector_store %arg9[%c4, %c0_39], %86 {strides = array<i32>} : memref<8x512xf32, #tpu.memory_space<vmem>>, vector<4x512xf32>,
    %c0_40 = arith.constant 0 : index
    %c0_41 = arith.constant 0 : index
    %89 = vector.load %arg9[%c0_40, %c0_41] : memref<8x512xf32, #tpu.memory_space<vmem>>, vector<8x512xf32>
    %90 = vector.extract_strided_slice %89 {offsets = [0, 495], sizes = [8, 17], strides = [1, 1]} : vector<8x512xf32> to vector<8x17xf32>
    %91 = vector.extract_strided_slice %89 {offsets = [0, 0], sizes = [8, 495], strides = [1, 1]} : vector<8x512xf32> to vector<8x495xf32>
    %92 = tpu.concatenate %90, %91 in 1 : vector<8x17xf32>, vector<8x495xf32> -> vector<8x512xf32>
    %c0_42 = arith.constant 0 : index
    %c0_43 = arith.constant 0 : index
    %93 = vector.load %arg7[%c0_42, %c0_43] : memref<9x512xf32, #tpu.memory_space<vmem>>, vector<1x512xf32>
    %94 = vector.broadcast %93 : vector<1x512xf32> to vector<8x512xf32>
    %95 = arith.mulf %92, %94 : vector<8x512xf32>
    %c0_44 = arith.constant 0 : index
    %c0_45 = arith.constant 0 : index
    %96 = vector.load %arg11[%c0_44, %c0_45] : memref<72x512xf32, #tpu.memory_space<vmem>>, vector<8x512xf32>
    tpu.vector_store %arg11[%c0_44, %c0_45], %95 {strides = array<i32>} : memref<72x512xf32, #tpu.memory_space<vmem>>, vector<8x512xf32>,
    %97 = vector.extract_strided_slice %89 {offsets = [0, 496], sizes = [8, 16], strides = [1, 1]} : vector<8x512xf32> to vector<8x16xf32>
    %98 = vector.extract_strided_slice %89 {offsets = [0, 0], sizes = [8, 496], strides = [1, 1]} : vector<8x512xf32> to vector<8x496xf32>
    %99 = tpu.concatenate %97, %98 in 1 : vector<8x16xf32>, vector<8x496xf32> -> vector<8x512xf32>
    %c1_46 = arith.constant 1 : index
    %c0_47 = arith.constant 0 : index
    %100 = vector.load %arg7[%c1_46, %c0_47] : memref<9x512xf32, #tpu.memory_space<vmem>>, vector<1x512xf32>
    %101 = vector.broadcast %100 : vector<1x512xf32> to vector<8x512xf32>
    %102 = arith.mulf %99, %101 : vector<8x512xf32>
    %c8_48 = arith.constant 8 : index
    %c0_49 = arith.constant 0 : index
    %103 = vector.load %arg11[%c8_48, %c0_49] : memref<72x512xf32, #tpu.memory_space<vmem>>, vector<8x512xf32>
    tpu.vector_store %arg11[%c8_48, %c0_49], %102 {strides = array<i32>} : memref<72x512xf32, #tpu.memory_space<vmem>>, vector<8x512xf32>,
    %104 = vector.extract_strided_slice %89 {offsets = [0, 497], sizes = [8, 15], strides = [1, 1]} : vector<8x512xf32> to vector<8x15xf32>
    %105 = vector.extract_strided_slice %89 {offsets = [0, 0], sizes = [8, 497], strides = [1, 1]} : vector<8x512xf32> to vector<8x497xf32>
    %106 = tpu.concatenate %104, %105 in 1 : vector<8x15xf32>, vector<8x497xf32> -> vector<8x512xf32>
    %c2_50 = arith.constant 2 : index
    %c0_51 = arith.constant 0 : index
    %107 = vector.load %arg7[%c2_50, %c0_51] : memref<9x512xf32, #tpu.memory_space<vmem>>, vector<1x512xf32>
    %108 = vector.broadcast %107 : vector<1x512xf32> to vector<8x512xf32>
    %109 = arith.mulf %106, %108 : vector<8x512xf32>
    %c16_52 = arith.constant 16 : index
    %c0_53 = arith.constant 0 : index
    %110 = vector.load %arg11[%c16_52, %c0_53] : memref<72x512xf32, #tpu.memory_space<vmem>>, vector<8x512xf32>
    tpu.vector_store %arg11[%c16_52, %c0_53], %109 {strides = array<i32>} : memref<72x512xf32, #tpu.memory_space<vmem>>, vector<8x512xf32>,
    %111 = vector.extract_strided_slice %89 {offsets = [0, 511], sizes = [8, 1], strides = [1, 1]} : vector<8x512xf32> to vector<8x1xf32>
    %112 = vector.extract_strided_slice %89 {offsets = [0, 0], sizes = [8, 511], strides = [1, 1]} : vector<8x512xf32> to vector<8x511xf32>
    %113 = tpu.concatenate %111, %112 in 1 : vector<8x1xf32>, vector<8x511xf32> -> vector<8x512xf32>
    %c3_54 = arith.constant 3 : index
    %c0_55 = arith.constant 0 : index
    %114 = vector.load %arg7[%c3_54, %c0_55] : memref<9x512xf32, #tpu.memory_space<vmem>>, vector<1x512xf32>
    %115 = vector.broadcast %114 : vector<1x512xf32> to vector<8x512xf32>
    %116 = arith.mulf %113, %115 : vector<8x512xf32>
    %c24_56 = arith.constant 24 : index
    %c0_57 = arith.constant 0 : index
    %117 = vector.load %arg11[%c24_56, %c0_57] : memref<72x512xf32, #tpu.memory_space<vmem>>, vector<8x512xf32>
    tpu.vector_store %arg11[%c24_56, %c0_57], %116 {strides = array<i32>} : memref<72x512xf32, #tpu.memory_space<vmem>>, vector<8x512xf32>,
    %c32_58 = arith.constant 32 : index
    %c0_59 = arith.constant 0 : index
    %118 = vector.load %arg11[%c32_58, %c0_59] : memref<72x512xf32, #tpu.memory_space<vmem>>, vector<8x512xf32>
    tpu.vector_store %arg11[%c32_58, %c0_59], %89 {strides = array<i32>} : memref<72x512xf32, #tpu.memory_space<vmem>>, vector<8x512xf32>,
    %119 = vector.extract_strided_slice %89 {offsets = [0, 1], sizes = [8, 511], strides = [1, 1]} : vector<8x512xf32> to vector<8x511xf32>
    %120 = vector.extract_strided_slice %89 {offsets = [0, 0], sizes = [8, 1], strides = [1, 1]} : vector<8x512xf32> to vector<8x1xf32>
    %121 = tpu.concatenate %119, %120 in 1 : vector<8x511xf32>, vector<8x1xf32> -> vector<8x512xf32>
    %c5_60 = arith.constant 5 : index
    %c0_61 = arith.constant 0 : index
    %122 = vector.load %arg7[%c5_60, %c0_61] : memref<9x512xf32, #tpu.memory_space<vmem>>, vector<1x512xf32>
    %123 = vector.broadcast %122 : vector<1x512xf32> to vector<8x512xf32>
    %124 = arith.mulf %121, %123 : vector<8x512xf32>
    %c40_62 = arith.constant 40 : index
    %c0_63 = arith.constant 0 : index
    %125 = vector.load %arg11[%c40_62, %c0_63] : memref<72x512xf32, #tpu.memory_space<vmem>>, vector<8x512xf32>
    tpu.vector_store %arg11[%c40_62, %c0_63], %124 {strides = array<i32>} : memref<72x512xf32, #tpu.memory_space<vmem>>, vector<8x512xf32>,
    %126 = vector.extract_strided_slice %89 {offsets = [0, 15], sizes = [8, 497], strides = [1, 1]} : vector<8x512xf32> to vector<8x497xf32>
    %127 = vector.extract_strided_slice %89 {offsets = [0, 0], sizes = [8, 15], strides = [1, 1]} : vector<8x512xf32> to vector<8x15xf32>
    %128 = tpu.concatenate %126, %127 in 1 : vector<8x497xf32>, vector<8x15xf32> -> vector<8x512xf32>
    %c6_64 = arith.constant 6 : index
    %c0_65 = arith.constant 0 : index
    %129 = vector.load %arg7[%c6_64, %c0_65] : memref<9x512xf32, #tpu.memory_space<vmem>>, vector<1x512xf32>
    %130 = vector.broadcast %129 : vector<1x512xf32> to vector<8x512xf32>
    %131 = arith.mulf %128, %130 : vector<8x512xf32>
    %c48_66 = arith.constant 48 : index
    %c0_67 = arith.constant 0 : index
    %132 = vector.load %arg11[%c48_66, %c0_67] : memref<72x512xf32, #tpu.memory_space<vmem>>, vector<8x512xf32>
    tpu.vector_store %arg11[%c48_66, %c0_67], %131 {strides = array<i32>} : memref<72x512xf32, #tpu.memory_space<vmem>>, vector<8x512xf32>,
    %133 = vector.extract_strided_slice %89 {offsets = [0, 16], sizes = [8, 496], strides = [1, 1]} : vector<8x512xf32> to vector<8x496xf32>
    %134 = vector.extract_strided_slice %89 {offsets = [0, 0], sizes = [8, 16], strides = [1, 1]} : vector<8x512xf32> to vector<8x16xf32>
    %135 = tpu.concatenate %133, %134 in 1 : vector<8x496xf32>, vector<8x16xf32> -> vector<8x512xf32>
    %c7_68 = arith.constant 7 : index
    %c0_69 = arith.constant 0 : index
    %136 = vector.load %arg7[%c7_68, %c0_69] : memref<9x512xf32, #tpu.memory_space<vmem>>, vector<1x512xf32>
    %137 = vector.broadcast %136 : vector<1x512xf32> to vector<8x512xf32>
    %138 = arith.mulf %135, %137 : vector<8x512xf32>
    %c56_70 = arith.constant 56 : index
    %c0_71 = arith.constant 0 : index
    %139 = vector.load %arg11[%c56_70, %c0_71] : memref<72x512xf32, #tpu.memory_space<vmem>>, vector<8x512xf32>
    tpu.vector_store %arg11[%c56_70, %c0_71], %138 {strides = array<i32>} : memref<72x512xf32, #tpu.memory_space<vmem>>, vector<8x512xf32>,
    %140 = vector.extract_strided_slice %89 {offsets = [0, 17], sizes = [8, 495], strides = [1, 1]} : vector<8x512xf32> to vector<8x495xf32>
    %141 = vector.extract_strided_slice %89 {offsets = [0, 0], sizes = [8, 17], strides = [1, 1]} : vector<8x512xf32> to vector<8x17xf32>
    %142 = tpu.concatenate %140, %141 in 1 : vector<8x495xf32>, vector<8x17xf32> -> vector<8x512xf32>
    %c8_72 = arith.constant 8 : index
    %c0_73 = arith.constant 0 : index
    %143 = vector.load %arg7[%c8_72, %c0_73] : memref<9x512xf32, #tpu.memory_space<vmem>>, vector<1x512xf32>
    %144 = vector.broadcast %143 : vector<1x512xf32> to vector<8x512xf32>
    %145 = arith.mulf %142, %144 : vector<8x512xf32>
    %c64_74 = arith.constant 64 : index
    %c0_75 = arith.constant 0 : index
    %146 = vector.load %arg11[%c64_74, %c0_75] : memref<72x512xf32, #tpu.memory_space<vmem>>, vector<8x512xf32>
    tpu.vector_store %arg11[%c64_74, %c0_75], %145 {strides = array<i32>} : memref<72x512xf32, #tpu.memory_space<vmem>>, vector<8x512xf32>,
    %c0_76 = arith.constant 0 : index
    %c0_77 = arith.constant 0 : index
    %147 = vector.load %arg5[%c0_76, %c0_77] : memref<4x72xf32, #tpu.memory_space<vmem>>, vector<4x72xf32>
    %c0_78 = arith.constant 0 : index
    %c0_79 = arith.constant 0 : index
    %148 = vector.load %arg11[%c0_78, %c0_79] : memref<72x512xf32, #tpu.memory_space<vmem>>, vector<72x512xf32>
    %cst_80 = arith.constant dense<0.000000e+00> : vector<4x512xf32>
    %149 = tpu.matmul %147, %148, %cst_80 {dimension_numbers = #tpu.dot_dimension_numbers<[1], [0], [0], [1], [0, 0, 1, 1], [], []>} : vector<4x72xf32>, vector<72x512xf32>, vector<4x512xf32> -> vector<4x512xf32>
    %c0_81 = arith.constant 0 : index
    %c0_82 = arith.constant 0 : index
    %150 = vector.load %arg6[%c0_81, %c0_82] : memref<4x1xf32, #tpu.memory_space<vmem>>, vector<4x1xf32>
    %151 = vector.broadcast %150 : vector<4x1xf32> to vector<4x512xf32>
    %152 = arith.addf %149, %151 : vector<4x512xf32>
    %cst_83 = arith.constant 0.000000e+00 : f32
    %153 = vector.broadcast %cst_83 : f32 to vector<4x512xf32>
    %154 = arith.maximumf %152, %153 : vector<4x512xf32>
    %155 = math.tanh %154 : vector<4x512xf32>
    %c0_84 = arith.constant 0 : index
    %c0_85 = arith.constant 0 : index
    %c0_86 = arith.constant 0 : index
    %c0_87 = arith.constant 0 : index
    %156 = vector.load %arg8[%c0_84, %c0_85, %c0_86, %c0_87] : memref<1x1x4x512xf32, #tpu.memory_space<vmem>>, vector<1x1x4x512xf32>
    %157 = vector.shape_cast %156 : vector<1x1x4x512xf32> to vector<4x512xf32>
    %158 = vector.shape_cast %155 : vector<4x512xf32> to vector<1x1x4x512xf32>
    tpu.vector_store %arg8[%c0_84, %c0_85, %c0_86, %c0_87], %158 {strides = array<i32>} : memref<1x1x4x512xf32, #tpu.memory_space<vmem>>, vector<1x1x4x512xf32>,
    return
  }
  func.func @transform_0(%arg0: i32, %arg1: i32) -> (i32, i32, i32, i32) {
    %c7_i32 = arith.constant 7 : i32
    %0 = arith.subi %c7_i32, %arg1 : i32
    %c0_i32 = arith.constant 0 : i32
    %c0_i32_0 = arith.constant 0 : i32
    %c0_i32_1 = arith.constant 0 : i32
    return %arg0, %0, %c0_i32, %c0_i32_0 : i32, i32, i32, i32
  }
  func.func @transform_1(%arg0: i32, %arg1: i32) -> (i32, i32) {
    %c0_i32 = arith.constant 0 : i32
    %c0_i32_0 = arith.constant 0 : i32
    %c0_i32_1 = arith.constant 0 : i32
    return %c0_i32, %c0_i32_0 : i32, i32
  }
  func.func @transform_2(%arg0: i32, %arg1: i32) -> (i32, i32) {
    %c0_i32 = arith.constant 0 : i32
    %c0_i32_0 = arith.constant 0 : i32
    %c0_i32_1 = arith.constant 0 : i32
    return %c0_i32, %c0_i32_0 : i32, i32
  }
  func.func @transform_3(%arg0: i32, %arg1: i32) -> (i32, i32) {
    %c0_i32 = arith.constant 0 : i32
    %c0_i32_0 = arith.constant 0 : i32
    %c0_i32_1 = arith.constant 0 : i32
    return %c0_i32, %c0_i32_0 : i32, i32
  }
  func.func @transform_4(%arg0: i32, %arg1: i32) -> (i32, i32) {
    %c0_i32 = arith.constant 0 : i32
    %c0_i32_0 = arith.constant 0 : i32
    %c0_i32_1 = arith.constant 0 : i32
    return %c0_i32, %c0_i32_0 : i32, i32
  }
  func.func @transform_5(%arg0: i32, %arg1: i32) -> (i32, i32) {
    %c0_i32 = arith.constant 0 : i32
    %c0_i32_0 = arith.constant 0 : i32
    %c0_i32_1 = arith.constant 0 : i32
    return %c0_i32, %c0_i32_0 : i32, i32
  }
  func.func @transform_6(%arg0: i32, %arg1: i32) -> (i32, i32, i32, i32) {
    %c7_i32 = arith.constant 7 : i32
    %0 = arith.subi %c7_i32, %arg1 : i32
    %c0_i32 = arith.constant 0 : i32
    %c0_i32_0 = arith.constant 0 : i32
    %c0_i32_1 = arith.constant 0 : i32
    return %arg0, %0, %c0_i32, %c0_i32_0 : i32, i32, i32, i32
  }
}

</mosaic_0001>

<llo_original>
// kernel: temporal_forward.2
$region0: #{temporal_forward.2}
  #allocation0 [shape = 'u32[]', space=smem, size = 0x4, offset = 0x4, fixed_abs, tag = 'smem constant byte address 0x4 - core index']
  #allocation1 [shape = 'u32[144,128]{1,0:T(1,128)}', space=vmem, size = 0x12000, scoped, tag = 'internal scratch']
  #allocation2 [shape = 'f32[8,512]{1,0:T(8,128)}', space=vmem, size = 0x4000, scoped, tag = 'scratch operand']
  #allocation3 [shape = 'f32[4,512]{1,0:T(4,128)}', space=vmem, size = 0x2000, scoped, tag = 'scratch operand']
  #allocation4 [shape = 'f32[72,512]{1,0:T(8,128)}', space=vmem, size = 0x24000, scoped, tag = 'scratch operand']
  %s0 = inlined_call_operand.vmem [shape: f32[1,8,4,512], index: 0, kind: input, shape index: {}]
  %s1 = inlined_call_operand.vmem [shape: f32[16,72], index: 1, kind: input, shape index: {}]
  %s2 = inlined_call_operand.vmem [shape: f32[16,1], index: 2, kind: input, shape index: {}]
  %s3 = inlined_call_operand.vmem [shape: f32[9,512], index: 3, kind: input, shape index: {}]
  %s4 = inlined_call_operand.vmem [shape: f32[1,8,4,512], index: 4, kind: output, shape index: {}]
  %s5 = sld [smem:[#allocation0]]
  $region53: #{temporal_forward.2} parent=0
    _
  %s7 = ssub.s32 1, %s5
  %s8 = scalar_select 0, %s7, %s5
  loop: start=0, step=1, limit=10
  $region2: #{temporal_forward.2} parent=0 // loop_pre_header
    _
  $region3: #{temporal_forward.2} parent=0 // loop_header
    %s10 = sphi 0, %s14
    %p11 = scmp.ge.s32.totalorder %s10, 10
    %s17 = sphi 0, %s29
    %s18 = sphi 0, %s25
    %s19 = sphi 0, %s17
    %s20 = sphi 0, %s18
    %s21 = sphi 0, %s19
    %s22 = sphi 0, %s20
    %s34 = sphi 0, %s36
    %s37 = sphi 0, %s34
    %s38 = sphi 0, %s37
    %s54 = sphi 0, %s38
    %s58 = sphi 0, %s58
    %s60 = sphi 0, %s58
    %s61 = sphi 0, %s60
    %s75 = sphi 0, %s61
    %s79 = sphi 0, %s79
    %s81 = sphi 0, %s79
    %s82 = sphi 0, %s81
    %s96 = sphi 0, %s82
    %s100 = sphi 0, %s100
    %s102 = sphi 0, %s100
    %s103 = sphi 0, %s102
    %s117 = sphi 0, %s103
    %s125 = sphi 0, %s127
    %s128 = sphi 0, %s125
    %s129 = sphi 0, %s128
    %s145 = sphi 0, %s129
  $region4: #{temporal_forward.2} parent=0 // loop_header_branch
    %13 = sbr.rel (%p11) target = $region8
  $region5: #{temporal_forward.2} parent=0 // loop_body
    %s15 = ssub.s32 %s10, 1
    %s16 = ssub.s32 %s10, 2
    %s23 = sadd.s32 1, %s18
    %p24 = scmp.ge.s32.totalorder %s23, 8
    %s25 = scalar_select %p24, 0, %s23
    %s26 = sadd.s32 1, %s17
    %s27 = scalar_select %p24, %s26, %s17
    %p28 = scmp.ge.s32.totalorder %s27, 1
    %s29 = scalar_select %p28, 0, %s27
    %s30 = ssub.s32 %s17, %s29
    %s31 = ssub.s32 %s18, %s25
    %s32 = sor.u32 %s30, %s31
    %p33 = scmp.eq.s32.totalorder %s32, 0
    %s35 = sadd.s32 %s34, 1
    %s36 = scalar_select %p33, %s34, %s35
    %p39 = pneg %p33
    %p40 = scmp.eq.s32.totalorder %s10, 7
    %p41 = por %p39, %p40
    %p42 = scmp.ne.s32.totalorder %s34, %s37
    %p43 = scmp.eq.s32.totalorder %s10, 0
    %p44 = por %p42, %p43
    %p45 = scmp.ne.s32.totalorder %s34, %s37
    %p46 = scmp.eq.s32.totalorder %s15, 7
    %p47 = por %p45, %p46
    %p48 = scmp.ne.s32.totalorder %s37, %s38
    %p49 = scmp.eq.s32.totalorder %s15, 0
    %p50 = por %p48, %p49
    %p51 = scmp.ne.s32.totalorder %s37, %s38
    %p52 = scmp.eq.s32.totalorder %s16, 7
    %p53 = por %p51, %p52
    %p55 = scmp.ne.s32.totalorder %s38, %s54
    %p56 = scmp.eq.s32.totalorder %s16, 0
    %p57 = por %p55, %p56
    %s59 = sadd.s32 %s58, 1
    %p62 = scmp.eq.s32.totalorder %s10, 7
    %p63 = scmp.ne.s32.totalorder %s58, %s60
    %p64 = scmp.eq.s32.totalorder %s10, 0
    %p65 = por %p63, %p64
    %p66 = scmp.ne.s32.totalorder %s58, %s60
    %p67 = scmp.eq.s32.totalorder %s15, 7
    %p68 = por %p66, %p67
    %p69 = scmp.ne.s32.totalorder %s60, %s61
    %p70 = scmp.eq.s32.totalorder %s15, 0
    %p71 = por %p69, %p70
    %p72 = scmp.ne.s32.totalorder %s60, %s61
    %p73 = scmp.eq.s32.totalorder %s16, 7
    %p74 = por %p72, %p73
    %p76 = scmp.ne.s32.totalorder %s61, %s75
    %p77 = scmp.eq.s32.totalorder %s16, 0
    %p78 = por %p76, %p77
    %s80 = sadd.s32 %s79, 1
    %p83 = scmp.eq.s32.totalorder %s10, 7
    %p84 = scmp.ne.s32.totalorder %s79, %s81
    %p85 = scmp.eq.s32.totalorder %s10, 0
    %p86 = por %p84, %p85
    %p87 = scmp.ne.s32.totalorder %s79, %s81
    %p88 = scmp.eq.s32.totalorder %s15, 7
    %p89 = por %p87, %p88
    %p90 = scmp.ne.s32.totalorder %s81, %s82
    %p91 = scmp.eq.s32.totalorder %s15, 0
    %p92 = por %p90, %p91
    %p93 = scmp.ne.s32.totalorder %s81, %s82
    %p94 = scmp.eq.s32.totalorder %s16, 7
    %p95 = por %p93, %p94
    %p97 = scmp.ne.s32.totalorder %s82, %s96
    %p98 = scmp.eq.s32.totalorder %s16, 0
    %p99 = por %p97, %p98
    %s101 = sadd.s32 %s100, 1
    %p104 = scmp.eq.s32.totalorder %s10, 7
    %p105 = scmp.ne.s32.totalorder %s100, %s102
    %p106 = scmp.eq.s32.totalorder %s10, 0
    %p107 = por %p105, %p106
    %p108 = scmp.ne.s32.totalorder %s100, %s102
    %p109 = scmp.eq.s32.totalorder %s15, 7
    %p110 = por %p108, %p109
    %p111 = scmp.ne.s32.totalorder %s102, %s103
    %p112 = scmp.eq.s32.totalorder %s15, 0
    %p113 = por %p111, %p112
    %p114 = scmp.ne.s32.totalorder %s102, %s103
    %p115 = scmp.eq.s32.totalorder %s16, 7
    %p116 = por %p114, %p115
    %p118 = scmp.ne.s32.totalorder %s103, %s117
    %p119 = scmp.eq.s32.totalorder %s16, 0
    %p120 = por %p118, %p119
    %s121 = ssub.s32 %s17, %s29
    %s122 = ssub.s32 %s18, %s25
    %s123 = sor.u32 %s121, %s122
    %p124 = scmp.eq.s32.totalorder %s123, 0
    %s126 = sadd.s32 %s125, 1
    %s127 = scalar_select %p124, %s125, %s126
    %p130 = pneg %p124
    %p131 = scmp.eq.s32.totalorder %s10, 7
    %p132 = por %p130, %p131
    %p133 = scmp.ne.s32.totalorder %s125, %s128
    %p134 = scmp.eq.s32.totalorder %s10, 0
    %p135 = por %p133, %p134
    %p136 = scmp.ne.s32.totalorder %s125, %s128
    %p137 = scmp.eq.s32.totalorder %s15, 7
    %p138 = por %p136, %p137
    %p139 = scmp.ne.s32.totalorder %s128, %s129
    %p140 = scmp.eq.s32.totalorder %s15, 0
    %p141 = por %p139, %p140
    %p142 = scmp.ne.s32.totalorder %s128, %s129
    %p143 = scmp.eq.s32.totalorder %s16, 7
    %p144 = por %p142, %p143
    %p146 = scmp.ne.s32.totalorder %s129, %s145
    %p147 = scmp.eq.s32.totalorder %s16, 0
    %p148 = por %p146, %p147
    %p149 = scmp.le.s32.totalorder 1, %s10
    %p150 = scmp.lt.s32.totalorder %s10, 9
    %p151 = pnand %p149, %p150
    %p152 = pneg %p151
    // Predicated region
    $region9: #{temporal_forward.2} parent=5 // pred_check
      _
    $region10: #{temporal_forward.2} parent=5 // pred_check_branch
      %154 = sbr.rel (%p151) target = $region12
    $region11: #{temporal_forward.2} parent=5 // pred_region
      %s155 = ssub.s32 %s10, 1
      // Predicated region
      $region13: #{temporal_forward.2} parent=11 // pred_check
        %p156 = pneg %p71
      $region14: #{temporal_forward.2} parent=11 // pred_check_branch
        %158 = sbr.rel (%p156) target = $region16
      $region15: #{temporal_forward.2} parent=11 // pred_region
        _
      $region16: #{temporal_forward.2} parent=11 // pred_fallthru
        _
      // Predicated region
      $region17: #{temporal_forward.2} parent=11 // pred_check
        %p159 = pneg %p92
      $region18: #{temporal_forward.2} parent=11 // pred_check_branch
        %161 = sbr.rel (%p159) target = $region20
      $region19: #{temporal_forward.2} parent=11 // pred_region
        _
      $region20: #{temporal_forward.2} parent=11 // pred_fallthru
        _
      // Predicated region
      $region21: #{temporal_forward.2} parent=11 // pred_check
        %p162 = pneg %p113
      $region22: #{temporal_forward.2} parent=11 // pred_check_branch
        %164 = sbr.rel (%p162) target = $region24
      $region23: #{temporal_forward.2} parent=11 // pred_region
        _
      $region24: #{temporal_forward.2} parent=11 // pred_fallthru
        _
    $region12: #{temporal_forward.2} parent=5 // pred_fallthru
      _
    %p165 = scmp.lt.s32.totalorder %s10, 8
    // Predicated region
    $region25: #{temporal_forward.2} parent=5 // pred_check
      %p166 = pneg %p165
    $region26: #{temporal_forward.2} parent=5 // pred_check_branch
      %168 = sbr.rel (%p166) target = $region28
    $region27: #{temporal_forward.2} parent=5 // pred_region
      // Predicated region
      $region29: #{temporal_forward.2} parent=27 // pred_check
        %p169 = pneg %p44
      $region30: #{temporal_forward.2} parent=27 // pred_check_branch
        %171 = sbr.rel (%p169) target = $region32
      $region31: #{temporal_forward.2} parent=27 // pred_region
        %p172 = scmp.lt.s32.totalorder %s17, 0
        %s173 = scalar_select %p172, %s17, 0
        %p174 = scmp.lt.s32.totalorder %s18, 7
        %s175 = scalar_select %p174, %s18, 7
        %s176 = smul.addr %s175, 4
        %s177 = smul.addr %s173, 32
        %s178 = sadd.s32 %s176, %s177
        %s179 = smul.addr %s178, 4
        %s180 = scalar_lea.vmem %s0, %s179
      $region32: #{temporal_forward.2} parent=27 // pred_fallthru
        _
    $region28: #{temporal_forward.2} parent=5 // pred_fallthru
      _
    %p181 = scmp.le.s32.totalorder 1, %s10
    %p182 = scmp.lt.s32.totalorder %s10, 9
    %p183 = pnand %p181, %p182
    %p184 = pneg %p183
    // Predicated region
    $region33: #{temporal_forward.2} parent=5 // pred_check
      _
    $region34: #{temporal_forward.2} parent=5 // pred_check_branch
      %186 = sbr.rel (%p183) target = $region36
    $region35: #{temporal_forward.2} parent=5 // pred_region
      %s187 = ssub.s32 %s10, 1
      %p188 = scmp.lt.s32.totalorder %s19, 0
      %s189 = scalar_select %p188, %s19, 0
      %p190 = scmp.lt.s32.totalorder %s20, 7
      %s191 = scalar_select %p190, %s20, 7
      %s192 = smul.addr %s191, 4
      %s193 = smul.addr %s189, 32
      %s194 = sadd.s32 %s192, %s193
      %s195 = smul.addr %s194, 4
      %s196 = scalar_lea.vmem %s0, %s195
      %p197 = pneg %p50
      %p198 = pneg %p47
      %p199 = pneg %p71
      %p200 = pneg %p68
      %p201 = pneg %p92
      %p202 = pneg %p89
      %p203 = pneg %p113
      %p204 = pneg %p110
      %p205 = pneg %p141
      %p206 = pneg %p138
      %p207 = scmp.lt.s32.totalorder %s19, 0
      %s208 = scalar_select %p207, %s19, 0
      %p209 = scmp.lt.s32.totalorder %s20, 7
      %s210 = scalar_select %p209, %s20, 7
      %s211 = smul.addr %s210, 4
      %s212 = smul.addr %s208, 32
      %s213 = sadd.s32 %s211, %s212
      %s214 = smul.addr %s213, 4
      %s215 = scalar_lea.vmem %s4, %s214
      %p216 = scmp.lt.s32.totalorder %s19, 0
      %s217 = scalar_select %p216, %s19, 0
      %p218 = scmp.lt.s32.totalorder %s20, 7
      %s219 = scalar_select %p218, %s20, 7
      %s220 = smul.addr %s219, 4
      %s221 = smul.addr %s217, 32
      %s222 = sadd.s32 %s220, %s221
      %s223 = smul.addr %s222, 4
      %s224 = scalar_lea.vmem %s0, %s223
      %p225 = scmp.lt.s32.totalorder %s19, 0
      %s226 = scalar_select %p225, %s19, 0
      %p227 = scmp.lt.s32.totalorder %s20, 7
      %s228 = scalar_select %p227, %s20, 7
      %s229 = smul.addr %s228, 4
      %s230 = smul.addr %s226, 32
      %s231 = sadd.s32 %s229, %s230
      %s232 = smul.addr %s231, 4
      %s233 = scalar_lea.vmem %s4, %s232
      %p234 = scmp.eq.s32.totalorder %s20, 0
      // Predicated region
      $region37: #{temporal_forward.2} parent=35 // pred_check
        %p235 = pneg %p234
      $region38: #{temporal_forward.2} parent=35 // pred_check_branch
        %237 = sbr.rel (%p235) target = $region40
      $region39: #{temporal_forward.2} parent=35 // pred_region
        %238 = vst [vmem:[#allocation2] sm:$0xff] 0.0
        %239 = vst [vmem:[#allocation2 + $0x8] sm:$0xff] 0.0
        %240 = vst [vmem:[#allocation2 + $0x10] sm:$0xff] 0.0
        %241 = vst [vmem:[#allocation2 + $0x18] sm:$0xff] 0.0
        %242 = vst [vmem:[#allocation3] sm:$0xff] 0.0
        %243 = vst [vmem:[#allocation3 + $0x8] sm:$0xff] 0.0
      $region40: #{temporal_forward.2} parent=35 // pred_fallthru
        _
      %v244 = vld [vmem:[%s224] sm:$0xff]
      %v245 = vld [vmem:[%s224 + $0x8] sm:$0xff]
      %v248 = vcombine.high %v244, %v244
      %v249 = vcombine.high %v245, %v245
      %252 = vst [vmem:[#allocation2] sm:$0xf] %v244
      %253 = vst [vmem:[#allocation2 + $0x8] sm:$0xf] %v248
      %254 = vst [vmem:[#allocation2 + $0x10] sm:$0xf] %v245
      %255 = vst [vmem:[#allocation2 + $0x18] sm:$0xf] %v249
      %v256 = vld [vmem:[#allocation2] sm:$0xff]
      %v257 = vld [vmem:[#allocation2 + $0x8] sm:$0xff]
      %v258 = vld [vmem:[#allocation2 + $0x10] sm:$0xff]
      %v259 = vld [vmem:[#allocation2 + $0x18] sm:$0xff]
      %261 = vrot.lane.b32.xlu0 %v259, 17
      %v262 = vpop.permute.xlu0 %261
      %267 = vrot.lane.b32.xlu0 %v256, 17
      %v268 = vpop.permute.xlu0 %267
      %269 = vrot.lane.b32.xlu0 %v257, 17
      %v270 = vpop.permute.xlu0 %269
      %271 = vrot.lane.b32.xlu0 %v258, 17
      %v272 = vpop.permute.xlu0 %271
      %vm273 = vcmask 138240
      %v274 = vsel %vm273, %v268, %v270
      %v275 = vsel %vm273, %v270, %v272
      %v276 = vsel %vm273, %v272, %v262
      %v281 = vsel %vm273, %v262, %v268
      %v282 = vld [vmem:[%s3] ss:$8 sm:$0xf]
      %v284 = vlaneseq
      %v285 = vshrl.u32 %v284, 7
      %v286 = vsub.s32 0, %v285
      %v287 = vrot.slane %v282, %v286
      %v288 = vlaneseq
      %v289 = vshrl.u32 %v288, 7
      %v290 = vsub.s32 1, %v289
      %v291 = vrot.slane %v282, %v290
      %v292 = vlaneseq
      %v293 = vshrl.u32 %v292, 7
      %v294 = vsub.s32 2, %v293
      %v295 = vrot.slane %v282, %v294
      %v296 = vlaneseq
      %v297 = vshrl.u32 %v296, 7
      %v298 = vsub.s32 3, %v297
      %v299 = vrot.slane %v282, %v298
      %v304 = vmul.f32 %v281, %v287
      %v305 = vmul.f32 %v274, %v291
      %v306 = vmul.f32 %v275, %v295
      %v307 = vmul.f32 %v276, %v299
      %308 = vst [vmem:[#allocation4] sm:$0xff] %v304
      %309 = vst [vmem:[#allocation4 + $0x8] sm:$0xff] %v305
      %310 = vst [vmem:[#allocation4 + $0x10] sm:$0xff] %v306
      %311 = vst [vmem:[#allocation4 + $0x18] sm:$0xff] %v307
      %312 = vrot.lane.b32.xlu0 %v259, 16
      %v313 = vpop.permute.xlu0 %312
      %315 = vrot.lane.b32.xlu0 %v256, 16
      %v316 = vpop.permute.xlu0 %315
      %317 = vrot.lane.b32.xlu0 %v257, 16
      %v318 = vpop.permute.xlu0 %317
      %319 = vrot.lane.b32.xlu0 %v258, 16
      %v320 = vpop.permute.xlu0 %319
      %vm321 = vcmask 130048
      %v322 = vsel %vm321, %v316, %v318
      %v323 = vsel %vm321, %v318, %v320
      %v324 = vsel %vm321, %v320, %v313
      %v329 = vsel %vm321, %v313, %v316
      %s330 = scalar_lea.vmem %s3, 1
      %v331 = vld [vmem:[%s330] ss:$8 sm:$0xf]
      %v333 = vlaneseq
      %v334 = vshrl.u32 %v333, 7
      %v335 = vsub.s32 0, %v334
      %v336 = vrot.slane %v331, %v335
      %v337 = vlaneseq
      %v338 = vshrl.u32 %v337, 7
      %v339 = vsub.s32 1, %v338
      %v340 = vrot.slane %v331, %v339
      %v341 = vlaneseq
      %v342 = vshrl.u32 %v341, 7
      %v343 = vsub.s32 2, %v342
      %v344 = vrot.slane %v331, %v343
      %v345 = vlaneseq
      %v346 = vshrl.u32 %v345, 7
      %v347 = vsub.s32 3, %v346
      %v348 = vrot.slane %v331, %v347
      %v353 = vmul.f32 %v329, %v336
      %v354 = vmul.f32 %v322, %v340
      %v355 = vmul.f32 %v323, %v344
      %v356 = vmul.f32 %v324, %v348
      %357 = vst [vmem:[#allocation4 + $0x20] sm:$0xff] %v353
      %358 = vst [vmem:[#allocation4 + $0x28] sm:$0xff] %v354
      %359 = vst [vmem:[#allocation4 + $0x30] sm:$0xff] %v355
      %360 = vst [vmem:[#allocation4 + $0x38] sm:$0xff] %v356
      %361 = vrot.lane.b32.xlu0 %v259, 15
      %v362 = vpop.permute.xlu0 %361
      %364 = vrot.lane.b32.xlu0 %v256, 15
      %v365 = vpop.permute.xlu0 %364
      %366 = vrot.lane.b32.xlu0 %v257, 15
      %v367 = vpop.permute.xlu0 %366
      %368 = vrot.lane.b32.xlu0 %v258, 15
      %v369 = vpop.permute.xlu0 %368
      %vm370 = vcmask 121856
      %v371 = vsel %vm370, %v365, %v367
      %v372 = vsel %vm370, %v367, %v369
      %v373 = vsel %vm370, %v369, %v362
      %v378 = vsel %vm370, %v362, %v365
      %s379 = scalar_lea.vmem %s3, 2
      %v380 = vld [vmem:[%s379] ss:$8 sm:$0xf]
      %v382 = vlaneseq
      %v383 = vshrl.u32 %v382, 7
      %v384 = vsub.s32 0, %v383
      %v385 = vrot.slane %v380, %v384
      %v386 = vlaneseq
      %v387 = vshrl.u32 %v386, 7
      %v388 = vsub.s32 1, %v387
      %v389 = vrot.slane %v380, %v388
      %v390 = vlaneseq
      %v391 = vshrl.u32 %v390, 7
      %v392 = vsub.s32 2, %v391
      %v393 = vrot.slane %v380, %v392
      %v394 = vlaneseq
      %v395 = vshrl.u32 %v394, 7
      %v396 = vsub.s32 3, %v395
      %v397 = vrot.slane %v380, %v396
      %v402 = vmul.f32 %v378, %v385
      %v403 = vmul.f32 %v371, %v389
      %v404 = vmul.f32 %v372, %v393
      %v405 = vmul.f32 %v373, %v397
      %406 = vst [vmem:[#allocation4 + $0x40] sm:$0xff] %v402
      %407 = vst [vmem:[#allocation4 + $0x48] sm:$0xff] %v403
      %408 = vst [vmem:[#allocation4 + $0x50] sm:$0xff] %v404
      %409 = vst [vmem:[#allocation4 + $0x58] sm:$0xff] %v405
      %410 = vrot.lane.b32.xlu0 %v259, 1
      %v411 = vpop.permute.xlu0 %410
      %413 = vrot.lane.b32.xlu0 %v256, 1
      %v414 = vpop.permute.xlu0 %413
      %415 = vrot.lane.b32.xlu0 %v257, 1
      %v416 = vpop.permute.xlu0 %415
      %417 = vrot.lane.b32.xlu0 %v258, 1
      %v418 = vpop.permute.xlu0 %417
      %vm419 = vcmask 7168
      %v420 = vsel %vm419, %v414, %v416
      %v421 = vsel %vm419, %v416, %v418
      %v422 = vsel %vm419, %v418, %v411
      %v427 = vsel %vm419, %v411, %v414
      %s428 = scalar_lea.vmem %s3, 3
      %v429 = vld [vmem:[%s428] ss:$8 sm:$0xf]
      %v431 = vlaneseq
      %v432 = vshrl.u32 %v431, 7
      %v433 = vsub.s32 0, %v432
      %v434 = vrot.slane %v429, %v433
      %v435 = vlaneseq
      %v436 = vshrl.u32 %v435, 7
      %v437 = vsub.s32 1, %v436
      %v438 = vrot.slane %v429, %v437
      %v439 = vlaneseq
      %v440 = vshrl.u32 %v439, 7
      %v441 = vsub.s32 2, %v440
      %v442 = vrot.slane %v429, %v441
      %v443 = vlaneseq
      %v444 = vshrl.u32 %v443, 7
      %v445 = vsub.s32 3, %v444
      %v446 = vrot.slane %v429, %v445
      %v451 = vmul.f32 %v427, %v434
      %v452 = vmul.f32 %v420, %v438
      %v453 = vmul.f32 %v421, %v442
      %v454 = vmul.f32 %v422, %v446
      %455 = vst [vmem:[#allocation4 + $0x60] sm:$0xff] %v451
      %456 = vst [vmem:[#allocation4 + $0x68] sm:$0xff] %v452
      %457 = vst [vmem:[#allocation4 + $0x70] sm:$0xff] %v453
      %458 = vst [vmem:[#allocation4 + $0x78] sm:$0xff] %v454
      %459 = vst [vmem:[#allocation4 + $0x80] sm:$0xff] %v256
      %460 = vst [vmem:[#allocation4 + $0x88] sm:$0xff] %v257
      %461 = vst [vmem:[#allocation4 + $0x90] sm:$0xff] %v258
      %462 = vst [vmem:[#allocation4 + $0x98] sm:$0xff] %v259
      %463 = vrot.lane.b32.xlu0 %v256, 127
      %v464 = vpop.permute.xlu0 %463
      %465 = vrot.lane.b32.xlu0 %v257, 127
      %v466 = vpop.permute.xlu0 %465
      %467 = vrot.lane.b32.xlu0 %v258, 127
      %v468 = vpop.permute.xlu0 %467
      %469 = vrot.lane.b32.xlu0 %v259, 127
      %v470 = vpop.permute.xlu0 %469
      %vm471 = vcmask 1039360
      %v472 = vsel %vm471, %v464, %v466
      %v473 = vsel %vm471, %v466, %v468
      %v474 = vsel %vm471, %v468, %v470
      %v480 = vsel %vm471, %v470, %v464
      %s481 = scalar_lea.vmem %s3, 5
      %v482 = vld [vmem:[%s481] ss:$8 sm:$0xf]
      %v484 = vlaneseq
      %v485 = vshrl.u32 %v484, 7
      %v486 = vsub.s32 0, %v485
      %v487 = vrot.slane %v482, %v486
      %v488 = vlaneseq
      %v489 = vshrl.u32 %v488, 7
      %v490 = vsub.s32 1, %v489
      %v491 = vrot.slane %v482, %v490
      %v492 = vlaneseq
      %v493 = vshrl.u32 %v492, 7
      %v494 = vsub.s32 2, %v493
      %v495 = vrot.slane %v482, %v494
      %v496 = vlaneseq
      %v497 = vshrl.u32 %v496, 7
      %v498 = vsub.s32 3, %v497
      %v499 = vrot.slane %v482, %v498
      %v504 = vmul.f32 %v472, %v487
      %v505 = vmul.f32 %v473, %v491
      %v506 = vmul.f32 %v474, %v495
      %v507 = vmul.f32 %v480, %v499
      %508 = vst [vmem:[#allocation4 + $0xa0] sm:$0xff] %v504
      %509 = vst [vmem:[#allocation4 + $0xa8] sm:$0xff] %v505
      %510 = vst [vmem:[#allocation4 + $0xb0] sm:$0xff] %v506
      %511 = vst [vmem:[#allocation4 + $0xb8] sm:$0xff] %v507
      %512 = vrot.lane.b32.xlu0 %v256, 113
      %v513 = vpop.permute.xlu0 %512
      %514 = vrot.lane.b32.xlu0 %v257, 113
      %v515 = vpop.permute.xlu0 %514
      %516 = vrot.lane.b32.xlu0 %v258, 113
      %v517 = vpop.permute.xlu0 %516
      %518 = vrot.lane.b32.xlu0 %v259, 113
      %v519 = vpop.permute.xlu0 %518
      %vm520 = vcmask 924672
      %v521 = vsel %vm520, %v513, %v515
      %v522 = vsel %vm520, %v515, %v517
      %v523 = vsel %vm520, %v517, %v519
      %v529 = vsel %vm520, %v519, %v513
      %s530 = scalar_lea.vmem %s3, 6
      %v531 = vld [vmem:[%s530] ss:$8 sm:$0xf]
      %v533 = vlaneseq
      %v534 = vshrl.u32 %v533, 7
      %v535 = vsub.s32 0, %v534
      %v536 = vrot.slane %v531, %v535
      %v537 = vlaneseq
      %v538 = vshrl.u32 %v537, 7
      %v539 = vsub.s32 1, %v538
      %v540 = vrot.slane %v531, %v539
      %v541 = vlaneseq
      %v542 = vshrl.u32 %v541, 7
      %v543 = vsub.s32 2, %v542
      %v544 = vrot.slane %v531, %v543
      %v545 = vlaneseq
      %v546 = vshrl.u32 %v545, 7
      %v547 = vsub.s32 3, %v546
      %v548 = vrot.slane %v531, %v547
      %v553 = vmul.f32 %v521, %v536
      %v554 = vmul.f32 %v522, %v540
      %v555 = vmul.f32 %v523, %v544
      %v556 = vmul.f32 %v529, %v548
      %557 = vst [vmem:[#allocation4 + $0xc0] sm:$0xff] %v553
      %558 = vst [vmem:[#allocation4 + $0xc8] sm:$0xff] %v554
      %559 = vst [vmem:[#allocation4 + $0xd0] sm:$0xff] %v555
      %560 = vst [vmem:[#allocation4 + $0xd8] sm:$0xff] %v556
      %561 = vrot.lane.b32.xlu0 %v256, 112
      %v562 = vpop.permute.xlu0 %561
      %563 = vrot.lane.b32.xlu0 %v257, 112
      %v564 = vpop.permute.xlu0 %563
      %565 = vrot.lane.b32.xlu0 %v258, 112
      %v566 = vpop.permute.xlu0 %565
      %567 = vrot.lane.b32.xlu0 %v259, 112
      %v568 = vpop.permute.xlu0 %567
      %vm569 = vcmask 916480
      %v570 = vsel %vm569, %v562, %v564
      %v571 = vsel %vm569, %v564, %v566
      %v572 = vsel %vm569, %v566, %v568
      %v578 = vsel %vm569, %v568, %v562
      %s579 = scalar_lea.vmem %s3, 7
      %v580 = vld [vmem:[%s579] ss:$8 sm:$0xf]
      %v582 = vlaneseq
      %v583 = vshrl.u32 %v582, 7
      %v584 = vsub.s32 0, %v583
      %v585 = vrot.slane %v580, %v584
      %v586 = vlaneseq
      %v587 = vshrl.u32 %v586, 7
      %v588 = vsub.s32 1, %v587
      %v589 = vrot.slane %v580, %v588
      %v590 = vlaneseq
      %v591 = vshrl.u32 %v590, 7
      %v592 = vsub.s32 2, %v591
      %v593 = vrot.slane %v580, %v592
      %v594 = vlaneseq
      %v595 = vshrl.u32 %v594, 7
      %v596 = vsub.s32 3, %v595
      %v597 = vrot.slane %v580, %v596
      %v602 = vmul.f32 %v570, %v585
      %v603 = vmul.f32 %v571, %v589
      %v604 = vmul.f32 %v572, %v593
      %v605 = vmul.f32 %v578, %v597
      %606 = vst [vmem:[#allocation4 + $0xe0] sm:$0xff] %v602
      %607 = vst [vmem:[#allocation4 + $0xe8] sm:$0xff] %v603
      %608 = vst [vmem:[#allocation4 + $0xf0] sm:$0xff] %v604
      %609 = vst [vmem:[#allocation4 + $0xf8] sm:$0xff] %v605
      %610 = vrot.lane.b32.xlu0 %v256, 111
      %v611 = vpop.permute.xlu0 %610
      %612 = vrot.lane.b32.xlu0 %v257, 111
      %v613 = vpop.permute.xlu0 %612
      %614 = vrot.lane.b32.xlu0 %v258, 111
      %v615 = vpop.permute.xlu0 %614
      %616 = vrot.lane.b32.xlu0 %v259, 111
      %v617 = vpop.permute.xlu0 %616
      %vm618 = vcmask 908288
      %v619 = vsel %vm618, %v611, %v613
      %v620 = vsel %vm618, %v613, %v615
      %v621 = vsel %vm618, %v615, %v617
      %v627 = vsel %vm618, %v617, %v611
      %s628 = scalar_lea.vmem %s3, 32
      %v629 = vld [vmem:[%s628] ss:$8 sm:$0xf]
      %v631 = vlaneseq
      %v632 = vshrl.u32 %v631, 7
      %v633 = vsub.s32 0, %v632
      %v634 = vrot.slane %v629, %v633
      %v635 = vlaneseq
      %v636 = vshrl.u32 %v635, 7
      %v637 = vsub.s32 1, %v636
      %v638 = vrot.slane %v629, %v637
      %v639 = vlaneseq
      %v640 = vshrl.u32 %v639, 7
      %v641 = vsub.s32 2, %v640
      %v642 = vrot.slane %v629, %v641
      %v643 = vlaneseq
      %v644 = vshrl.u32 %v643, 7
      %v645 = vsub.s32 3, %v644
      %v646 = vrot.slane %v629, %v645
      %v651 = vmul.f32 %v619, %v634
      %v652 = vmul.f32 %v620, %v638
      %v653 = vmul.f32 %v621, %v642
      %v654 = vmul.f32 %v627, %v646
      %655 = vst [vmem:[#allocation4 + $0x100] sm:$0xff] %v651
      %656 = vst [vmem:[#allocation4 + $0x108] sm:$0xff] %v652
      %657 = vst [vmem:[#allocation4 + $0x110] sm:$0xff] %v653
      %658 = vst [vmem:[#allocation4 + $0x118] sm:$0xff] %v654
      %v659 = vld [vmem:[%s1] sm:$0xff]
      %v660 = vld [vmem:[%s1 + $0x8] sm:$0xff]
      %v661 = vld [vmem:[#allocation4] sm:$0xff]
      %v662 = vld [vmem:[#allocation4 + $0x8] sm:$0xff]
      %v663 = vld [vmem:[#allocation4 + $0x10] sm:$0xff]
      %v664 = vld [vmem:[#allocation4 + $0x18] sm:$0xff]
      %v665 = vld [vmem:[#allocation4 + $0x20] sm:$0xff]
      %v666 = vld [vmem:[#allocation4 + $0x28] sm:$0xff]
      %v667 = vld [vmem:[#allocation4 + $0x30] sm:$0xff]
      %v668 = vld [vmem:[#allocation4 + $0x38] sm:$0xff]
      %v669 = vld [vmem:[#allocation4 + $0x40] sm:$0xff]
      %v670 = vld [vmem:[#allocation4 + $0x48] sm:$0xff]
      %v671 = vld [vmem:[#allocation4 + $0x50] sm:$0xff]
      %v672 = vld [vmem:[#allocation4 + $0x58] sm:$0xff]
      %v673 = vld [vmem:[#allocation4 + $0x60] sm:$0xff]
      %v674 = vld [vmem:[#allocation4 + $0x68] sm:$0xff]
      %v675 = vld [vmem:[#allocation4 + $0x70] sm:$0xff]
      %v676 = vld [vmem:[#allocation4 + $0x78] sm:$0xff]
      %v677 = vld [vmem:[#allocation4 + $0x80] sm:$0xff]
      %v678 = vld [vmem:[#allocation4 + $0x88] sm:$0xff]
      %v679 = vld [vmem:[#allocation4 + $0x90] sm:$0xff]
      %v680 = vld [vmem:[#allocation4 + $0x98] sm:$0xff]
      %v681 = vld [vmem:[#allocation4 + $0xa0] sm:$0xff]
      %v682 = vld [vmem:[#allocation4 + $0xa8] sm:$0xff]
      %v683 = vld [vmem:[#allocation4 + $0xb0] sm:$0xff]
      %v684 = vld [vmem:[#allocation4 + $0xb8] sm:$0xff]
      %v685 = vld [vmem:[#allocation4 + $0xc0] sm:$0xff]
      %v686 = vld [vmem:[#allocation4 + $0xc8] sm:$0xff]
      %v687 = vld [vmem:[#allocation4 + $0xd0] sm:$0xff]
      %v688 = vld [vmem:[#allocation4 + $0xd8] sm:$0xff]
      %v689 = vld [vmem:[#allocation4 + $0xe0] sm:$0xff]
      %v690 = vld [vmem:[#allocation4 + $0xe8] sm:$0xff]
      %v691 = vld [vmem:[#allocation4 + $0xf0] sm:$0xff]
      %v692 = vld [vmem:[#allocation4 + $0xf8] sm:$0xff]
      %v693 = vld [vmem:[#allocation4 + $0x100] sm:$0xff]
      %v694 = vld [vmem:[#allocation4 + $0x108] sm:$0xff]
      %v695 = vld [vmem:[#allocation4 + $0x110] sm:$0xff]
      %v696 = vld [vmem:[#allocation4 + $0x118] sm:$0xff]
      %v697 = vld [vmem:[%s2] sm:$0xff]
      %v698 = vld [vmem:[%s2 + $0x8] sm:$0xff]
      %700 = vset.pattern.permute.xlu0 0
      %701 = vperm.xlu0 %700, %v697
      %v702 = vpop.permute.xlu0 %701
      %705 = vset.pattern.permute.xlu0 0
      %706 = vperm.xlu0 %705, %v698
      %v707 = vpop.permute.xlu0 %706
      %vm709 = vcmask 588800
      %v711 = vsel %vm709, %v659, 0
      %v714 = vsel %vm709, %v660, 0
      %716 = vmatprep.subr.mxu0 %v662
      %717 = vmatpush1.msra.mxu0 %v661
      %718 = vmatprep.subr.mxu0 %v666
      %719 = vmatpush1.msra.mxu0 %v665
      %720 = vmatprep.subr.mxu0 %v670
      %721 = vmatpush1.msra.mxu0 %v669
      %722 = vmatprep.subr.mxu0 %v674
      %723 = vmatpush1.msra.mxu0 %v673
      %724 = vmatprep.subr.mxu0 %v678
      %725 = vmatpush1.msra.mxu0 %v677
      %726 = vmatprep.subr.mxu0 %v682
      %727 = vmatpush1.msra.mxu0 %v681
      %728 = vmatprep.subr.mxu0 %v686
      %729 = vmatpush1.msra.mxu0 %v685
      %730 = vmatprep.subr.mxu0 %v690
      %731 = vmatpush1.msra.mxu0 %v689
      %732 = vmatprep.subr.mxu0 %v694
      %733 = vmatpush1.msra.mxu0 %v693
      %734 = vmatprep.subr.mxu0 0.0
      %735 = vmatpush1.msra.mxu0 0.0
      %736 = vmatprep.subr.mxu0 0.0
      %737 = vmatpush1.msra.mxu0 0.0
      %738 = vmatprep.subr.mxu0 0.0
      %739 = vmatpush1.msra.mxu0 0.0
      %740 = vmatprep.subr.mxu0 0.0
      %741 = vmatpush1.msra.mxu0 0.0
      %742 = vmatprep.subr.mxu0 0.0
      %743 = vmatpush1.msra.mxu0 0.0
      %744 = vmatprep.subr.mxu0 0.0
      %745 = vmatpush1.msra.mxu0 0.0
      %746 = vmatprep.subr.mxu0 0.0
      %747 = vmatpush1.msra.mxu0 0.0
      %748 = vmatprep.subr.mxu0 0.0
      %749 = vmatpush1.msra.mxu0 0.0
      %750 = vmatprep.subr.mxu0 0.0
      %751 = vmatpush1.msra.mxu0 0.0
      %752 = vmatprep.subr.mxu0 0.0
      %753 = vmatpush1.msra.mxu0 0.0
      %754 = vmatprep.subr.mxu0 0.0
      %755 = vmatpush1.msra.mxu0 0.0
      %756 = vmatprep.subr.mxu0 0.0
      %757 = vmatpush1.msra.mxu0 0.0
      %758 = vmatprep.subr.mxu0 0.0
      %759 = vmatpush1.msra.mxu0 0.0
      %760 = vmatprep.subr.mxu0 0.0
      %761 = vmatpush1.msra.mxu0 0.0
      %762 = vmatprep.subr.mxu0 0.0
      %763 = vmatpush1.msra.mxu0 0.0
      %764 = vmatprep.subr.mxu0 0.0
      %765 = vmatpush1.msra.mxu0 0.0
      %766 = vmatprep.subr.mxu0 0.0
      %767 = vmatpush1.msra.mxu0 0.0
      %768 = vmatprep.subr.mxu0 0.0
      %769 = vmatpush1.msra.mxu0 0.0
      %770 = vmatprep.subr.mxu0 0.0
      %771 = vmatpush1.msra.mxu0 0.0
      %772 = vmatprep.subr.mxu0 0.0
      %773 = vmatpush1.msra.mxu0 0.0
      %774 = vmatprep.subr.mxu0 0.0
      %775 = vmatpush1.msra.mxu0 0.0
      %776 = vmatprep.subr.mxu0 0.0
      %777 = vmatpush1.msra.mxu0 0.0
      %778 = vmatprep.subr.mxu0 0.0
      %779 = vmatpush1.msra.mxu0 0.0
      %780 = vmatprep.mubr.f32.mxu0 0.0
      %781 = vmatmul.mubr.f32.gmra.mrb[0].mxu0 %v711
      %v782 = vpop.f32.mrb[0].mxu0
      %v783 = vadd.f32 %v702, %v782
      %v784 = vpop.f32.mrb[0].mxu0
      %v785 = vadd.f32 %v702, %v784
      %786 = vmatprep.mubr.f32.mxu0 0.0
      %787 = vmatmul.mubr.f32.gmra.mrb[0].mxu0 %v714
      %v788 = vpop.f32.mrb[0].mxu0
      %v789 = vadd.f32 %v707, %v788
      %v790 = vpop.f32.mrb[0].mxu0
      %v791 = vadd.f32 %v707, %v790
      %792 = vdwg.mxu0
      %793 = vmatprep.subr.mxu0 %v664
      %794 = vmatpush1.msra.mxu0 %v663
      %795 = vmatprep.subr.mxu0 %v668
      %796 = vmatpush1.msra.mxu0 %v667
      %797 = vmatprep.subr.mxu0 %v672
      %798 = vmatpush1.msra.mxu0 %v671
      %799 = vmatprep.subr.mxu0 %v676
      %800 = vmatpush1.msra.mxu0 %v675
      %801 = vmatprep.subr.mxu0 %v680
      %802 = vmatpush1.msra.mxu0 %v679
      %803 = vmatprep.subr.mxu0 %v684
      %804 = vmatpush1.msra.mxu0 %v683
      %805 = vmatprep.subr.mxu0 %v688
      %806 = vmatpush1.msra.mxu0 %v687
      %807 = vmatprep.subr.mxu0 %v692
      %808 = vmatpush1.msra.mxu0 %v691
      %809 = vmatprep.subr.mxu0 %v696
      %810 = vmatpush1.msra.mxu0 %v695
      %811 = vmatprep.subr.mxu0 0.0
      %812 = vmatpush1.msra.mxu0 0.0
      %813 = vmatprep.subr.mxu0 0.0
      %814 = vmatpush1.msra.mxu0 0.0
      %815 = vmatprep.subr.mxu0 0.0
      %816 = vmatpush1.msra.mxu0 0.0
      %817 = vmatprep.subr.mxu0 0.0
      %818 = vmatpush1.msra.mxu0 0.0
      %819 = vmatprep.subr.mxu0 0.0
      %820 = vmatpush1.msra.mxu0 0.0
      %821 = vmatprep.subr.mxu0 0.0
      %822 = vmatpush1.msra.mxu0 0.0
      %823 = vmatprep.subr.mxu0 0.0
      %824 = vmatpush1.msra.mxu0 0.0
      %825 = vmatprep.subr.mxu0 0.0
      %826 = vmatpush1.msra.mxu0 0.0
      %827 = vmatprep.subr.mxu0 0.0
      %828 = vmatpush1.msra.mxu0 0.0
      %829 = vmatprep.subr.mxu0 0.0
      %830 = vmatpush1.msra.mxu0 0.0
      %831 = vmatprep.subr.mxu0 0.0
      %832 = vmatpush1.msra.mxu0 0.0
      %833 = vmatprep.subr.mxu0 0.0
      %834 = vmatpush1.msra.mxu0 0.0
      %835 = vmatprep.subr.mxu0 0.0
      %836 = vmatpush1.msra.mxu0 0.0
      %837 = vmatprep.subr.mxu0 0.0
      %838 = vmatpush1.msra.mxu0 0.0
      %839 = vmatprep.subr.mxu0 0.0
      %840 = vmatpush1.msra.mxu0 0.0
      %841 = vmatprep.subr.mxu0 0.0
      %842 = vmatpush1.msra.mxu0 0.0
      %843 = vmatprep.subr.mxu0 0.0
      %844 = vmatpush1.msra.mxu0 0.0
      %845 = vmatprep.subr.mxu0 0.0
      %846 = vmatpush1.msra.mxu0 0.0
      %847 = vmatprep.subr.mxu0 0.0
      %848 = vmatpush1.msra.mxu0 0.0
      %849 = vmatprep.subr.mxu0 0.0
      %850 = vmatpush1.msra.mxu0 0.0
      %851 = vmatprep.subr.mxu0 0.0
      %852 = vmatpush1.msra.mxu0 0.0
      %853 = vmatprep.subr.mxu0 0.0
      %854 = vmatpush1.msra.mxu0 0.0
      %855 = vmatprep.subr.mxu0 0.0
      %856 = vmatpush1.msra.mxu0 0.0
      %857 = vmatprep.mubr.f32.mxu0 0.0
      %858 = vmatmul.mubr.f32.gmra.mrb[0].mxu0 %v711
      %v859 = vpop.f32.mrb[0].mxu0
      %v860 = vadd.f32 %v702, %v859
      %v861 = vpop.f32.mrb[0].mxu0
      %v862 = vadd.f32 %v702, %v861
      %863 = vmatprep.mubr.f32.mxu0 0.0
      %864 = vmatmul.mubr.f32.gmra.mrb[0].mxu0 %v714
      %v865 = vpop.f32.mrb[0].mxu0
      %v866 = vadd.f32 %v707, %v865
      %v867 = vpop.f32.mrb[0].mxu0
      %v868 = vadd.f32 %v707, %v867
      %869 = vdwg.mxu0
      %v870 = vxor.u32 %v783, 2147483648
      %v871 = vxor.u32 %v785, 2147483648
      %v872 = vxor.u32 %v860, 2147483648
      %v873 = vxor.u32 %v862, 2147483648
      %v874 = vxor.u32 %v789, 2147483648
      %v875 = vxor.u32 %v791, 2147483648
      %v876 = vxor.u32 %v866, 2147483648
      %v877 = vxor.u32 %v868, 2147483648
      %v878 = vmul.f32 %v870, 1.442695
      %v879 = vpow.pop %v878
      %v880 = vmul.f32 %v871, 1.442695
      %v881 = vpow.pop %v880
      %v882 = vmul.f32 %v872, 1.442695
      %v883 = vpow.pop %v882
      %v884 = vmul.f32 %v873, 1.442695
      %v885 = vpow.pop %v884
      %v886 = vmul.f32 %v874, 1.442695
      %v887 = vpow.pop %v886
      %v888 = vmul.f32 %v875, 1.442695
      %v889 = vpow.pop %v888
      %v890 = vmul.f32 %v876, 1.442695
      %v891 = vpow.pop %v890
      %v892 = vmul.f32 %v877, 1.442695
      %v893 = vpow.pop %v892
      %v894 = vadd.f32 %v879, 1.0
      %v895 = vadd.f32 %v881, 1.0
      %v896 = vadd.f32 %v883, 1.0
      %v897 = vadd.f32 %v885, 1.0
      %v898 = vadd.f32 %v887, 1.0
      %v899 = vadd.f32 %v889, 1.0
      %v900 = vadd.f32 %v891, 1.0
      %v901 = vadd.f32 %v893, 1.0
      %v902 = vrcp.pop %v894
      %v903 = vmul.f32 1.0, %v902
      %v904 = vrcp.pop %v895
      %v905 = vmul.f32 1.0, %v904
      %v906 = vrcp.pop %v896
      %v907 = vmul.f32 1.0, %v906
      %v908 = vrcp.pop %v897
      %v909 = vmul.f32 1.0, %v908
      %v910 = vrcp.pop %v898
      %v911 = vmul.f32 1.0, %v910
      %v912 = vrcp.pop %v899
      %v913 = vmul.f32 1.0, %v912
      %v914 = vrcp.pop %v900
      %v915 = vmul.f32 1.0, %v914
      %v916 = vrcp.pop %v901
      %v917 = vmul.f32 1.0, %v916
      %v918 = vtanh.pop %v789
      %v919 = vtanh.pop %v791
      %v920 = vtanh.pop %v866
      %v921 = vtanh.pop %v868
      %v922 = vld [vmem:[#allocation3] sm:$0xff]
      %v923 = vld [vmem:[#allocation3 + $0x8] sm:$0xff]
      %v926 = vcombine.low %v922, %v922
      %v927 = vcombine.low %v923, %v923
      %v930 = vmul.f32 %v903, %v926
      %v931 = vmul.f32 %v905, %v922
      %v932 = vmul.f32 %v907, %v927
      %v933 = vmul.f32 %v909, %v923
      %v938 = vrot.slane %v918, 4
      %v939 = vrot.slane %v919, 4
      %v940 = vrot.slane %v920, 4
      %v941 = vrot.slane %v921, 4
      %v946 = vmul.f32 %v903, %v938
      %v947 = vmul.f32 %v905, %v939
      %v948 = vmul.f32 %v907, %v940
      %v949 = vmul.f32 %v909, %v941
      %v954 = vrot.slane %v946, 4
      %v955 = vrot.slane %v947, 4
      %v956 = vrot.slane %v948, 4
      %v957 = vrot.slane %v949, 4
      %v962 = vadd.f32 %v930, %v954
      %v963 = vadd.f32 %v931, %v955
      %v964 = vadd.f32 %v932, %v956
      %v965 = vadd.f32 %v933, %v957
      %v966 = vtanh.pop %v962
      %v967 = vtanh.pop %v963
      %v968 = vtanh.pop %v964
      %v969 = vtanh.pop %v965
      %v974 = vrot.slane %v966, 4
      %v975 = vrot.slane %v967, 4
      %v976 = vrot.slane %v968, 4
      %v977 = vrot.slane %v969, 4
      %v982 = vmul.f32 %v911, %v974
      %v983 = vmul.f32 %v913, %v975
      %v984 = vmul.f32 %v915, %v976
      %v985 = vmul.f32 %v917, %v977
      %v990 = vcombine.high %v962, %v963
      %v991 = vcombine.high %v964, %v965
      %994 = vst [vmem:[#allocation3] sm:$0xff] %v990
      %995 = vst [vmem:[#allocation3 + $0x8] sm:$0xff] %v991
      %v1000 = vrot.slane %v982, 4
      %v1001 = vrot.slane %v983, 4
      %v1002 = vrot.slane %v984, 4
      %v1003 = vrot.slane %v985, 4
      %1008 = vst [vmem:[#allocation2] sm:$0xf0] %v1000
      %1009 = vst [vmem:[#allocation2 + $0x8] sm:$0xf0] %v1001
      %1010 = vst [vmem:[#allocation2 + $0x10] sm:$0xf0] %v1002
      %1011 = vst [vmem:[#allocation2 + $0x18] sm:$0xf0] %v1003
      %v1012 = vcombine.low %v982, %v983
      %v1013 = vcombine.low %v984, %v985
      %1016 = vst [vmem:[%s233] sm:$0xff] %v1012
      %1017 = vst [vmem:[%s233 + $0x8] sm:$0xff] %v1013
      %p1018 = scmp.lt.s32.totalorder %s19, 0
      %s1019 = scalar_select %p1018, %s19, 0
      %p1020 = scmp.lt.s32.totalorder %s20, 7
      %s1021 = scalar_select %p1020, %s20, 7
      %s1022 = smul.addr %s1021, 4
      %s1023 = smul.addr %s1019, 32
      %s1024 = sadd.s32 %s1022, %s1023
      %s1025 = smul.addr %s1024, 4
      %s1026 = scalar_lea.vmem %s4, %s1025
      // Predicated region
      $region41: #{temporal_forward.2} parent=35 // pred_check
        %p1027 = pneg %p138
      $region42: #{temporal_forward.2} parent=35 // pred_check_branch
        %1029 = sbr.rel (%p1027) target = $region44
      $region43: #{temporal_forward.2} parent=35 // pred_region
        _
      $region44: #{temporal_forward.2} parent=35 // pred_fallthru
        _
    $region36: #{temporal_forward.2} parent=5 // pred_fallthru
      _
    %p1030 = scmp.le.s32.totalorder 2, %s10
    // Predicated region
    $region45: #{temporal_forward.2} parent=5 // pred_check
      %p1031 = pneg %p1030
    $region46: #{temporal_forward.2} parent=5 // pred_check_branch
      %1033 = sbr.rel (%p1031) target = $region48
    $region47: #{temporal_forward.2} parent=5 // pred_region
      %s1034 = ssub.s32 %s10, 2
      // Predicated region
      $region49: #{temporal_forward.2} parent=47 // pred_check
        %p1035 = pneg %p144
      $region50: #{temporal_forward.2} parent=47 // pred_check_branch
        %1037 = sbr.rel (%p1035) target = $region52
      $region51: #{temporal_forward.2} parent=47 // pred_region
        %p1038 = scmp.lt.s32.totalorder %s21, 0
        %s1039 = scalar_select %p1038, %s21, 0
        %p1040 = scmp.lt.s32.totalorder %s22, 7
        %s1041 = scalar_select %p1040, %s22, 7
        %s1042 = smul.addr %s1041, 4
        %s1043 = smul.addr %s1039, 32
        %s1044 = sadd.s32 %s1042, %s1043
        %s1045 = smul.addr %s1044, 4
        %s1046 = scalar_lea.vmem %s4, %s1045
      $region52: #{temporal_forward.2} parent=47 // pred_fallthru
        _
    $region48: #{temporal_forward.2} parent=5 // pred_fallthru
      _
  $region6: #{temporal_forward.2} parent=0 // loop_footer
    %s14 = sadd.s32 1, %s10
  $region7: #{temporal_forward.2} parent=0 // loop_footer_branch
    %9 = sbr.rel target = $region3
  $region8: #{temporal_forward.2} parent=0 // loop_exit
    _

// kernel: temporal_forward.3
$region0: #{temporal_forward.3}
  #allocation0 [shape = 'u32[]', space=smem, size = 0x4, offset = 0x4, fixed_abs, tag = 'smem constant byte address 0x4 - core index']
  #allocation1 [shape = 'u32[144,128]{1,0:T(1,128)}', space=vmem, size = 0x12000, scoped, tag = 'internal scratch']
  #allocation2 [shape = 'f32[8,512]{1,0:T(8,128)}', space=vmem, size = 0x4000, scoped, tag = 'scratch operand']
  #allocation3 [shape = 'f32[4,512]{1,0:T(4,128)}', space=vmem, size = 0x2000, scoped, tag = 'scratch operand']
  #allocation4 [shape = 'f32[72,512]{1,0:T(8,128)}', space=vmem, size = 0x24000, scoped, tag = 'scratch operand']
  %s0 = inlined_call_operand.vmem [shape: f32[1,8,4,512], index: 0, kind: input, shape index: {}]
  %s1 = inlined_call_operand.vmem [shape: f32[16,72], index: 1, kind: input, shape index: {}]
  %s2 = inlined_call_operand.vmem [shape: f32[16,1], index: 2, kind: input, shape index: {}]
  %s3 = inlined_call_operand.vmem [shape: f32[4,72], index: 3, kind: input, shape index: {}]
  %s4 = inlined_call_operand.vmem [shape: f32[4,1], index: 4, kind: input, shape index: {}]
  %s5 = inlined_call_operand.vmem [shape: f32[9,512], index: 5, kind: input, shape index: {}]
  %s6 = inlined_call_operand.vmem [shape: f32[1,8,4,512], index: 6, kind: output, shape index: {}]
  %s7 = sld [smem:[#allocation0]]
  $region61: #{temporal_forward.3} parent=0
    _
  %s9 = ssub.s32 1, %s7
  %s10 = scalar_select 0, %s9, %s7
  loop: start=0, step=1, limit=10
  $region2: #{temporal_forward.3} parent=0 // loop_pre_header
    _
  $region3: #{temporal_forward.3} parent=0 // loop_header
    %s12 = sphi 0, %s16
    %p13 = scmp.ge.s32.totalorder %s12, 10
    %s19 = sphi 0, %s31
    %s20 = sphi 0, %s27
    %s21 = sphi 0, %s19
    %s22 = sphi 0, %s20
    %s23 = sphi 0, %s21
    %s24 = sphi 0, %s22
    %s38 = sphi 0, %s40
    %s41 = sphi 0, %s38
    %s42 = sphi 0, %s41
    %s58 = sphi 0, %s42
    %s62 = sphi 0, %s62
    %s64 = sphi 0, %s62
    %s65 = sphi 0, %s64
    %s79 = sphi 0, %s65
    %s83 = sphi 0, %s83
    %s85 = sphi 0, %s83
    %s86 = sphi 0, %s85
    %s100 = sphi 0, %s86
    %s104 = sphi 0, %s104
    %s106 = sphi 0, %s104
    %s107 = sphi 0, %s106
    %s121 = sphi 0, %s107
    %s125 = sphi 0, %s125
    %s127 = sphi 0, %s125
    %s128 = sphi 0, %s127
    %s142 = sphi 0, %s128
    %s146 = sphi 0, %s146
    %s148 = sphi 0, %s146
    %s149 = sphi 0, %s148
    %s163 = sphi 0, %s149
    %s173 = sphi 0, %s175
    %s176 = sphi 0, %s173
    %s177 = sphi 0, %s176
    %s193 = sphi 0, %s177
  $region4: #{temporal_forward.3} parent=0 // loop_header_branch
    %15 = sbr.rel (%p13) target = $region8
  $region5: #{temporal_forward.3} parent=0 // loop_body
    %s17 = ssub.s32 %s12, 1
    %s18 = ssub.s32 %s12, 2
    %s25 = sadd.s32 1, %s20
    %p26 = scmp.ge.s32.totalorder %s25, 8
    %s27 = scalar_select %p26, 0, %s25
    %s28 = sadd.s32 1, %s19
    %s29 = scalar_select %p26, %s28, %s19
    %p30 = scmp.ge.s32.totalorder %s29, 1
    %s31 = scalar_select %p30, 0, %s29
    %s32 = ssub.s32 7, %s20
    %s33 = ssub.s32 7, %s27
    %s34 = ssub.s32 %s19, %s31
    %s35 = ssub.s32 %s32, %s33
    %s36 = sor.u32 %s34, %s35
    %p37 = scmp.eq.s32.totalorder %s36, 0
    %s39 = sadd.s32 %s38, 1
    %s40 = scalar_select %p37, %s38, %s39
    %p43 = pneg %p37
    %p44 = scmp.eq.s32.totalorder %s12, 7
    %p45 = por %p43, %p44
    %p46 = scmp.ne.s32.totalorder %s38, %s41
    %p47 = scmp.eq.s32.totalorder %s12, 0
    %p48 = por %p46, %p47
    %p49 = scmp.ne.s32.totalorder %s38, %s41
    %p50 = scmp.eq.s32.totalorder %s17, 7
    %p51 = por %p49, %p50
    %p52 = scmp.ne.s32.totalorder %s41, %s42
    %p53 = scmp.eq.s32.totalorder %s17, 0
    %p54 = por %p52, %p53
    %p55 = scmp.ne.s32.totalorder %s41, %s42
    %p56 = scmp.eq.s32.totalorder %s18, 7
    %p57 = por %p55, %p56
    %p59 = scmp.ne.s32.totalorder %s42, %s58
    %p60 = scmp.eq.s32.totalorder %s18, 0
    %p61 = por %p59, %p60
    %s63 = sadd.s32 %s62, 1
    %p66 = scmp.eq.s32.totalorder %s12, 7
    %p67 = scmp.ne.s32.totalorder %s62, %s64
    %p68 = scmp.eq.s32.totalorder %s12, 0
    %p69 = por %p67, %p68
    %p70 = scmp.ne.s32.totalorder %s62, %s64
    %p71 = scmp.eq.s32.totalorder %s17, 7
    %p72 = por %p70, %p71
    %p73 = scmp.ne.s32.totalorder %s64, %s65
    %p74 = scmp.eq.s32.totalorder %s17, 0
    %p75 = por %p73, %p74
    %p76 = scmp.ne.s32.totalorder %s64, %s65
    %p77 = scmp.eq.s32.totalorder %s18, 7
    %p78 = por %p76, %p77
    %p80 = scmp.ne.s32.totalorder %s65, %s79
    %p81 = scmp.eq.s32.totalorder %s18, 0
    %p82 = por %p80, %p81
    %s84 = sadd.s32 %s83, 1
    %p87 = scmp.eq.s32.totalorder %s12, 7
    %p88 = scmp.ne.s32.totalorder %s83, %s85
    %p89 = scmp.eq.s32.totalorder %s12, 0
    %p90 = por %p88, %p89
    %p91 = scmp.ne.s32.totalorder %s83, %s85
    %p92 = scmp.eq.s32.totalorder %s17, 7
    %p93 = por %p91, %p92
    %p94 = scmp.ne.s32.totalorder %s85, %s86
    %p95 = scmp.eq.s32.totalorder %s17, 0
    %p96 = por %p94, %p95
    %p97 = scmp.ne.s32.totalorder %s85, %s86
    %p98 = scmp.eq.s32.totalorder %s18, 7
    %p99 = por %p97, %p98
    %p101 = scmp.ne.s32.totalorder %s86, %s100
    %p102 = scmp.eq.s32.totalorder %s18, 0
    %p103 = por %p101, %p102
    %s105 = sadd.s32 %s104, 1
    %p108 = scmp.eq.s32.totalorder %s12, 7
    %p109 = scmp.ne.s32.totalorder %s104, %s106
    %p110 = scmp.eq.s32.totalorder %s12, 0
    %p111 = por %p109, %p110
    %p112 = scmp.ne.s32.totalorder %s104, %s106
    %p113 = scmp.eq.s32.totalorder %s17, 7
    %p114 = por %p112, %p113
    %p115 = scmp.ne.s32.totalorder %s106, %s107
    %p116 = scmp.eq.s32.totalorder %s17, 0
    %p117 = por %p115, %p116
    %p118 = scmp.ne.s32.totalorder %s106, %s107
    %p119 = scmp.eq.s32.totalorder %s18, 7
    %p120 = por %p118, %p119
    %p122 = scmp.ne.s32.totalorder %s107, %s121
    %p123 = scmp.eq.s32.totalorder %s18, 0
    %p124 = por %p122, %p123
    %s126 = sadd.s32 %s125, 1
    %p129 = scmp.eq.s32.totalorder %s12, 7
    %p130 = scmp.ne.s32.totalorder %s125, %s127
    %p131 = scmp.eq.s32.totalorder %s12, 0
    %p132 = por %p130, %p131
    %p133 = scmp.ne.s32.totalorder %s125, %s127
    %p134 = scmp.eq.s32.totalorder %s17, 7
    %p135 = por %p133, %p134
    %p136 = scmp.ne.s32.totalorder %s127, %s128
    %p137 = scmp.eq.s32.totalorder %s17, 0
    %p138 = por %p136, %p137
    %p139 = scmp.ne.s32.totalorder %s127, %s128
    %p140 = scmp.eq.s32.totalorder %s18, 7
    %p141 = por %p139, %p140
    %p143 = scmp.ne.s32.totalorder %s128, %s142
    %p144 = scmp.eq.s32.totalorder %s18, 0
    %p145 = por %p143, %p144
    %s147 = sadd.s32 %s146, 1
    %p150 = scmp.eq.s32.totalorder %s12, 7
    %p151 = scmp.ne.s32.totalorder %s146, %s148
    %p152 = scmp.eq.s32.totalorder %s12, 0
    %p153 = por %p151, %p152
    %p154 = scmp.ne.s32.totalorder %s146, %s148
    %p155 = scmp.eq.s32.totalorder %s17, 7
    %p156 = por %p154, %p155
    %p157 = scmp.ne.s32.totalorder %s148, %s149
    %p158 = scmp.eq.s32.totalorder %s17, 0
    %p159 = por %p157, %p158
    %p160 = scmp.ne.s32.totalorder %s148, %s149
    %p161 = scmp.eq.s32.totalorder %s18, 7
    %p162 = por %p160, %p161
    %p164 = scmp.ne.s32.totalorder %s149, %s163
    %p165 = scmp.eq.s32.totalorder %s18, 0
    %p166 = por %p164, %p165
    %s167 = ssub.s32 7, %s20
    %s168 = ssub.s32 7, %s27
    %s169 = ssub.s32 %s19, %s31
    %s170 = ssub.s32 %s167, %s168
    %s171 = sor.u32 %s169, %s170
    %p172 = scmp.eq.s32.totalorder %s171, 0
    %s174 = sadd.s32 %s173, 1
    %s175 = scalar_select %p172, %s173, %s174
    %p178 = pneg %p172
    %p179 = scmp.eq.s32.totalorder %s12, 7
    %p180 = por %p178, %p179
    %p181 = scmp.ne.s32.totalorder %s173, %s176
    %p182 = scmp.eq.s32.totalorder %s12, 0
    %p183 = por %p181, %p182
    %p184 = scmp.ne.s32.totalorder %s173, %s176
    %p185 = scmp.eq.s32.totalorder %s17, 7
    %p186 = por %p184, %p185
    %p187 = scmp.ne.s32.totalorder %s176, %s177
    %p188 = scmp.eq.s32.totalorder %s17, 0
    %p189 = por %p187, %p188
    %p190 = scmp.ne.s32.totalorder %s176, %s177
    %p191 = scmp.eq.s32.totalorder %s18, 7
    %p192 = por %p190, %p191
    %p194 = scmp.ne.s32.totalorder %s177, %s193
    %p195 = scmp.eq.s32.totalorder %s18, 0
    %p196 = por %p194, %p195
    %p197 = scmp.le.s32.totalorder 1, %s12
    %p198 = scmp.lt.s32.totalorder %s12, 9
    %p199 = pnand %p197, %p198
    %p200 = pneg %p199
    // Predicated region
    $region9: #{temporal_forward.3} parent=5 // pred_check
      _
    $region10: #{temporal_forward.3} parent=5 // pred_check_branch
      %202 = sbr.rel (%p199) target = $region12
    $region11: #{temporal_forward.3} parent=5 // pred_region
      %s203 = ssub.s32 %s12, 1
      // Predicated region
      $region13: #{temporal_forward.3} parent=11 // pred_check
        %p204 = pneg %p75
      $region14: #{temporal_forward.3} parent=11 // pred_check_branch
        %206 = sbr.rel (%p204) target = $region16
      $region15: #{temporal_forward.3} parent=11 // pred_region
        _
      $region16: #{temporal_forward.3} parent=11 // pred_fallthru
        _
      // Predicated region
      $region17: #{temporal_forward.3} parent=11 // pred_check
        %p207 = pneg %p96
      $region18: #{temporal_forward.3} parent=11 // pred_check_branch
        %209 = sbr.rel (%p207) target = $region20
      $region19: #{temporal_forward.3} parent=11 // pred_region
        _
      $region20: #{temporal_forward.3} parent=11 // pred_fallthru
        _
      // Predicated region
      $region21: #{temporal_forward.3} parent=11 // pred_check
        %p210 = pneg %p117
      $region22: #{temporal_forward.3} parent=11 // pred_check_branch
        %212 = sbr.rel (%p210) target = $region24
      $region23: #{temporal_forward.3} parent=11 // pred_region
        _
      $region24: #{temporal_forward.3} parent=11 // pred_fallthru
        _
      // Predicated region
      $region25: #{temporal_forward.3} parent=11 // pred_check
        %p213 = pneg %p138
      $region26: #{temporal_forward.3} parent=11 // pred_check_branch
        %215 = sbr.rel (%p213) target = $region28
      $region27: #{temporal_forward.3} parent=11 // pred_region
        _
      $region28: #{temporal_forward.3} parent=11 // pred_fallthru
        _
      // Predicated region
      $region29: #{temporal_forward.3} parent=11 // pred_check
        %p216 = pneg %p159
      $region30: #{temporal_forward.3} parent=11 // pred_check_branch
        %218 = sbr.rel (%p216) target = $region32
      $region31: #{temporal_forward.3} parent=11 // pred_region
        _
      $region32: #{temporal_forward.3} parent=11 // pred_fallthru
        _
    $region12: #{temporal_forward.3} parent=5 // pred_fallthru
      _
    %p219 = scmp.lt.s32.totalorder %s12, 8
    // Predicated region
    $region33: #{temporal_forward.3} parent=5 // pred_check
      %p220 = pneg %p219
    $region34: #{temporal_forward.3} parent=5 // pred_check_branch
      %222 = sbr.rel (%p220) target = $region36
    $region35: #{temporal_forward.3} parent=5 // pred_region
      // Predicated region
      $region37: #{temporal_forward.3} parent=35 // pred_check
        %p223 = pneg %p48
      $region38: #{temporal_forward.3} parent=35 // pred_check_branch
        %225 = sbr.rel (%p223) target = $region40
      $region39: #{temporal_forward.3} parent=35 // pred_region
        %s226 = ssub.s32 7, %s20
        %p227 = scmp.lt.s32.totalorder %s19, 0
        %s228 = scalar_select %p227, %s19, 0
        %p229 = scmp.lt.s32.totalorder %s226, 7
        %s230 = scalar_select %p229, %s226, 7
        %s231 = smul.addr %s230, 4
        %s232 = smul.addr %s228, 32
        %s233 = sadd.s32 %s231, %s232
        %s234 = smul.addr %s233, 4
        %s235 = scalar_lea.vmem %s0, %s234
        %s236 = ssub.s32 7, %s20
      $region40: #{temporal_forward.3} parent=35 // pred_fallthru
        _
    $region36: #{temporal_forward.3} parent=5 // pred_fallthru
      _
    %p237 = scmp.le.s32.totalorder 1, %s12
    %p238 = scmp.lt.s32.totalorder %s12, 9
    %p239 = pnand %p237, %p238
    %p240 = pneg %p239
    // Predicated region
    $region41: #{temporal_forward.3} parent=5 // pred_check
      _
    $region42: #{temporal_forward.3} parent=5 // pred_check_branch
      %242 = sbr.rel (%p239) target = $region44
    $region43: #{temporal_forward.3} parent=5 // pred_region
      %s243 = ssub.s32 %s12, 1
      %s244 = ssub.s32 7, %s22
      %p245 = scmp.lt.s32.totalorder %s21, 0
      %s246 = scalar_select %p245, %s21, 0
      %p247 = scmp.lt.s32.totalorder %s244, 7
      %s248 = scalar_select %p247, %s244, 7
      %s249 = smul.addr %s248, 4
      %s250 = smul.addr %s246, 32
      %s251 = sadd.s32 %s249, %s250
      %s252 = smul.addr %s251, 4
      %s253 = scalar_lea.vmem %s0, %s252
      %p254 = pneg %p54
      %p255 = pneg %p51
      %p256 = pneg %p75
      %p257 = pneg %p72
      %p258 = pneg %p96
      %p259 = pneg %p93
      %p260 = pneg %p117
      %p261 = pneg %p114
      %p262 = pneg %p138
      %p263 = pneg %p135
      %p264 = pneg %p159
      %p265 = pneg %p156
      %p266 = pneg %p189
      %p267 = pneg %p186
      %s268 = ssub.s32 7, %s22
      %p269 = scmp.lt.s32.totalorder %s21, 0
      %s270 = scalar_select %p269, %s21, 0
      %p271 = scmp.lt.s32.totalorder %s268, 7
      %s272 = scalar_select %p271, %s268, 7
      %s273 = smul.addr %s272, 4
      %s274 = smul.addr %s270, 32
      %s275 = sadd.s32 %s273, %s274
      %s276 = smul.addr %s275, 4
      %s277 = scalar_lea.vmem %s6, %s276
      %s278 = ssub.s32 7, %s22
      %p279 = scmp.lt.s32.totalorder %s21, 0
      %s280 = scalar_select %p279, %s21, 0
      %p281 = scmp.lt.s32.totalorder %s278, 7
      %s282 = scalar_select %p281, %s278, 7
      %s283 = smul.addr %s282, 4
      %s284 = smul.addr %s280, 32
      %s285 = sadd.s32 %s283, %s284
      %s286 = smul.addr %s285, 4
      %s287 = scalar_lea.vmem %s0, %s286
      %s288 = ssub.s32 7, %s22
      %s289 = ssub.s32 7, %s22
      %p290 = scmp.lt.s32.totalorder %s21, 0
      %s291 = scalar_select %p290, %s21, 0
      %p292 = scmp.lt.s32.totalorder %s289, 7
      %s293 = scalar_select %p292, %s289, 7
      %s294 = smul.addr %s293, 4
      %s295 = smul.addr %s291, 32
      %s296 = sadd.s32 %s294, %s295
      %s297 = smul.addr %s296, 4
      %s298 = scalar_lea.vmem %s6, %s297
      %s299 = ssub.s32 7, %s22
      %p300 = scmp.eq.s32.totalorder %s22, 0
      // Predicated region
      $region45: #{temporal_forward.3} parent=43 // pred_check
        %p301 = pneg %p300
      $region46: #{temporal_forward.3} parent=43 // pred_check_branch
        %303 = sbr.rel (%p301) target = $region48
      $region47: #{temporal_forward.3} parent=43 // pred_region
        %304 = vst [vmem:[#allocation2] sm:$0xff] 0.0
        %305 = vst [vmem:[#allocation2 + $0x8] sm:$0xff] 0.0
        %306 = vst [vmem:[#allocation2 + $0x10] sm:$0xff] 0.0
        %307 = vst [vmem:[#allocation2 + $0x18] sm:$0xff] 0.0
        %308 = vst [vmem:[#allocation3] sm:$0xff] 0.0
        %309 = vst [vmem:[#allocation3 + $0x8] sm:$0xff] 0.0
      $region48: #{temporal_forward.3} parent=43 // pred_fallthru
        _
      %v310 = vld [vmem:[%s287] sm:$0xff]
      %v311 = vld [vmem:[%s287 + $0x8] sm:$0xff]
      %v314 = vcombine.high %v310, %v310
      %v315 = vcombine.high %v311, %v311
      %318 = vst [vmem:[#allocation2] sm:$0xf] %v310
      %319 = vst [vmem:[#allocation2 + $0x8] sm:$0xf] %v314
      %320 = vst [vmem:[#allocation2 + $0x10] sm:$0xf] %v311
      %321 = vst [vmem:[#allocation2 + $0x18] sm:$0xf] %v315
      %v322 = vld [vmem:[#allocation2] sm:$0xff]
      %v323 = vld [vmem:[#allocation2 + $0x8] sm:$0xff]
      %v324 = vld [vmem:[#allocation2 + $0x10] sm:$0xff]
      %v325 = vld [vmem:[#allocation2 + $0x18] sm:$0xff]
      %327 = vrot.lane.b32.xlu0 %v325, 17
      %v328 = vpop.permute.xlu0 %327
      %333 = vrot.lane.b32.xlu0 %v322, 17
      %v334 = vpop.permute.xlu0 %333
      %335 = vrot.lane.b32.xlu0 %v323, 17
      %v336 = vpop.permute.xlu0 %335
      %337 = vrot.lane.b32.xlu0 %v324, 17
      %v338 = vpop.permute.xlu0 %337
      %vm339 = vcmask 138240
      %v340 = vsel %vm339, %v334, %v336
      %v341 = vsel %vm339, %v336, %v338
      %v342 = vsel %vm339, %v338, %v328
      %v347 = vsel %vm339, %v328, %v334
      %v348 = vld [vmem:[%s5] ss:$8 sm:$0xf]
      %v350 = vlaneseq
      %v351 = vshrl.u32 %v350, 7
      %v352 = vsub.s32 0, %v351
      %v353 = vrot.slane %v348, %v352
      %v354 = vlaneseq
      %v355 = vshrl.u32 %v354, 7
      %v356 = vsub.s32 1, %v355
      %v357 = vrot.slane %v348, %v356
      %v358 = vlaneseq
      %v359 = vshrl.u32 %v358, 7
      %v360 = vsub.s32 2, %v359
      %v361 = vrot.slane %v348, %v360
      %v362 = vlaneseq
      %v363 = vshrl.u32 %v362, 7
      %v364 = vsub.s32 3, %v363
      %v365 = vrot.slane %v348, %v364
      %v370 = vmul.f32 %v347, %v353
      %v371 = vmul.f32 %v340, %v357
      %v372 = vmul.f32 %v341, %v361
      %v373 = vmul.f32 %v342, %v365
      %374 = vst [vmem:[#allocation4] sm:$0xff] %v370
      %375 = vst [vmem:[#allocation4 + $0x8] sm:$0xff] %v371
      %376 = vst [vmem:[#allocation4 + $0x10] sm:$0xff] %v372
      %377 = vst [vmem:[#allocation4 + $0x18] sm:$0xff] %v373
      %378 = vrot.lane.b32.xlu0 %v325, 16
      %v379 = vpop.permute.xlu0 %378
      %381 = vrot.lane.b32.xlu0 %v322, 16
      %v382 = vpop.permute.xlu0 %381
      %383 = vrot.lane.b32.xlu0 %v323, 16
      %v384 = vpop.permute.xlu0 %383
      %385 = vrot.lane.b32.xlu0 %v324, 16
      %v386 = vpop.permute.xlu0 %385
      %vm387 = vcmask 130048
      %v388 = vsel %vm387, %v382, %v384
      %v389 = vsel %vm387, %v384, %v386
      %v390 = vsel %vm387, %v386, %v379
      %v395 = vsel %vm387, %v379, %v382
      %s396 = scalar_lea.vmem %s5, 1
      %v397 = vld [vmem:[%s396] ss:$8 sm:$0xf]
      %v399 = vlaneseq
      %v400 = vshrl.u32 %v399, 7
      %v401 = vsub.s32 0, %v400
      %v402 = vrot.slane %v397, %v401
      %v403 = vlaneseq
      %v404 = vshrl.u32 %v403, 7
      %v405 = vsub.s32 1, %v404
      %v406 = vrot.slane %v397, %v405
      %v407 = vlaneseq
      %v408 = vshrl.u32 %v407, 7
      %v409 = vsub.s32 2, %v408
      %v410 = vrot.slane %v397, %v409
      %v411 = vlaneseq
      %v412 = vshrl.u32 %v411, 7
      %v413 = vsub.s32 3, %v412
      %v414 = vrot.slane %v397, %v413
      %v419 = vmul.f32 %v395, %v402
      %v420 = vmul.f32 %v388, %v406
      %v421 = vmul.f32 %v389, %v410
      %v422 = vmul.f32 %v390, %v414
      %423 = vst [vmem:[#allocation4 + $0x20] sm:$0xff] %v419
      %424 = vst [vmem:[#allocation4 + $0x28] sm:$0xff] %v420
      %425 = vst [vmem:[#allocation4 + $0x30] sm:$0xff] %v421
      %426 = vst [vmem:[#allocation4 + $0x38] sm:$0xff] %v422
      %427 = vrot.lane.b32.xlu0 %v325, 15
      %v428 = vpop.permute.xlu0 %427
      %430 = vrot.lane.b32.xlu0 %v322, 15
      %v431 = vpop.permute.xlu0 %430
      %432 = vrot.lane.b32.xlu0 %v323, 15
      %v433 = vpop.permute.xlu0 %432
      %434 = vrot.lane.b32.xlu0 %v324, 15
      %v435 = vpop.permute.xlu0 %434
      %vm436 = vcmask 121856
      %v437 = vsel %vm436, %v431, %v433
      %v438 = vsel %vm436, %v433, %v435
      %v439 = vsel %vm436, %v435, %v428
      %v444 = vsel %vm436, %v428, %v431
      %s445 = scalar_lea.vmem %s5, 2
      %v446 = vld [vmem:[%s445] ss:$8 sm:$0xf]
      %v448 = vlaneseq
      %v449 = vshrl.u32 %v448, 7
      %v450 = vsub.s32 0, %v449
      %v451 = vrot.slane %v446, %v450
      %v452 = vlaneseq
      %v453 = vshrl.u32 %v452, 7
      %v454 = vsub.s32 1, %v453
      %v455 = vrot.slane %v446, %v454
      %v456 = vlaneseq
      %v457 = vshrl.u32 %v456, 7
      %v458 = vsub.s32 2, %v457
      %v459 = vrot.slane %v446, %v458
      %v460 = vlaneseq
      %v461 = vshrl.u32 %v460, 7
      %v462 = vsub.s32 3, %v461
      %v463 = vrot.slane %v446, %v462
      %v468 = vmul.f32 %v444, %v451
      %v469 = vmul.f32 %v437, %v455
      %v470 = vmul.f32 %v438, %v459
      %v471 = vmul.f32 %v439, %v463
      %472 = vst [vmem:[#allocation4 + $0x40] sm:$0xff] %v468
      %473 = vst [vmem:[#allocation4 + $0x48] sm:$0xff] %v469
      %474 = vst [vmem:[#allocation4 + $0x50] sm:$0xff] %v470
      %475 = vst [vmem:[#allocation4 + $0x58] sm:$0xff] %v471
      %476 = vrot.lane.b32.xlu0 %v325, 1
      %v477 = vpop.permute.xlu0 %476
      %479 = vrot.lane.b32.xlu0 %v322, 1
      %v480 = vpop.permute.xlu0 %479
      %481 = vrot.lane.b32.xlu0 %v323, 1
      %v482 = vpop.permute.xlu0 %481
      %483 = vrot.lane.b32.xlu0 %v324, 1
      %v484 = vpop.permute.xlu0 %483
      %vm485 = vcmask 7168
      %v486 = vsel %vm485, %v480, %v482
      %v487 = vsel %vm485, %v482, %v484
      %v488 = vsel %vm485, %v484, %v477
      %v493 = vsel %vm485, %v477, %v480
      %s494 = scalar_lea.vmem %s5, 3
      %v495 = vld [vmem:[%s494] ss:$8 sm:$0xf]
      %v497 = vlaneseq
      %v498 = vshrl.u32 %v497, 7
      %v499 = vsub.s32 0, %v498
      %v500 = vrot.slane %v495, %v499
      %v501 = vlaneseq
      %v502 = vshrl.u32 %v501, 7
      %v503 = vsub.s32 1, %v502
      %v504 = vrot.slane %v495, %v503
      %v505 = vlaneseq
      %v506 = vshrl.u32 %v505, 7
      %v507 = vsub.s32 2, %v506
      %v508 = vrot.slane %v495, %v507
      %v509 = vlaneseq
      %v510 = vshrl.u32 %v509, 7
      %v511 = vsub.s32 3, %v510
      %v512 = vrot.slane %v495, %v511
      %v517 = vmul.f32 %v493, %v500
      %v518 = vmul.f32 %v486, %v504
      %v519 = vmul.f32 %v487, %v508
      %v520 = vmul.f32 %v488, %v512
      %521 = vst [vmem:[#allocation4 + $0x60] sm:$0xff] %v517
      %522 = vst [vmem:[#allocation4 + $0x68] sm:$0xff] %v518
      %523 = vst [vmem:[#allocation4 + $0x70] sm:$0xff] %v519
      %524 = vst [vmem:[#allocation4 + $0x78] sm:$0xff] %v520
      %525 = vst [vmem:[#allocation4 + $0x80] sm:$0xff] %v322
      %526 = vst [vmem:[#allocation4 + $0x88] sm:$0xff] %v323
      %527 = vst [vmem:[#allocation4 + $0x90] sm:$0xff] %v324
      %528 = vst [vmem:[#allocation4 + $0x98] sm:$0xff] %v325
      %529 = vrot.lane.b32.xlu0 %v322, 127
      %v530 = vpop.permute.xlu0 %529
      %531 = vrot.lane.b32.xlu0 %v323, 127
      %v532 = vpop.permute.xlu0 %531
      %533 = vrot.lane.b32.xlu0 %v324, 127
      %v534 = vpop.permute.xlu0 %533
      %535 = vrot.lane.b32.xlu0 %v325, 127
      %v536 = vpop.permute.xlu0 %535
      %vm537 = vcmask 1039360
      %v538 = vsel %vm537, %v530, %v532
      %v539 = vsel %vm537, %v532, %v534
      %v540 = vsel %vm537, %v534, %v536
      %v546 = vsel %vm537, %v536, %v530
      %s547 = scalar_lea.vmem %s5, 5
      %v548 = vld [vmem:[%s547] ss:$8 sm:$0xf]
      %v550 = vlaneseq
      %v551 = vshrl.u32 %v550, 7
      %v552 = vsub.s32 0, %v551
      %v553 = vrot.slane %v548, %v552
      %v554 = vlaneseq
      %v555 = vshrl.u32 %v554, 7
      %v556 = vsub.s32 1, %v555
      %v557 = vrot.slane %v548, %v556
      %v558 = vlaneseq
      %v559 = vshrl.u32 %v558, 7
      %v560 = vsub.s32 2, %v559
      %v561 = vrot.slane %v548, %v560
      %v562 = vlaneseq
      %v563 = vshrl.u32 %v562, 7
      %v564 = vsub.s32 3, %v563
      %v565 = vrot.slane %v548, %v564
      %v570 = vmul.f32 %v538, %v553
      %v571 = vmul.f32 %v539, %v557
      %v572 = vmul.f32 %v540, %v561
      %v573 = vmul.f32 %v546, %v565
      %574 = vst [vmem:[#allocation4 + $0xa0] sm:$0xff] %v570
      %575 = vst [vmem:[#allocation4 + $0xa8] sm:$0xff] %v571
      %576 = vst [vmem:[#allocation4 + $0xb0] sm:$0xff] %v572
      %577 = vst [vmem:[#allocation4 + $0xb8] sm:$0xff] %v573
      %578 = vrot.lane.b32.xlu0 %v322, 113
      %v579 = vpop.permute.xlu0 %578
      %580 = vrot.lane.b32.xlu0 %v323, 113
      %v581 = vpop.permute.xlu0 %580
      %582 = vrot.lane.b32.xlu0 %v324, 113
      %v583 = vpop.permute.xlu0 %582
      %584 = vrot.lane.b32.xlu0 %v325, 113
      %v585 = vpop.permute.xlu0 %584
      %vm586 = vcmask 924672
      %v587 = vsel %vm586, %v579, %v581
      %v588 = vsel %vm586, %v581, %v583
      %v589 = vsel %vm586, %v583, %v585
      %v595 = vsel %vm586, %v585, %v579
      %s596 = scalar_lea.vmem %s5, 6
      %v597 = vld [vmem:[%s596] ss:$8 sm:$0xf]
      %v599 = vlaneseq
      %v600 = vshrl.u32 %v599, 7
      %v601 = vsub.s32 0, %v600
      %v602 = vrot.slane %v597, %v601
      %v603 = vlaneseq
      %v604 = vshrl.u32 %v603, 7
      %v605 = vsub.s32 1, %v604
      %v606 = vrot.slane %v597, %v605
      %v607 = vlaneseq
      %v608 = vshrl.u32 %v607, 7
      %v609 = vsub.s32 2, %v608
      %v610 = vrot.slane %v597, %v609
      %v611 = vlaneseq
      %v612 = vshrl.u32 %v611, 7
      %v613 = vsub.s32 3, %v612
      %v614 = vrot.slane %v597, %v613
      %v619 = vmul.f32 %v587, %v602
      %v620 = vmul.f32 %v588, %v606
      %v621 = vmul.f32 %v589, %v610
      %v622 = vmul.f32 %v595, %v614
      %623 = vst [vmem:[#allocation4 + $0xc0] sm:$0xff] %v619
      %624 = vst [vmem:[#allocation4 + $0xc8] sm:$0xff] %v620
      %625 = vst [vmem:[#allocation4 + $0xd0] sm:$0xff] %v621
      %626 = vst [vmem:[#allocation4 + $0xd8] sm:$0xff] %v622
      %627 = vrot.lane.b32.xlu0 %v322, 112
      %v628 = vpop.permute.xlu0 %627
      %629 = vrot.lane.b32.xlu0 %v323, 112
      %v630 = vpop.permute.xlu0 %629
      %631 = vrot.lane.b32.xlu0 %v324, 112
      %v632 = vpop.permute.xlu0 %631
      %633 = vrot.lane.b32.xlu0 %v325, 112
      %v634 = vpop.permute.xlu0 %633
      %vm635 = vcmask 916480
      %v636 = vsel %vm635, %v628, %v630
      %v637 = vsel %vm635, %v630, %v632
      %v638 = vsel %vm635, %v632, %v634
      %v644 = vsel %vm635, %v634, %v628
      %s645 = scalar_lea.vmem %s5, 7
      %v646 = vld [vmem:[%s645] ss:$8 sm:$0xf]
      %v648 = vlaneseq
      %v649 = vshrl.u32 %v648, 7
      %v650 = vsub.s32 0, %v649
      %v651 = vrot.slane %v646, %v650
      %v652 = vlaneseq
      %v653 = vshrl.u32 %v652, 7
      %v654 = vsub.s32 1, %v653
      %v655 = vrot.slane %v646, %v654
      %v656 = vlaneseq
      %v657 = vshrl.u32 %v656, 7
      %v658 = vsub.s32 2, %v657
      %v659 = vrot.slane %v646, %v658
      %v660 = vlaneseq
      %v661 = vshrl.u32 %v660, 7
      %v662 = vsub.s32 3, %v661
      %v663 = vrot.slane %v646, %v662
      %v668 = vmul.f32 %v636, %v651
      %v669 = vmul.f32 %v637, %v655
      %v670 = vmul.f32 %v638, %v659
      %v671 = vmul.f32 %v644, %v663
      %672 = vst [vmem:[#allocation4 + $0xe0] sm:$0xff] %v668
      %673 = vst [vmem:[#allocation4 + $0xe8] sm:$0xff] %v669
      %674 = vst [vmem:[#allocation4 + $0xf0] sm:$0xff] %v670
      %675 = vst [vmem:[#allocation4 + $0xf8] sm:$0xff] %v671
      %676 = vrot.lane.b32.xlu0 %v322, 111
      %v677 = vpop.permute.xlu0 %676
      %678 = vrot.lane.b32.xlu0 %v323, 111
      %v679 = vpop.permute.xlu0 %678
      %680 = vrot.lane.b32.xlu0 %v324, 111
      %v681 = vpop.permute.xlu0 %680
      %682 = vrot.lane.b32.xlu0 %v325, 111
      %v683 = vpop.permute.xlu0 %682
      %vm684 = vcmask 908288
      %v685 = vsel %vm684, %v677, %v679
      %v686 = vsel %vm684, %v679, %v681
      %v687 = vsel %vm684, %v681, %v683
      %v693 = vsel %vm684, %v683, %v677
      %s694 = scalar_lea.vmem %s5, 32
      %v695 = vld [vmem:[%s694] ss:$8 sm:$0xf]
      %v697 = vlaneseq
      %v698 = vshrl.u32 %v697, 7
      %v699 = vsub.s32 0, %v698
      %v700 = vrot.slane %v695, %v699
      %v701 = vlaneseq
      %v702 = vshrl.u32 %v701, 7
      %v703 = vsub.s32 1, %v702
      %v704 = vrot.slane %v695, %v703
      %v705 = vlaneseq
      %v706 = vshrl.u32 %v705, 7
      %v707 = vsub.s32 2, %v706
      %v708 = vrot.slane %v695, %v707
      %v709 = vlaneseq
      %v710 = vshrl.u32 %v709, 7
      %v711 = vsub.s32 3, %v710
      %v712 = vrot.slane %v695, %v711
      %v717 = vmul.f32 %v685, %v700
      %v718 = vmul.f32 %v686, %v704
      %v719 = vmul.f32 %v687, %v708
      %v720 = vmul.f32 %v693, %v712
      %721 = vst [vmem:[#allocation4 + $0x100] sm:$0xff] %v717
      %722 = vst [vmem:[#allocation4 + $0x108] sm:$0xff] %v718
      %723 = vst [vmem:[#allocation4 + $0x110] sm:$0xff] %v719
      %724 = vst [vmem:[#allocation4 + $0x118] sm:$0xff] %v720
      %v725 = vld [vmem:[%s1] sm:$0xff]
      %v726 = vld [vmem:[%s1 + $0x8] sm:$0xff]
      %v727 = vld [vmem:[#allocation4] sm:$0xff]
      %v728 = vld [vmem:[#allocation4 + $0x8] sm:$0xff]
      %v729 = vld [vmem:[#allocation4 + $0x10] sm:$0xff]
      %v730 = vld [vmem:[#allocation4 + $0x18] sm:$0xff]
      %v731 = vld [vmem:[#allocation4 + $0x20] sm:$0xff]
      %v732 = vld [vmem:[#allocation4 + $0x28] sm:$0xff]
      %v733 = vld [vmem:[#allocation4 + $0x30] sm:$0xff]
      %v734 = vld [vmem:[#allocation4 + $0x38] sm:$0xff]
      %v735 = vld [vmem:[#allocation4 + $0x40] sm:$0xff]
      %v736 = vld [vmem:[#allocation4 + $0x48] sm:$0xff]
      %v737 = vld [vmem:[#allocation4 + $0x50] sm:$0xff]
      %v738 = vld [vmem:[#allocation4 + $0x58] sm:$0xff]
      %v739 = vld [vmem:[#allocation4 + $0x60] sm:$0xff]
      %v740 = vld [vmem:[#allocation4 + $0x68] sm:$0xff]
      %v741 = vld [vmem:[#allocation4 + $0x70] sm:$0xff]
      %v742 = vld [vmem:[#allocation4 + $0x78] sm:$0xff]
      %v743 = vld [vmem:[#allocation4 + $0x80] sm:$0xff]
      %v744 = vld [vmem:[#allocation4 + $0x88] sm:$0xff]
      %v745 = vld [vmem:[#allocation4 + $0x90] sm:$0xff]
      %v746 = vld [vmem:[#allocation4 + $0x98] sm:$0xff]
      %v747 = vld [vmem:[#allocation4 + $0xa0] sm:$0xff]
      %v748 = vld [vmem:[#allocation4 + $0xa8] sm:$0xff]
      %v749 = vld [vmem:[#allocation4 + $0xb0] sm:$0xff]
      %v750 = vld [vmem:[#allocation4 + $0xb8] sm:$0xff]
      %v751 = vld [vmem:[#allocation4 + $0xc0] sm:$0xff]
      %v752 = vld [vmem:[#allocation4 + $0xc8] sm:$0xff]
      %v753 = vld [vmem:[#allocation4 + $0xd0] sm:$0xff]
      %v754 = vld [vmem:[#allocation4 + $0xd8] sm:$0xff]
      %v755 = vld [vmem:[#allocation4 + $0xe0] sm:$0xff]
      %v756 = vld [vmem:[#allocation4 + $0xe8] sm:$0xff]
      %v757 = vld [vmem:[#allocation4 + $0xf0] sm:$0xff]
      %v758 = vld [vmem:[#allocation4 + $0xf8] sm:$0xff]
      %v759 = vld [vmem:[#allocation4 + $0x100] sm:$0xff]
      %v760 = vld [vmem:[#allocation4 + $0x108] sm:$0xff]
      %v761 = vld [vmem:[#allocation4 + $0x110] sm:$0xff]
      %v762 = vld [vmem:[#allocation4 + $0x118] sm:$0xff]
      %v763 = vld [vmem:[%s2] sm:$0xff]
      %v764 = vld [vmem:[%s2 + $0x8] sm:$0xff]
      %766 = vset.pattern.permute.xlu0 0
      %767 = vperm.xlu0 %766, %v763
      %v768 = vpop.permute.xlu0 %767
      %771 = vset.pattern.permute.xlu0 0
      %772 = vperm.xlu0 %771, %v764
      %v773 = vpop.permute.xlu0 %772
      %vm775 = vcmask 588800
      %v777 = vsel %vm775, %v725, 0
      %v780 = vsel %vm775, %v726, 0
      %782 = vmatprep.subr.mxu0 %v728
      %783 = vmatpush1.msra.mxu0 %v727
      %784 = vmatprep.subr.mxu0 %v732
      %785 = vmatpush1.msra.mxu0 %v731
      %786 = vmatprep.subr.mxu0 %v736
      %787 = vmatpush1.msra.mxu0 %v735
      %788 = vmatprep.subr.mxu0 %v740
      %789 = vmatpush1.msra.mxu0 %v739
      %790 = vmatprep.subr.mxu0 %v744
      %791 = vmatpush1.msra.mxu0 %v743
      %792 = vmatprep.subr.mxu0 %v748
      %793 = vmatpush1.msra.mxu0 %v747
      %794 = vmatprep.subr.mxu0 %v752
      %795 = vmatpush1.msra.mxu0 %v751
      %796 = vmatprep.subr.mxu0 %v756
      %797 = vmatpush1.msra.mxu0 %v755
      %798 = vmatprep.subr.mxu0 %v760
      %799 = vmatpush1.msra.mxu0 %v759
      %800 = vmatprep.subr.mxu0 0.0
      %801 = vmatpush1.msra.mxu0 0.0
      %802 = vmatprep.subr.mxu0 0.0
      %803 = vmatpush1.msra.mxu0 0.0
      %804 = vmatprep.subr.mxu0 0.0
      %805 = vmatpush1.msra.mxu0 0.0
      %806 = vmatprep.subr.mxu0 0.0
      %807 = vmatpush1.msra.mxu0 0.0
      %808 = vmatprep.subr.mxu0 0.0
      %809 = vmatpush1.msra.mxu0 0.0
      %810 = vmatprep.subr.mxu0 0.0
      %811 = vmatpush1.msra.mxu0 0.0
      %812 = vmatprep.subr.mxu0 0.0
      %813 = vmatpush1.msra.mxu0 0.0
      %814 = vmatprep.subr.mxu0 0.0
      %815 = vmatpush1.msra.mxu0 0.0
      %816 = vmatprep.subr.mxu0 0.0
      %817 = vmatpush1.msra.mxu0 0.0
      %818 = vmatprep.subr.mxu0 0.0
      %819 = vmatpush1.msra.mxu0 0.0
      %820 = vmatprep.subr.mxu0 0.0
      %821 = vmatpush1.msra.mxu0 0.0
      %822 = vmatprep.subr.mxu0 0.0
      %823 = vmatpush1.msra.mxu0 0.0
      %824 = vmatprep.subr.mxu0 0.0
      %825 = vmatpush1.msra.mxu0 0.0
      %826 = vmatprep.subr.mxu0 0.0
      %827 = vmatpush1.msra.mxu0 0.0
      %828 = vmatprep.subr.mxu0 0.0
      %829 = vmatpush1.msra.mxu0 0.0
      %830 = vmatprep.subr.mxu0 0.0
      %831 = vmatpush1.msra.mxu0 0.0
      %832 = vmatprep.subr.mxu0 0.0
      %833 = vmatpush1.msra.mxu0 0.0
      %834 = vmatprep.subr.mxu0 0.0
      %835 = vmatpush1.msra.mxu0 0.0
      %836 = vmatprep.subr.mxu0 0.0
      %837 = vmatpush1.msra.mxu0 0.0
      %838 = vmatprep.subr.mxu0 0.0
      %839 = vmatpush1.msra.mxu0 0.0
      %840 = vmatprep.subr.mxu0 0.0
      %841 = vmatpush1.msra.mxu0 0.0
      %842 = vmatprep.subr.mxu0 0.0
      %843 = vmatpush1.msra.mxu0 0.0
      %844 = vmatprep.subr.mxu0 0.0
      %845 = vmatpush1.msra.mxu0 0.0
      %846 = vmatprep.mubr.f32.mxu0 0.0
      %847 = vmatmul.mubr.f32.gmra.mrb[0].mxu0 %v777
      %v848 = vpop.f32.mrb[0].mxu0
      %v849 = vadd.f32 %v768, %v848
      %v850 = vpop.f32.mrb[0].mxu0
      %v851 = vadd.f32 %v768, %v850
      %852 = vmatprep.mubr.f32.mxu0 0.0
      %853 = vmatmul.mubr.f32.gmra.mrb[0].mxu0 %v780
      %v854 = vpop.f32.mrb[0].mxu0
      %v855 = vadd.f32 %v773, %v854
      %v856 = vpop.f32.mrb[0].mxu0
      %v857 = vadd.f32 %v773, %v856
      %858 = vdwg.mxu0
      %859 = vmatprep.subr.mxu0 %v730
      %860 = vmatpush1.msra.mxu0 %v729
      %861 = vmatprep.subr.mxu0 %v734
      %862 = vmatpush1.msra.mxu0 %v733
      %863 = vmatprep.subr.mxu0 %v738
      %864 = vmatpush1.msra.mxu0 %v737
      %865 = vmatprep.subr.mxu0 %v742
      %866 = vmatpush1.msra.mxu0 %v741
      %867 = vmatprep.subr.mxu0 %v746
      %868 = vmatpush1.msra.mxu0 %v745
      %869 = vmatprep.subr.mxu0 %v750
      %870 = vmatpush1.msra.mxu0 %v749
      %871 = vmatprep.subr.mxu0 %v754
      %872 = vmatpush1.msra.mxu0 %v753
      %873 = vmatprep.subr.mxu0 %v758
      %874 = vmatpush1.msra.mxu0 %v757
      %875 = vmatprep.subr.mxu0 %v762
      %876 = vmatpush1.msra.mxu0 %v761
      %877 = vmatprep.subr.mxu0 0.0
      %878 = vmatpush1.msra.mxu0 0.0
      %879 = vmatprep.subr.mxu0 0.0
      %880 = vmatpush1.msra.mxu0 0.0
      %881 = vmatprep.subr.mxu0 0.0
      %882 = vmatpush1.msra.mxu0 0.0
      %883 = vmatprep.subr.mxu0 0.0
      %884 = vmatpush1.msra.mxu0 0.0
      %885 = vmatprep.subr.mxu0 0.0
      %886 = vmatpush1.msra.mxu0 0.0
      %887 = vmatprep.subr.mxu0 0.0
      %888 = vmatpush1.msra.mxu0 0.0
      %889 = vmatprep.subr.mxu0 0.0
      %890 = vmatpush1.msra.mxu0 0.0
      %891 = vmatprep.subr.mxu0 0.0
      %892 = vmatpush1.msra.mxu0 0.0
      %893 = vmatprep.subr.mxu0 0.0
      %894 = vmatpush1.msra.mxu0 0.0
      %895 = vmatprep.subr.mxu0 0.0
      %896 = vmatpush1.msra.mxu0 0.0
      %897 = vmatprep.subr.mxu0 0.0
      %898 = vmatpush1.msra.mxu0 0.0
      %899 = vmatprep.subr.mxu0 0.0
      %900 = vmatpush1.msra.mxu0 0.0
      %901 = vmatprep.subr.mxu0 0.0
      %902 = vmatpush1.msra.mxu0 0.0
      %903 = vmatprep.subr.mxu0 0.0
      %904 = vmatpush1.msra.mxu0 0.0
      %905 = vmatprep.subr.mxu0 0.0
      %906 = vmatpush1.msra.mxu0 0.0
      %907 = vmatprep.subr.mxu0 0.0
      %908 = vmatpush1.msra.mxu0 0.0
      %909 = vmatprep.subr.mxu0 0.0
      %910 = vmatpush1.msra.mxu0 0.0
      %911 = vmatprep.subr.mxu0 0.0
      %912 = vmatpush1.msra.mxu0 0.0
      %913 = vmatprep.subr.mxu0 0.0
      %914 = vmatpush1.msra.mxu0 0.0
      %915 = vmatprep.subr.mxu0 0.0
      %916 = vmatpush1.msra.mxu0 0.0
      %917 = vmatprep.subr.mxu0 0.0
      %918 = vmatpush1.msra.mxu0 0.0
      %919 = vmatprep.subr.mxu0 0.0
      %920 = vmatpush1.msra.mxu0 0.0
      %921 = vmatprep.subr.mxu0 0.0
      %922 = vmatpush1.msra.mxu0 0.0
      %923 = vmatprep.mubr.f32.mxu0 0.0
      %924 = vmatmul.mubr.f32.gmra.mrb[0].mxu0 %v777
      %v925 = vpop.f32.mrb[0].mxu0
      %v926 = vadd.f32 %v768, %v925
      %v927 = vpop.f32.mrb[0].mxu0
      %v928 = vadd.f32 %v768, %v927
      %929 = vmatprep.mubr.f32.mxu0 0.0
      %930 = vmatmul.mubr.f32.gmra.mrb[0].mxu0 %v780
      %v931 = vpop.f32.mrb[0].mxu0
      %v932 = vadd.f32 %v773, %v931
      %v933 = vpop.f32.mrb[0].mxu0
      %v934 = vadd.f32 %v773, %v933
      %935 = vdwg.mxu0
      %v936 = vxor.u32 %v849, 2147483648
      %v937 = vxor.u32 %v851, 2147483648
      %v938 = vxor.u32 %v926, 2147483648
      %v939 = vxor.u32 %v928, 2147483648
      %v940 = vxor.u32 %v855, 2147483648
      %v941 = vxor.u32 %v857, 2147483648
      %v942 = vxor.u32 %v932, 2147483648
      %v943 = vxor.u32 %v934, 2147483648
      %v944 = vmul.f32 %v936, 1.442695
      %v945 = vpow.pop %v944
      %v946 = vmul.f32 %v937, 1.442695
      %v947 = vpow.pop %v946
      %v948 = vmul.f32 %v938, 1.442695
      %v949 = vpow.pop %v948
      %v950 = vmul.f32 %v939, 1.442695
      %v951 = vpow.pop %v950
      %v952 = vmul.f32 %v940, 1.442695
      %v953 = vpow.pop %v952
      %v954 = vmul.f32 %v941, 1.442695
      %v955 = vpow.pop %v954
      %v956 = vmul.f32 %v942, 1.442695
      %v957 = vpow.pop %v956
      %v958 = vmul.f32 %v943, 1.442695
      %v959 = vpow.pop %v958
      %v960 = vadd.f32 %v945, 1.0
      %v961 = vadd.f32 %v947, 1.0
      %v962 = vadd.f32 %v949, 1.0
      %v963 = vadd.f32 %v951, 1.0
      %v964 = vadd.f32 %v953, 1.0
      %v965 = vadd.f32 %v955, 1.0
      %v966 = vadd.f32 %v957, 1.0
      %v967 = vadd.f32 %v959, 1.0
      %v968 = vrcp.pop %v960
      %v969 = vmul.f32 1.0, %v968
      %v970 = vrcp.pop %v961
      %v971 = vmul.f32 1.0, %v970
      %v972 = vrcp.pop %v962
      %v973 = vmul.f32 1.0, %v972
      %v974 = vrcp.pop %v963
      %v975 = vmul.f32 1.0, %v974
      %v976 = vrcp.pop %v964
      %v977 = vmul.f32 1.0, %v976
      %v978 = vrcp.pop %v965
      %v979 = vmul.f32 1.0, %v978
      %v980 = vrcp.pop %v966
      %v981 = vmul.f32 1.0, %v980
      %v982 = vrcp.pop %v967
      %v983 = vmul.f32 1.0, %v982
      %v984 = vtanh.pop %v855
      %v985 = vtanh.pop %v857
      %v986 = vtanh.pop %v932
      %v987 = vtanh.pop %v934
      %v988 = vld [vmem:[#allocation3] sm:$0xff]
      %v989 = vld [vmem:[#allocation3 + $0x8] sm:$0xff]
      %v992 = vcombine.low %v988, %v988
      %v993 = vcombine.low %v989, %v989
      %v996 = vmul.f32 %v969, %v992
      %v997 = vmul.f32 %v971, %v988
      %v998 = vmul.f32 %v973, %v993
      %v999 = vmul.f32 %v975, %v989
      %v1004 = vrot.slane %v984, 4
      %v1005 = vrot.slane %v985, 4
      %v1006 = vrot.slane %v986, 4
      %v1007 = vrot.slane %v987, 4
      %v1012 = vmul.f32 %v969, %v1004
      %v1013 = vmul.f32 %v971, %v1005
      %v1014 = vmul.f32 %v973, %v1006
      %v1015 = vmul.f32 %v975, %v1007
      %v1020 = vrot.slane %v1012, 4
      %v1021 = vrot.slane %v1013, 4
      %v1022 = vrot.slane %v1014, 4
      %v1023 = vrot.slane %v1015, 4
      %v1028 = vadd.f32 %v996, %v1020
      %v1029 = vadd.f32 %v997, %v1021
      %v1030 = vadd.f32 %v998, %v1022
      %v1031 = vadd.f32 %v999, %v1023
      %v1032 = vtanh.pop %v1028
      %v1033 = vtanh.pop %v1029
      %v1034 = vtanh.pop %v1030
      %v1035 = vtanh.pop %v1031
      %v1040 = vrot.slane %v1032, 4
      %v1041 = vrot.slane %v1033, 4
      %v1042 = vrot.slane %v1034, 4
      %v1043 = vrot.slane %v1035, 4
      %v1048 = vmul.f32 %v977, %v1040
      %v1049 = vmul.f32 %v979, %v1041
      %v1050 = vmul.f32 %v981, %v1042
      %v1051 = vmul.f32 %v983, %v1043
      %v1056 = vcombine.high %v1028, %v1029
      %v1057 = vcombine.high %v1030, %v1031
      %1060 = vst [vmem:[#allocation3] sm:$0xff] %v1056
      %1061 = vst [vmem:[#allocation3 + $0x8] sm:$0xff] %v1057
      %v1066 = vrot.slane %v1048, 4
      %v1067 = vrot.slane %v1049, 4
      %v1068 = vrot.slane %v1050, 4
      %v1069 = vrot.slane %v1051, 4
      %1074 = vst [vmem:[#allocation2] sm:$0xf0] %v1066
      %1075 = vst [vmem:[#allocation2 + $0x8] sm:$0xf0] %v1067
      %1076 = vst [vmem:[#allocation2 + $0x10] sm:$0xf0] %v1068
      %1077 = vst [vmem:[#allocation2 + $0x18] sm:$0xf0] %v1069
      %v1078 = vld [vmem:[#allocation2] sm:$0xff]
      %v1079 = vld [vmem:[#allocation2 + $0x8] sm:$0xff]
      %v1080 = vld [vmem:[#allocation2 + $0x10] sm:$0xff]
      %v1081 = vld [vmem:[#allocation2 + $0x18] sm:$0xff]
      %1083 = vrot.lane.b32.xlu0 %v1081, 17
      %v1084 = vpop.permute.xlu0 %1083
      %1089 = vrot.lane.b32.xlu0 %v1078, 17
      %v1090 = vpop.permute.xlu0 %1089
      %1091 = vrot.lane.b32.xlu0 %v1079, 17
      %v1092 = vpop.permute.xlu0 %1091
      %1093 = vrot.lane.b32.xlu0 %v1080, 17
      %v1094 = vpop.permute.xlu0 %1093
      %v1095 = vsel %vm339, %v1090, %v1092
      %v1096 = vsel %vm339, %v1092, %v1094
      %v1097 = vsel %vm339, %v1094, %v1084
      %v1102 = vsel %vm339, %v1084, %v1090
      %v1103 = vld [vmem:[%s5] ss:$8 sm:$0xf]
      %v1105 = vlaneseq
      %v1106 = vshrl.u32 %v1105, 7
      %v1107 = vsub.s32 0, %v1106
      %v1108 = vrot.slane %v1103, %v1107
      %v1109 = vlaneseq
      %v1110 = vshrl.u32 %v1109, 7
      %v1111 = vsub.s32 1, %v1110
      %v1112 = vrot.slane %v1103, %v1111
      %v1113 = vlaneseq
      %v1114 = vshrl.u32 %v1113, 7
      %v1115 = vsub.s32 2, %v1114
      %v1116 = vrot.slane %v1103, %v1115
      %v1117 = vlaneseq
      %v1118 = vshrl.u32 %v1117, 7
      %v1119 = vsub.s32 3, %v1118
      %v1120 = vrot.slane %v1103, %v1119
      %v1125 = vmul.f32 %v1102, %v1108
      %v1126 = vmul.f32 %v1095, %v1112
      %v1127 = vmul.f32 %v1096, %v1116
      %v1128 = vmul.f32 %v1097, %v1120
      %1129 = vst [vmem:[#allocation4] sm:$0xff] %v1125
      %1130 = vst [vmem:[#allocation4 + $0x8] sm:$0xff] %v1126
      %1131 = vst [vmem:[#allocation4 + $0x10] sm:$0xff] %v1127
      %1132 = vst [vmem:[#allocation4 + $0x18] sm:$0xff] %v1128
      %1133 = vrot.lane.b32.xlu0 %v1081, 16
      %v1134 = vpop.permute.xlu0 %1133
      %1136 = vrot.lane.b32.xlu0 %v1078, 16
      %v1137 = vpop.permute.xlu0 %1136
      %1138 = vrot.lane.b32.xlu0 %v1079, 16
      %v1139 = vpop.permute.xlu0 %1138
      %1140 = vrot.lane.b32.xlu0 %v1080, 16
      %v1141 = vpop.permute.xlu0 %1140
      %v1142 = vsel %vm387, %v1137, %v1139
      %v1143 = vsel %vm387, %v1139, %v1141
      %v1144 = vsel %vm387, %v1141, %v1134
      %v1149 = vsel %vm387, %v1134, %v1137
      %v1150 = vld [vmem:[%s396] ss:$8 sm:$0xf]
      %v1152 = vlaneseq
      %v1153 = vshrl.u32 %v1152, 7
      %v1154 = vsub.s32 0, %v1153
      %v1155 = vrot.slane %v1150, %v1154
      %v1156 = vlaneseq
      %v1157 = vshrl.u32 %v1156, 7
      %v1158 = vsub.s32 1, %v1157
      %v1159 = vrot.slane %v1150, %v1158
      %v1160 = vlaneseq
      %v1161 = vshrl.u32 %v1160, 7
      %v1162 = vsub.s32 2, %v1161
      %v1163 = vrot.slane %v1150, %v1162
      %v1164 = vlaneseq
      %v1165 = vshrl.u32 %v1164, 7
      %v1166 = vsub.s32 3, %v1165
      %v1167 = vrot.slane %v1150, %v1166
      %v1172 = vmul.f32 %v1149, %v1155
      %v1173 = vmul.f32 %v1142, %v1159
      %v1174 = vmul.f32 %v1143, %v1163
      %v1175 = vmul.f32 %v1144, %v1167
      %1176 = vst [vmem:[#allocation4 + $0x20] sm:$0xff] %v1172
      %1177 = vst [vmem:[#allocation4 + $0x28] sm:$0xff] %v1173
      %1178 = vst [vmem:[#allocation4 + $0x30] sm:$0xff] %v1174
      %1179 = vst [vmem:[#allocation4 + $0x38] sm:$0xff] %v1175
      %1180 = vrot.lane.b32.xlu0 %v1081, 15
      %v1181 = vpop.permute.xlu0 %1180
      %1183 = vrot.lane.b32.xlu0 %v1078, 15
      %v1184 = vpop.permute.xlu0 %1183
      %1185 = vrot.lane.b32.xlu0 %v1079, 15
      %v1186 = vpop.permute.xlu0 %1185
      %1187 = vrot.lane.b32.xlu0 %v1080, 15
      %v1188 = vpop.permute.xlu0 %1187
      %v1189 = vsel %vm436, %v1184, %v1186
      %v1190 = vsel %vm436, %v1186, %v1188
      %v1191 = vsel %vm436, %v1188, %v1181
      %v1196 = vsel %vm436, %v1181, %v1184
      %v1197 = vld [vmem:[%s445] ss:$8 sm:$0xf]
      %v1199 = vlaneseq
      %v1200 = vshrl.u32 %v1199, 7
      %v1201 = vsub.s32 0, %v1200
      %v1202 = vrot.slane %v1197, %v1201
      %v1203 = vlaneseq
      %v1204 = vshrl.u32 %v1203, 7
      %v1205 = vsub.s32 1, %v1204
      %v1206 = vrot.slane %v1197, %v1205
      %v1207 = vlaneseq
      %v1208 = vshrl.u32 %v1207, 7
      %v1209 = vsub.s32 2, %v1208
      %v1210 = vrot.slane %v1197, %v1209
      %v1211 = vlaneseq
      %v1212 = vshrl.u32 %v1211, 7
      %v1213 = vsub.s32 3, %v1212
      %v1214 = vrot.slane %v1197, %v1213
      %v1219 = vmul.f32 %v1196, %v1202
      %v1220 = vmul.f32 %v1189, %v1206
      %v1221 = vmul.f32 %v1190, %v1210
      %v1222 = vmul.f32 %v1191, %v1214
      %1223 = vst [vmem:[#allocation4 + $0x40] sm:$0xff] %v1219
      %1224 = vst [vmem:[#allocation4 + $0x48] sm:$0xff] %v1220
      %1225 = vst [vmem:[#allocation4 + $0x50] sm:$0xff] %v1221
      %1226 = vst [vmem:[#allocation4 + $0x58] sm:$0xff] %v1222
      %1227 = vrot.lane.b32.xlu0 %v1081, 1
      %v1228 = vpop.permute.xlu0 %1227
      %1230 = vrot.lane.b32.xlu0 %v1078, 1
      %v1231 = vpop.permute.xlu0 %1230
      %1232 = vrot.lane.b32.xlu0 %v1079, 1
      %v1233 = vpop.permute.xlu0 %1232
      %1234 = vrot.lane.b32.xlu0 %v1080, 1
      %v1235 = vpop.permute.xlu0 %1234
      %v1236 = vsel %vm485, %v1231, %v1233
      %v1237 = vsel %vm485, %v1233, %v1235
      %v1238 = vsel %vm485, %v1235, %v1228
      %v1243 = vsel %vm485, %v1228, %v1231
      %v1244 = vld [vmem:[%s494] ss:$8 sm:$0xf]
      %v1246 = vlaneseq
      %v1247 = vshrl.u32 %v1246, 7
      %v1248 = vsub.s32 0, %v1247
      %v1249 = vrot.slane %v1244, %v1248
      %v1250 = vlaneseq
      %v1251 = vshrl.u32 %v1250, 7
      %v1252 = vsub.s32 1, %v1251
      %v1253 = vrot.slane %v1244, %v1252
      %v1254 = vlaneseq
      %v1255 = vshrl.u32 %v1254, 7
      %v1256 = vsub.s32 2, %v1255
      %v1257 = vrot.slane %v1244, %v1256
      %v1258 = vlaneseq
      %v1259 = vshrl.u32 %v1258, 7
      %v1260 = vsub.s32 3, %v1259
      %v1261 = vrot.slane %v1244, %v1260
      %v1266 = vmul.f32 %v1243, %v1249
      %v1267 = vmul.f32 %v1236, %v1253
      %v1268 = vmul.f32 %v1237, %v1257
      %v1269 = vmul.f32 %v1238, %v1261
      %1270 = vst [vmem:[#allocation4 + $0x60] sm:$0xff] %v1266
      %1271 = vst [vmem:[#allocation4 + $0x68] sm:$0xff] %v1267
      %1272 = vst [vmem:[#allocation4 + $0x70] sm:$0xff] %v1268
      %1273 = vst [vmem:[#allocation4 + $0x78] sm:$0xff] %v1269
      %1274 = vst [vmem:[#allocation4 + $0x80] sm:$0xff] %v1078
      %1275 = vst [vmem:[#allocation4 + $0x88] sm:$0xff] %v1079
      %1276 = vst [vmem:[#allocation4 + $0x90] sm:$0xff] %v1080
      %1277 = vst [vmem:[#allocation4 + $0x98] sm:$0xff] %v1081
      %1278 = vrot.lane.b32.xlu0 %v1078, 127
      %v1279 = vpop.permute.xlu0 %1278
      %1280 = vrot.lane.b32.xlu0 %v1079, 127
      %v1281 = vpop.permute.xlu0 %1280
      %1282 = vrot.lane.b32.xlu0 %v1080, 127
      %v1283 = vpop.permute.xlu0 %1282
      %1284 = vrot.lane.b32.xlu0 %v1081, 127
      %v1285 = vpop.permute.xlu0 %1284
      %v1286 = vsel %vm537, %v1279, %v1281
      %v1287 = vsel %vm537, %v1281, %v1283
      %v1288 = vsel %vm537, %v1283, %v1285
      %v1294 = vsel %vm537, %v1285, %v1279
      %v1295 = vld [vmem:[%s547] ss:$8 sm:$0xf]
      %v1297 = vlaneseq
      %v1298 = vshrl.u32 %v1297, 7
      %v1299 = vsub.s32 0, %v1298
      %v1300 = vrot.slane %v1295, %v1299
      %v1301 = vlaneseq
      %v1302 = vshrl.u32 %v1301, 7
      %v1303 = vsub.s32 1, %v1302
      %v1304 = vrot.slane %v1295, %v1303
      %v1305 = vlaneseq
      %v1306 = vshrl.u32 %v1305, 7
      %v1307 = vsub.s32 2, %v1306
      %v1308 = vrot.slane %v1295, %v1307
      %v1309 = vlaneseq
      %v1310 = vshrl.u32 %v1309, 7
      %v1311 = vsub.s32 3, %v1310
      %v1312 = vrot.slane %v1295, %v1311
      %v1317 = vmul.f32 %v1286, %v1300
      %v1318 = vmul.f32 %v1287, %v1304
      %v1319 = vmul.f32 %v1288, %v1308
      %v1320 = vmul.f32 %v1294, %v1312
      %1321 = vst [vmem:[#allocation4 + $0xa0] sm:$0xff] %v1317
      %1322 = vst [vmem:[#allocation4 + $0xa8] sm:$0xff] %v1318
      %1323 = vst [vmem:[#allocation4 + $0xb0] sm:$0xff] %v1319
      %1324 = vst [vmem:[#allocation4 + $0xb8] sm:$0xff] %v1320
      %1325 = vrot.lane.b32.xlu0 %v1078, 113
      %v1326 = vpop.permute.xlu0 %1325
      %1327 = vrot.lane.b32.xlu0 %v1079, 113
      %v1328 = vpop.permute.xlu0 %1327
      %1329 = vrot.lane.b32.xlu0 %v1080, 113
      %v1330 = vpop.permute.xlu0 %1329
      %1331 = vrot.lane.b32.xlu0 %v1081, 113
      %v1332 = vpop.permute.xlu0 %1331
      %v1333 = vsel %vm586, %v1326, %v1328
      %v1334 = vsel %vm586, %v1328, %v1330
      %v1335 = vsel %vm586, %v1330, %v1332
      %v1341 = vsel %vm586, %v1332, %v1326
      %v1342 = vld [vmem:[%s596] ss:$8 sm:$0xf]
      %v1344 = vlaneseq
      %v1345 = vshrl.u32 %v1344, 7
      %v1346 = vsub.s32 0, %v1345
      %v1347 = vrot.slane %v1342, %v1346
      %v1348 = vlaneseq
      %v1349 = vshrl.u32 %v1348, 7
      %v1350 = vsub.s32 1, %v1349
      %v1351 = vrot.slane %v1342, %v1350
      %v1352 = vlaneseq
      %v1353 = vshrl.u32 %v1352, 7
      %v1354 = vsub.s32 2, %v1353
      %v1355 = vrot.slane %v1342, %v1354
      %v1356 = vlaneseq
      %v1357 = vshrl.u32 %v1356, 7
      %v1358 = vsub.s32 3, %v1357
      %v1359 = vrot.slane %v1342, %v1358
      %v1364 = vmul.f32 %v1333, %v1347
      %v1365 = vmul.f32 %v1334, %v1351
      %v1366 = vmul.f32 %v1335, %v1355
      %v1367 = vmul.f32 %v1341, %v1359
      %1368 = vst [vmem:[#allocation4 + $0xc0] sm:$0xff] %v1364
      %1369 = vst [vmem:[#allocation4 + $0xc8] sm:$0xff] %v1365
      %1370 = vst [vmem:[#allocation4 + $0xd0] sm:$0xff] %v1366
      %1371 = vst [vmem:[#allocation4 + $0xd8] sm:$0xff] %v1367
      %1372 = vrot.lane.b32.xlu0 %v1078, 112
      %v1373 = vpop.permute.xlu0 %1372
      %1374 = vrot.lane.b32.xlu0 %v1079, 112
      %v1375 = vpop.permute.xlu0 %1374
      %1376 = vrot.lane.b32.xlu0 %v1080, 112
      %v1377 = vpop.permute.xlu0 %1376
      %1378 = vrot.lane.b32.xlu0 %v1081, 112
      %v1379 = vpop.permute.xlu0 %1378
      %v1380 = vsel %vm635, %v1373, %v1375
      %v1381 = vsel %vm635, %v1375, %v1377
      %v1382 = vsel %vm635, %v1377, %v1379
      %v1388 = vsel %vm635, %v1379, %v1373
      %v1389 = vld [vmem:[%s645] ss:$8 sm:$0xf]
      %v1391 = vlaneseq
      %v1392 = vshrl.u32 %v1391, 7
      %v1393 = vsub.s32 0, %v1392
      %v1394 = vrot.slane %v1389, %v1393
      %v1395 = vlaneseq
      %v1396 = vshrl.u32 %v1395, 7
      %v1397 = vsub.s32 1, %v1396
      %v1398 = vrot.slane %v1389, %v1397
      %v1399 = vlaneseq
      %v1400 = vshrl.u32 %v1399, 7
      %v1401 = vsub.s32 2, %v1400
      %v1402 = vrot.slane %v1389, %v1401
      %v1403 = vlaneseq
      %v1404 = vshrl.u32 %v1403, 7
      %v1405 = vsub.s32 3, %v1404
      %v1406 = vrot.slane %v1389, %v1405
      %v1411 = vmul.f32 %v1380, %v1394
      %v1412 = vmul.f32 %v1381, %v1398
      %v1413 = vmul.f32 %v1382, %v1402
      %v1414 = vmul.f32 %v1388, %v1406
      %1415 = vst [vmem:[#allocation4 + $0xe0] sm:$0xff] %v1411
      %1416 = vst [vmem:[#allocation4 + $0xe8] sm:$0xff] %v1412
      %1417 = vst [vmem:[#allocation4 + $0xf0] sm:$0xff] %v1413
      %1418 = vst [vmem:[#allocation4 + $0xf8] sm:$0xff] %v1414
      %1419 = vrot.lane.b32.xlu0 %v1078, 111
      %v1420 = vpop.permute.xlu0 %1419
      %1421 = vrot.lane.b32.xlu0 %v1079, 111
      %v1422 = vpop.permute.xlu0 %1421
      %1423 = vrot.lane.b32.xlu0 %v1080, 111
      %v1424 = vpop.permute.xlu0 %1423
      %1425 = vrot.lane.b32.xlu0 %v1081, 111
      %v1426 = vpop.permute.xlu0 %1425
      %v1427 = vsel %vm684, %v1420, %v1422
      %v1428 = vsel %vm684, %v1422, %v1424
      %v1429 = vsel %vm684, %v1424, %v1426
      %v1435 = vsel %vm684, %v1426, %v1420
      %v1436 = vld [vmem:[%s694] ss:$8 sm:$0xf]
      %v1438 = vlaneseq
      %v1439 = vshrl.u32 %v1438, 7
      %v1440 = vsub.s32 0, %v1439
      %v1441 = vrot.slane %v1436, %v1440
      %v1442 = vlaneseq
      %v1443 = vshrl.u32 %v1442, 7
      %v1444 = vsub.s32 1, %v1443
      %v1445 = vrot.slane %v1436, %v1444
      %v1446 = vlaneseq
      %v1447 = vshrl.u32 %v1446, 7
      %v1448 = vsub.s32 2, %v1447
      %v1449 = vrot.slane %v1436, %v1448
      %v1450 = vlaneseq
      %v1451 = vshrl.u32 %v1450, 7
      %v1452 = vsub.s32 3, %v1451
      %v1453 = vrot.slane %v1436, %v1452
      %v1458 = vmul.f32 %v1427, %v1441
      %v1459 = vmul.f32 %v1428, %v1445
      %v1460 = vmul.f32 %v1429, %v1449
      %v1461 = vmul.f32 %v1435, %v1453
      %1462 = vst [vmem:[#allocation4 + $0x100] sm:$0xff] %v1458
      %1463 = vst [vmem:[#allocation4 + $0x108] sm:$0xff] %v1459
      %1464 = vst [vmem:[#allocation4 + $0x110] sm:$0xff] %v1460
      %1465 = vst [vmem:[#allocation4 + $0x118] sm:$0xff] %v1461
      %v1466 = vld [vmem:[%s3] sm:$0xf]
      %v1467 = vld [vmem:[#allocation4] sm:$0xff]
      %v1468 = vld [vmem:[#allocation4 + $0x8] sm:$0xff]
      %v1469 = vld [vmem:[#allocation4 + $0x10] sm:$0xff]
      %v1470 = vld [vmem:[#allocation4 + $0x18] sm:$0xff]
      %v1471 = vld [vmem:[#allocation4 + $0x20] sm:$0xff]
      %v1472 = vld [vmem:[#allocation4 + $0x28] sm:$0xff]
      %v1473 = vld [vmem:[#allocation4 + $0x30] sm:$0xff]
      %v1474 = vld [vmem:[#allocation4 + $0x38] sm:$0xff]
      %v1475 = vld [vmem:[#allocation4 + $0x40] sm:$0xff]
      %v1476 = vld [vmem:[#allocation4 + $0x48] sm:$0xff]
      %v1477 = vld [vmem:[#allocation4 + $0x50] sm:$0xff]
      %v1478 = vld [vmem:[#allocation4 + $0x58] sm:$0xff]
      %v1479 = vld [vmem:[#allocation4 + $0x60] sm:$0xff]
      %v1480 = vld [vmem:[#allocation4 + $0x68] sm:$0xff]
      %v1481 = vld [vmem:[#allocation4 + $0x70] sm:$0xff]
      %v1482 = vld [vmem:[#allocation4 + $0x78] sm:$0xff]
      %v1483 = vld [vmem:[#allocation4 + $0x80] sm:$0xff]
      %v1484 = vld [vmem:[#allocation4 + $0x88] sm:$0xff]
      %v1485 = vld [vmem:[#allocation4 + $0x90] sm:$0xff]
      %v1486 = vld [vmem:[#allocation4 + $0x98] sm:$0xff]
      %v1487 = vld [vmem:[#allocation4 + $0xa0] sm:$0xff]
      %v1488 = vld [vmem:[#allocation4 + $0xa8] sm:$0xff]
      %v1489 = vld [vmem:[#allocation4 + $0xb0] sm:$0xff]
      %v1490 = vld [vmem:[#allocation4 + $0xb8] sm:$0xff]
      %v1491 = vld [vmem:[#allocation4 + $0xc0] sm:$0xff]
      %v1492 = vld [vmem:[#allocation4 + $0xc8] sm:$0xff]
      %v1493 = vld [vmem:[#allocation4 + $0xd0] sm:$0xff]
      %v1494 = vld [vmem:[#allocation4 + $0xd8] sm:$0xff]
      %v1495 = vld [vmem:[#allocation4 + $0xe0] sm:$0xff]
      %v1496 = vld [vmem:[#allocation4 + $0xe8] sm:$0xff]
      %v1497 = vld [vmem:[#allocation4 + $0xf0] sm:$0xff]
      %v1498 = vld [vmem:[#allocation4 + $0xf8] sm:$0xff]
      %v1499 = vld [vmem:[#allocation4 + $0x100] sm:$0xff]
      %v1500 = vld [vmem:[#allocation4 + $0x108] sm:$0xff]
      %v1501 = vld [vmem:[#allocation4 + $0x110] sm:$0xff]
      %v1502 = vld [vmem:[#allocation4 + $0x118] sm:$0xff]
      %v1503 = vld [vmem:[%s4] sm:$0xf]
      %1505 = vset.pattern.permute.xlu0 0
      %1506 = vperm.xlu0 %1505, %v1503
      %v1507 = vpop.permute.xlu0 %1506
      %v1510 = vsel %vm775, %v1466, 0
      %1512 = vmatprep.subr.mxu0 %v1468
      %1513 = vmatpush1.msra.mxu0 %v1467
      %1514 = vmatprep.subr.mxu0 %v1472
      %1515 = vmatpush1.msra.mxu0 %v1471
      %1516 = vmatprep.subr.mxu0 %v1476
      %1517 = vmatpush1.msra.mxu0 %v1475
      %1518 = vmatprep.subr.mxu0 %v1480
      %1519 = vmatpush1.msra.mxu0 %v1479
      %1520 = vmatprep.subr.mxu0 %v1484
      %1521 = vmatpush1.msra.mxu0 %v1483
      %1522 = vmatprep.subr.mxu0 %v1488
      %1523 = vmatpush1.msra.mxu0 %v1487
      %1524 = vmatprep.subr.mxu0 %v1492
      %1525 = vmatpush1.msra.mxu0 %v1491
      %1526 = vmatprep.subr.mxu0 %v1496
      %1527 = vmatpush1.msra.mxu0 %v1495
      %1528 = vmatprep.subr.mxu0 %v1500
      %1529 = vmatpush1.msra.mxu0 %v1499
      %1530 = vmatprep.subr.mxu0 0.0
      %1531 = vmatpush1.msra.mxu0 0.0
      %1532 = vmatprep.subr.mxu0 0.0
      %1533 = vmatpush1.msra.mxu0 0.0
      %1534 = vmatprep.subr.mxu0 0.0
      %1535 = vmatpush1.msra.mxu0 0.0
      %1536 = vmatprep.subr.mxu0 0.0
      %1537 = vmatpush1.msra.mxu0 0.0
      %1538 = vmatprep.subr.mxu0 0.0
      %1539 = vmatpush1.msra.mxu0 0.0
      %1540 = vmatprep.subr.mxu0 0.0
      %1541 = vmatpush1.msra.mxu0 0.0
      %1542 = vmatprep.subr.mxu0 0.0
      %1543 = vmatpush1.msra.mxu0 0.0
      %1544 = vmatprep.subr.mxu0 0.0
      %1545 = vmatpush1.msra.mxu0 0.0
      %1546 = vmatprep.subr.mxu0 0.0
      %1547 = vmatpush1.msra.mxu0 0.0
      %1548 = vmatprep.subr.mxu0 0.0
      %1549 = vmatpush1.msra.mxu0 0.0
      %1550 = vmatprep.subr.mxu0 0.0
      %1551 = vmatpush1.msra.mxu0 0.0
      %1552 = vmatprep.subr.mxu0 0.0
      %1553 = vmatpush1.msra.mxu0 0.0
      %1554 = vmatprep.subr.mxu0 0.0
      %1555 = vmatpush1.msra.mxu0 0.0
      %1556 = vmatprep.subr.mxu0 0.0
      %1557 = vmatpush1.msra.mxu0 0.0
      %1558 = vmatprep.subr.mxu0 0.0
      %1559 = vmatpush1.msra.mxu0 0.0
      %1560 = vmatprep.subr.mxu0 0.0
      %1561 = vmatpush1.msra.mxu0 0.0
      %1562 = vmatprep.subr.mxu0 0.0
      %1563 = vmatpush1.msra.mxu0 0.0
      %1564 = vmatprep.subr.mxu0 0.0
      %1565 = vmatpush1.msra.mxu0 0.0
      %1566 = vmatprep.subr.mxu0 0.0
      %1567 = vmatpush1.msra.mxu0 0.0
      %1568 = vmatprep.subr.mxu0 0.0
      %1569 = vmatpush1.msra.mxu0 0.0
      %1570 = vmatprep.subr.mxu0 0.0
      %1571 = vmatpush1.msra.mxu0 0.0
      %1572 = vmatprep.subr.mxu0 0.0
      %1573 = vmatpush1.msra.mxu0 0.0
      %1574 = vmatprep.subr.mxu0 0.0
      %1575 = vmatpush1.msra.mxu0 0.0
      %1576 = vmatprep.mubr.f32.mxu0 0.0
      %1577 = vmatmul.mubr.f32.gmra.mrb[0].mxu0 %v1510
      %v1578 = vpop.f32.mrb[0].mxu0
      %v1579 = vadd.f32 %v1507, %v1578
      %v1580 = vpop.f32.mrb[0].mxu0
      %v1581 = vadd.f32 %v1507, %v1580
      %1582 = vdwg.mxu0
      %1583 = vmatprep.subr.mxu0 %v1470
      %1584 = vmatpush1.msra.mxu0 %v1469
      %1585 = vmatprep.subr.mxu0 %v1474
      %1586 = vmatpush1.msra.mxu0 %v1473
      %1587 = vmatprep.subr.mxu0 %v1478
      %1588 = vmatpush1.msra.mxu0 %v1477
      %1589 = vmatprep.subr.mxu0 %v1482
      %1590 = vmatpush1.msra.mxu0 %v1481
      %1591 = vmatprep.subr.mxu0 %v1486
      %1592 = vmatpush1.msra.mxu0 %v1485
      %1593 = vmatprep.subr.mxu0 %v1490
      %1594 = vmatpush1.msra.mxu0 %v1489
      %1595 = vmatprep.subr.mxu0 %v1494
      %1596 = vmatpush1.msra.mxu0 %v1493
      %1597 = vmatprep.subr.mxu0 %v1498
      %1598 = vmatpush1.msra.mxu0 %v1497
      %1599 = vmatprep.subr.mxu0 %v1502
      %1600 = vmatpush1.msra.mxu0 %v1501
      %1601 = vmatprep.subr.mxu0 0.0
      %1602 = vmatpush1.msra.mxu0 0.0
      %1603 = vmatprep.subr.mxu0 0.0
      %1604 = vmatpush1.msra.mxu0 0.0
      %1605 = vmatprep.subr.mxu0 0.0
      %1606 = vmatpush1.msra.mxu0 0.0
      %1607 = vmatprep.subr.mxu0 0.0
      %1608 = vmatpush1.msra.mxu0 0.0
      %1609 = vmatprep.subr.mxu0 0.0
      %1610 = vmatpush1.msra.mxu0 0.0
      %1611 = vmatprep.subr.mxu0 0.0
      %1612 = vmatpush1.msra.mxu0 0.0
      %1613 = vmatprep.subr.mxu0 0.0
      %1614 = vmatpush1.msra.mxu0 0.0
      %1615 = vmatprep.subr.mxu0 0.0
      %1616 = vmatpush1.msra.mxu0 0.0
      %1617 = vmatprep.subr.mxu0 0.0
      %1618 = vmatpush1.msra.mxu0 0.0
      %1619 = vmatprep.subr.mxu0 0.0
      %1620 = vmatpush1.msra.mxu0 0.0
      %1621 = vmatprep.subr.mxu0 0.0
      %1622 = vmatpush1.msra.mxu0 0.0
      %1623 = vmatprep.subr.mxu0 0.0
      %1624 = vmatpush1.msra.mxu0 0.0
      %1625 = vmatprep.subr.mxu0 0.0
      %1626 = vmatpush1.msra.mxu0 0.0
      %1627 = vmatprep.subr.mxu0 0.0
      %1628 = vmatpush1.msra.mxu0 0.0
      %1629 = vmatprep.subr.mxu0 0.0
      %1630 = vmatpush1.msra.mxu0 0.0
      %1631 = vmatprep.subr.mxu0 0.0
      %1632 = vmatpush1.msra.mxu0 0.0
      %1633 = vmatprep.subr.mxu0 0.0
      %1634 = vmatpush1.msra.mxu0 0.0
      %1635 = vmatprep.subr.mxu0 0.0
      %1636 = vmatpush1.msra.mxu0 0.0
      %1637 = vmatprep.subr.mxu0 0.0
      %1638 = vmatpush1.msra.mxu0 0.0
      %1639 = vmatprep.subr.mxu0 0.0
      %1640 = vmatpush1.msra.mxu0 0.0
      %1641 = vmatprep.subr.mxu0 0.0
      %1642 = vmatpush1.msra.mxu0 0.0
      %1643 = vmatprep.subr.mxu0 0.0
      %1644 = vmatpush1.msra.mxu0 0.0
      %1645 = vmatprep.subr.mxu0 0.0
      %1646 = vmatpush1.msra.mxu0 0.0
      %1647 = vmatprep.mubr.f32.mxu0 0.0
      %1648 = vmatmul.mubr.f32.gmra.mrb[0].mxu0 %v1510
      %v1649 = vpop.f32.mrb[0].mxu0
      %v1650 = vadd.f32 %v1507, %v1649
      %v1651 = vpop.f32.mrb[0].mxu0
      %v1652 = vadd.f32 %v1507, %v1651
      %1653 = vdwg.mxu0
      %v1654 = vmax.f32 %v1579, 0.0
      %v1655 = vmax.f32 %v1581, 0.0
      %v1656 = vmax.f32 %v1650, 0.0
      %v1657 = vmax.f32 %v1652, 0.0
      %v1658 = vtanh.pop %v1654
      %v1659 = vtanh.pop %v1655
      %v1660 = vtanh.pop %v1656
      %v1661 = vtanh.pop %v1657
      %v1666 = vcombine.low %v1658, %v1659
      %v1667 = vcombine.low %v1660, %v1661
      %1670 = vst [vmem:[%s298] sm:$0xff] %v1666
      %1671 = vst [vmem:[%s298 + $0x8] sm:$0xff] %v1667
      %s1672 = ssub.s32 7, %s22
      %p1673 = scmp.lt.s32.totalorder %s21, 0
      %s1674 = scalar_select %p1673, %s21, 0
      %p1675 = scmp.lt.s32.totalorder %s1672, 7
      %s1676 = scalar_select %p1675, %s1672, 7
      %s1677 = smul.addr %s1676, 4
      %s1678 = smul.addr %s1674, 32
      %s1679 = sadd.s32 %s1677, %s1678
      %s1680 = smul.addr %s1679, 4
      %s1681 = scalar_lea.vmem %s6, %s1680
      // Predicated region
      $region49: #{temporal_forward.3} parent=43 // pred_check
        %p1682 = pneg %p186
      $region50: #{temporal_forward.3} parent=43 // pred_check_branch
        %1684 = sbr.rel (%p1682) target = $region52
      $region51: #{temporal_forward.3} parent=43 // pred_region
        %s1685 = ssub.s32 7, %s22
      $region52: #{temporal_forward.3} parent=43 // pred_fallthru
        _
    $region44: #{temporal_forward.3} parent=5 // pred_fallthru
      _
    %p1686 = scmp.le.s32.totalorder 2, %s12
    // Predicated region
    $region53: #{temporal_forward.3} parent=5 // pred_check
      %p1687 = pneg %p1686
    $region54: #{temporal_forward.3} parent=5 // pred_check_branch
      %1689 = sbr.rel (%p1687) target = $region56
    $region55: #{temporal_forward.3} parent=5 // pred_region
      %s1690 = ssub.s32 %s12, 2
      // Predicated region
      $region57: #{temporal_forward.3} parent=55 // pred_check
        %p1691 = pneg %p192
      $region58: #{temporal_forward.3} parent=55 // pred_check_branch
        %1693 = sbr.rel (%p1691) target = $region60
      $region59: #{temporal_forward.3} parent=55 // pred_region
        %s1694 = ssub.s32 7, %s24
        %p1695 = scmp.lt.s32.totalorder %s23, 0
        %s1696 = scalar_select %p1695, %s23, 0
        %p1697 = scmp.lt.s32.totalorder %s1694, 7
        %s1698 = scalar_select %p1697, %s1694, 7
        %s1699 = smul.addr %s1698, 4
        %s1700 = smul.addr %s1696, 32
        %s1701 = sadd.s32 %s1699, %s1700
        %s1702 = smul.addr %s1701, 4
        %s1703 = scalar_lea.vmem %s6, %s1702
      $region60: #{temporal_forward.3} parent=55 // pred_fallthru
        _
    $region56: #{temporal_forward.3} parent=5 // pred_fallthru
      _
  $region6: #{temporal_forward.3} parent=0 // loop_footer
    %s16 = sadd.s32 1, %s12
  $region7: #{temporal_forward.3} parent=0 // loop_footer_branch
    %11 = sbr.rel target = $region3
  $region8: #{temporal_forward.3} parent=0 // loop_exit
    _

</llo_original>
